<compile_context>
chip_gen: v6e
topology: v6e:2x2x1
jax: 0.10.0
libtpu: 0.0.40
codegen_flags: <defaults>
</compile_context>

<pallas_src>
import functools

import numpy as np
import jax
import jax.numpy as jnp
from jax.experimental import pallas as pl
from jax.experimental.pallas import tpu as pltpu


# Set to jnp.bfloat16 to run the MXU at native bf16 rate (accumulation stays f32);
# kept at f32 for exact parity with the PyTorch float32 FFT path.
MATMUL_DTYPE = jnp.float32


def _round_up(v, m):
    return ((v + m - 1) // m) * m


def _mm(a, b):
    return jnp.dot(a.astype(MATMUL_DTYPE), b.astype(MATMUL_DTYPE),
                   preferred_element_type=jnp.float32)


def _bn_relu(x, proj, gamma_rows, beta_rows, count):
    """Training-mode BatchNorm2d (biased var, eps=1e-5) + ReLU on a (rows, lanes) slab.

    Rows are (batch, channel); `proj` is the same-channel row-indicator matrix.
    Lane-reduce first, then mix rows with the projector ((R,R)x(R,1) matvec), so the
    projector matmuls are nearly free.  Variance uses E[x^2] - mean^2, which is exact
    even when rows are zero-padded beyond `count` real elements (padded spectra).
    """
    inv_count = 1.0 / float(count)
    rs = jnp.sum(x, axis=-1, keepdims=True)                    # (R, 1)
    rq = jnp.sum(x * x, axis=-1, keepdims=True)                # (R, 1)
    mean = jnp.dot(proj, rs, preferred_element_type=jnp.float32) * inv_count
    ex2 = jnp.dot(proj, rq, preferred_element_type=jnp.float32) * inv_count
    var = ex2 - mean * mean
    scale = jax.lax.rsqrt(var + 1e-5) * gamma_rows
    return jnp.maximum((x - mean) * scale + beta_rows, 0.0)


# ---------------------------------------------------------------------------
# The single fused kernel: whole FFC_BN_ACT forward.
# ---------------------------------------------------------------------------
def _ffc_kernel(x_ref, a_in_ref, a_st2_ref, a_fu_ref, a_lfu_ref, p_place_ref,
                p_l_ref, p_cg_ref, p_g_ref, p_fu_ref,
                bn1_ref, bnfu_ref, bnlfu_ref, bnl_ref, bng_ref,
                ffwd_hbm, finv_re_hbm, finv_im_hbm,
                cfwd_hbm, cinv_re_hbm, cinv_im_hbm,
                out_l_ref, out_g_ref,
                ffwd_v, finv_re_v, finv_im_v, cfwd_v, cinv_re_v, cinv_im_v, dma_sem,
                *, count_hw, count_spec, count_lspec):
    # Kick off the big static DFT-operator copies (HBM -> VMEM scratch) immediately;
    # stage 1 below only needs the small operators that are already in VMEM, so the
    # operator DMA is hidden behind it.
    copies = (
        pltpu.make_async_copy(ffwd_hbm, ffwd_v, dma_sem.at[0]),
        pltpu.make_async_copy(finv_re_hbm, finv_re_v, dma_sem.at[1]),
        pltpu.make_async_copy(finv_im_hbm, finv_im_v, dma_sem.at[2]),
        pltpu.make_async_copy(cfwd_hbm, cfwd_v, dma_sem.at[3]),
        pltpu.make_async_copy(cinv_re_hbm, cinv_re_v, dma_sem.at[4]),
        pltpu.make_async_copy(cinv_im_hbm, cinv_im_v, dma_sem.at[5]),
    )
    for cp in copies:
        cp.start()

    n_l = out_l_ref.shape[0]           # N * out_cl rows
    n_g = out_g_ref.shape[0]           # N * out_cg rows
    n_m = p_cg_ref.shape[0]            # N * (out_cg // 2) rows
    spec_pad = finv_re_v.shape[0]      # lane-padded full-res spectral width
    lspec_pad = cinv_re_v.shape[0]     # lane-padded LFU spectral width

    x = x_ref[...]                                             # (N*Cin, H*W)

    # ---- stage 1: convl2l+convg2l, convl2g and SpectralTransform.conv1 fused into
    # ONE row-stacked matmul; slices land on 8-sublane boundaries (16/16/8 rows).
    y = _mm(a_in_ref[...], x)                                  # (n_l+n_g+n_m, HW)
    y_l2g = y[n_l:n_l + n_g]                                   # convl2g(x_l)

    # ---- local branch + conv1 BN/ReLU (this compute overlaps the operator DMAs) --
    out_l_ref[...] = _bn_relu(y[0:n_l], p_l_ref[...],
                              bnl_ref[0], bnl_ref[1], count_hw)
    xm = _bn_relu(y[n_l + n_g:], p_cg_ref[...],
                  bn1_ref[0], bn1_ref[1], count_hw)            # (n_m, HW)

    # ---- global FourierUnit: rfft2 (re|im column-merged) -> 2x2-block 1x1 conv ----
    # -> fused BN+ReLU over the row-stacked [re; im] spectra.
    copies[0].wait()
    s_cat = _mm(xm, ffwd_v[...])                               # (n_m, 2*spec_pad)
    s_stk = jnp.concatenate([s_cat[:, :spec_pad], s_cat[:, spec_pad:]], axis=0)
    o_stk = _bn_relu(_mm(a_fu_ref[...], s_stk), p_fu_ref[...],
                     bnfu_ref[0], bnfu_ref[1], count_spec)     # (2*n_m, spec_pad)

    # ---- local FourierUnit (LFU): all 4 quadrant spectra (re|im) in ONE matmul ----
    # then one placement matmul puts channel-0's quadrant spectra on the LFU rows.
    copies[3].wait()
    ls_all = _mm(xm, cfwd_v[...])                              # (n_m, 8*lspec_pad)
    ls_big = jnp.concatenate(
        [ls_all[:, k * lspec_pad:(k + 1) * lspec_pad] for k in range(8)], axis=0)
    ls_stk = _mm(p_place_ref[...], ls_big)                     # (2*n_m, lspec_pad)
    lo_stk = _bn_relu(_mm(a_lfu_ref[...], ls_stk), p_fu_ref[...],
                      bnlfu_ref[0], bnlfu_ref[1], count_lspec)

    # ---- inverse transforms; padded spectral rows of the inverse operators are 0,
    # so the BN/ReLU garbage in the padded lanes never reaches the output.
    copies[1].wait()
    copies[2].wait()
    fu_out = _mm(o_stk[0:n_m], finv_re_v[...]) + _mm(o_stk[n_m:], finv_im_v[...])
    copies[4].wait()
    copies[5].wait()
    xs_rep = _mm(lo_stk[0:n_m], cinv_re_v[...]) + _mm(lo_stk[n_m:], cinv_im_v[...])

    # ---- SpectralTransform.conv2(x + fu + lfu) + convl2g(x_l) -> bn_g -> ReLU -----
    st_sum = xm + fu_out + xs_rep
    out_g_ref[...] = _bn_relu(_mm(a_st2_ref[...], st_sum) + y_l2g,
                              p_g_ref[...], bng_ref[0], bng_ref[1], count_hw)


# ---------------------------------------------------------------------------
# Offline (numpy) construction of all static operator matrices.
# ---------------------------------------------------------------------------
def build_dft_mats(H, W):
    """Dense real matrices reproducing torch.fft.rfftn / irfftn over dims (-2,-1),
    norm='ortho', on row-major flattened (H, W) images:
        re = x @ Ffwd_re ; im = x @ Ffwd_im       (x: (..., H*W))
        x  = re @ Finv_re + im @ Finv_im          (re/im: (..., H*Wf))
    """
    Wf = W // 2 + 1
    hh, ww = np.arange(H), np.arange(W)
    kh, kw = np.arange(H), np.arange(Wf)
    Ph = np.exp(-2j * np.pi * np.outer(hh, kh) / H)          # (H, H)
    Pw = np.exp(-2j * np.pi * np.outer(ww, kw) / W)          # (W, Wf)
    M = np.einsum('hk,wl->hwkl', Ph, Pw).reshape(H * W, H * Wf) / np.sqrt(H * W)

    Qh = np.exp(2j * np.pi * np.outer(kh, hh) / H)           # (H, H)
    Qw = np.exp(2j * np.pi * np.outer(kw, ww) / W)           # (Wf, W)
    Minv = np.einsum('kh,lw->klhw', Qh, Qw).reshape(H * Wf, H * W) / np.sqrt(H * W)
    alpha = np.full(Wf, 2.0)
    alpha[0] = 1.0
    if W % 2 == 0:
        alpha[-1] = 1.0
    a = np.tile(alpha, H)[:, None]                           # rows ordered (kh, kw)
    return (M.real.astype(np.float32), M.imag.astype(np.float32),
            (a * Minv.real).astype(np.float32), (-a * Minv.imag).astype(np.float32))


def _quad_select_mats(H, W):
    """0/1 matrices extracting the 4 spatial quadrants (torch split/cat order:
    top-left, bottom-left, top-right, bottom-right) from a row-major (H*W,) row."""
    h2, w2 = H // 2, W // 2
    sels = []
    for dh, dw in ((0, 0), (h2, 0), (0, w2), (h2, w2)):
        s = np.zeros((H * W, h2 * w2), np.float32)
        for hp in range(h2):
            for wp in range(w2):
                s[(hp + dh) * W + (wp + dw), hp * w2 + wp] = 1.0
        sels.append(s)
    return sels


def _repeat_mat(H, W):
    """0/1 matrix implementing torch `.repeat(1, 1, 2, 2)` (2x2 spatial tiling)."""
    h2, w2 = H // 2, W // 2
    r = np.zeros((h2 * w2, H * W), np.float32)
    for h in range(H):
        for w in range(W):
            r[(h % h2) * w2 + (w % w2), h * W + w] = 1.0
    return r


def _pad_cols(m, width):
    out = np.zeros((m.shape[0], width), np.float32)
    out[:, :m.shape[1]] = m
    return out


def _pad_rows(m, height):
    out = np.zeros((height, m.shape[1]), np.float32)
    out[:m.shape[0], :] = m
    return out


def prepare_operands(params, N, in_channels, out_channels, H, W):
    """Precompute every static operator the fused kernel needs: the row-stacked input
    conv operator, 2x2 re/im block conv operators, lane-padded DFT matrices (with the
    LFU quadrant split / 2x2 repeat folded in), the LFU placement matrix, BN row
    projectors and row-expanded affine parameters."""
    in_cl = in_channels // 2
    out_cl = out_channels // 2
    out_cg = out_channels - out_cl
    cg2 = out_cg // 2
    Hl, Wl = H // 2, W // 2
    Wf = W // 2 + 1
    Wfl = Wl // 2 + 1
    SPEC, SPEC_PAD = H * Wf, _round_up(H * Wf, 128)
    LSPEC, LSPEC_PAD = Hl * Wfl, _round_up(Hl * Wfl, 128)
    del SPEC, LSPEC  # (true counts are passed to the kernel by the wrapper)

    # The LFU quadrant->channel add-back (xs has exactly cg2 channels) only holds
    # for this configuration; guard it explicitly (see review correctness note).
    assert cg2 == 4, "LFU folding assumes out_channels//2//2 == 4"

    p = {k: np.asarray(v, np.float32) for k, v in params.items()}
    eye_n = np.eye(N, dtype=np.float32)

    # ---- stage-1 operator: rows = [convl2l+convg2l | convl2g | st.conv1], block-
    # diagonal over batch.  Row-block sizes (N*out_cl, N*out_cg, N*cg2) are all
    # multiples of 8 so the in-kernel slices are sublane-aligned.
    n_l, n_g, n_m = N * out_cl, N * out_cg, N * cg2
    A_in = np.zeros((n_l + n_g + n_m, N * in_channels), np.float32)
    for n in range(N):
        c0 = n * in_channels
        A_in[n * out_cl:(n + 1) * out_cl, c0:c0 + in_cl] = p['w_l2l']
        A_in[n * out_cl:(n + 1) * out_cl, c0 + in_cl:c0 + in_channels] = p['w_g2l']
        A_in[n_l + n * out_cg:n_l + (n + 1) * out_cg, c0:c0 + in_cl] = p['w_l2g']
        A_in[n_l + n_g + n * cg2:n_l + n_g + (n + 1) * cg2,
             c0 + in_cl:c0 + in_channels] = p['w_st1']
    A_st2 = np.kron(eye_n, p['w_st2'])                         # (n_g, n_m)

    # ---- FourierUnit 1x1 convs (PyTorch interleaved re/im channel order) as a
    # single 2x2 block operator acting on row-stacked [re; im] spectra.
    def fu_block(w):
        Wrr, Wri = w[0::2, 0::2], w[0::2, 1::2]
        Wir, Wii = w[1::2, 0::2], w[1::2, 1::2]
        top = np.concatenate([np.kron(eye_n, Wrr), np.kron(eye_n, Wri)], axis=1)
        bot = np.concatenate([np.kron(eye_n, Wir), np.kron(eye_n, Wii)], axis=1)
        return np.concatenate([top, bot], axis=0).astype(np.float32)

    A_fu = fu_block(p['w_fu'])                                 # (2*n_m, 2*n_m)
    A_lfu = fu_block(p['w_lfu'])

    # ---- DFT operators (dense, 'ortho'), lane-padded; re|im column-merged forward.
    Ffwd_re, Ffwd_im, Finv_re, Finv_im = build_dft_mats(H, W)
    Ffwd_cat = np.concatenate([_pad_cols(Ffwd_re, SPEC_PAD),
                               _pad_cols(Ffwd_im, SPEC_PAD)], axis=1)
    Finv_re_p = _pad_rows(Finv_re, SPEC_PAD)
    Finv_im_p = _pad_rows(Finv_im, SPEC_PAD)

    # ---- LFU: quadrant extraction folded into the forward DFTs, 2x2 repeat into the
    # inverse; all 8 (quadrant x re/im) operators column-merged into one matrix.
    Flf_re, Flf_im, Fli_re, Fli_im = build_dft_mats(Hl, Wl)
    sels = _quad_select_mats(H, W)
    rep = _repeat_mat(H, W)
    Cfwd_all = np.concatenate(
        [_pad_cols(s @ Flf_re, LSPEC_PAD) for s in sels]       # chunks 0..3: re(q)
        + [_pad_cols(s @ Flf_im, LSPEC_PAD) for s in sels],    # chunks 4..7: im(q)
        axis=1)                                                # (HW, 8*LSPEC_PAD)
    Cinv_re = _pad_rows(Fli_re @ rep, LSPEC_PAD)               # (LSPEC_PAD, HW)
    Cinv_im = _pad_rows(Fli_im @ rep, LSPEC_PAD)

    # ---- LFU row placement: one (2*n_m, 8*n_m) matmul applied to the row-stacked
    # lane chunks of xm @ Cfwd_all (chunk k, xm-row r -> ls_big row k*n_m + r).
    P_place = np.zeros((2 * n_m, 8 * n_m), np.float32)
    for n in range(N):
        for q in range(4):
            P_place[n * 4 + q, q * n_m + n * cg2] = 1.0              # re block
            P_place[n_m + n * 4 + q, (4 + q) * n_m + n * cg2] = 1.0  # im block

    # ---- BN same-channel row projectors and row-expanded affine parameters.
    ones_n = np.ones((N, N), np.float32)
    P_l = np.kron(ones_n, np.eye(out_cl, dtype=np.float32))
    P_g = np.kron(ones_n, np.eye(out_cg, dtype=np.float32))
    P_cg = np.kron(ones_n, np.eye(cg2, dtype=np.float32))
    Z = np.zeros_like(P_cg)
    P_fu = np.block([[P_cg, Z], [Z, P_cg]])                    # re/im stacked rows

    def bn_rows(gamma, beta):
        return np.stack([np.tile(gamma, N).reshape(-1, 1),
                         np.tile(beta, N).reshape(-1, 1)]).astype(np.float32)

    def bn_rows_fu(gamma, beta):
        g = np.concatenate([np.tile(gamma[0::2], N), np.tile(gamma[1::2], N)])
        b = np.concatenate([np.tile(beta[0::2], N), np.tile(beta[1::2], N)])
        return np.stack([g.reshape(-1, 1), b.reshape(-1, 1)]).astype(np.float32)

    ops = dict(
        A_in=A_in, A_st2=A_st2, A_fu=A_fu, A_lfu=A_lfu, P_place=P_place,
        P_l=P_l, P_cg=P_cg, P_g=P_g, P_fu=P_fu,
        bn1=bn_rows(p['bn1_g'], p['bn1_b']),
        bnfu=bn_rows_fu(p['bnfu_g'], p['bnfu_b']),
        bnlfu=bn_rows_fu(p['bnlfu_g'], p['bnlfu_b']),
        bnl=bn_rows(p['bnl_g'], p['bnl_b']),
        bng=bn_rows(p['bng_g'], p['bng_b']),
        Ffwd_cat=Ffwd_cat, Finv_re=Finv_re_p, Finv_im=Finv_im_p,
        Cfwd_all=Cfwd_all, Cinv_re=Cinv_re, Cinv_im=Cinv_im,
    )
    return {k: jnp.asarray(v) for k, v in ops.items()}


_VMEM_OPS = ('A_in', 'A_st2', 'A_fu', 'A_lfu', 'P_place',
             'P_l', 'P_cg', 'P_g', 'P_fu',
             'bn1', 'bnfu', 'bnlfu', 'bnl', 'bng')
_ANY_OPS = ('Ffwd_cat', 'Finv_re', 'Finv_im', 'Cfwd_all', 'Cinv_re', 'Cinv_im')


# ---------------------------------------------------------------------------
# Public forward: one pallas_call for the whole module.
# ---------------------------------------------------------------------------
def ffc_bn_act_forward(x_nchw, ops):
    """x_nchw: (N, C, H, W); channels [0, C/2) are the local branch and [C/2, C) the
    global branch (the PyTorch tuple input (x_l, x_g) concatenated on channels).
    Returns (out_l, out_g), each (N, C_out/2, H, W)."""
    N, C, H, W = x_nchw.shape
    HW = H * W
    x_rows = x_nchw.reshape(N * C, HW).astype(jnp.float32)   # free reshape

    vmem_inputs = [x_rows] + [ops[k] for k in _VMEM_OPS]
    any_inputs = [ops[k] for k in _ANY_OPS]

    n_l = ops['P_l'].shape[0]
    n_g = ops['P_g'].shape[0]
    n_m = ops['P_cg'].shape[0]
    spec_pad = ops['Finv_re'].shape[0]
    lspec_pad = ops['Cinv_re'].shape[0]

    count_hw = N * HW
    count_spec = N * H * (W // 2 + 1)
    count_lspec = N * (H // 2) * ((W // 2) // 2 + 1)

    in_specs = ([pl.BlockSpec(a.shape, lambda i, nd=a.ndim: (0,) * nd)
                 for a in vmem_inputs]
                + [pl.BlockSpec(memory_space=pl.ANY) for _ in any_inputs])
    scratch_shapes = ([pltpu.VMEM(a.shape, jnp.float32) for a in any_inputs]
                      + [pltpu.SemaphoreType.DMA((len(any_inputs),))])

    # Advisory cost estimate so XLA schedules surrounding ops sensibly.
    flops = 2 * (ops['A_in'].shape[0] * ops['A_in'].shape[1] * HW
                 + n_m * HW * ops['Ffwd_cat'].shape[1]
                 + (2 * n_m) * (2 * n_m) * spec_pad
                 + 2 * n_m * spec_pad * HW
                 + n_m * HW * ops['Cfwd_all'].shape[1]
                 + (2 * n_m) * ops['P_place'].shape[1] * lspec_pad
                 + (2 * n_m) * (2 * n_m) * lspec_pad
                 + 2 * n_m * lspec_pad * HW
                 + n_g * n_m * HW)
    bytes_accessed = int(sum(int(np.prod(a.shape)) * 4
                             for a in vmem_inputs + any_inputs)
                         + (n_l + n_g) * HW * 4)
    transcendentals = n_l + n_g + n_m + 4 * n_m   # one rsqrt per BN row

    kernel = functools.partial(_ffc_kernel, count_hw=count_hw,
                               count_spec=count_spec, count_lspec=count_lspec)

    out_l, out_g = pl.pallas_call(
        kernel,
        out_shape=(jax.ShapeDtypeStruct((n_l, HW), jnp.float32),
                   jax.ShapeDtypeStruct((n_g, HW), jnp.float32)),
        grid=(1,),
        in_specs=in_specs,
        out_specs=(pl.BlockSpec((n_l, HW), lambda i: (0, 0)),
                   pl.BlockSpec((n_g, HW), lambda i: (0, 0))),
        scratch_shapes=scratch_shapes,
        compiler_params=pltpu.CompilerParams(
            dimension_semantics=("arbitrary",)),
        cost_estimate=pl.CostEstimate(flops=int(flops),
                                      transcendentals=int(transcendentals),
                                      bytes_accessed=bytes_accessed),
    )(*(vmem_inputs + any_inputs))

    return (out_l.reshape(N, n_l // N, H, W),
            out_g.reshape(N, n_g // N, H, W))


# ---------------------------------------------------------------------------
# Deterministic parameter init (PyTorch layout conventions: conv weights are
# (out, in) 1x1 kernels; FourierUnit conv/BN use interleaved re/im channels).
# ---------------------------------------------------------------------------
def init_params(key, in_channels, out_channels):
    in_cl = in_channels // 2
    in_cg = in_channels - in_cl
    out_cl = out_channels // 2
    out_cg = out_channels - out_cl
    cg2 = out_cg // 2
    ks = jax.random.split(key, 17)

    def w(k, cout, cin):
        return 0.1 * jax.random.normal(k, (cout, cin), jnp.float32)

    def g(k, c):
        return 1.0 + 0.1 * jax.random.normal(k, (c,), jnp.float32)

    def b(k, c):
        return 0.1 * jax.random.normal(k, (c,), jnp.float32)

    return dict(
        w_l2l=w(ks[0], out_cl, in_cl),
        w_l2g=w(ks[1], out_cg, in_cl),
        w_g2l=w(ks[2], out_cl, in_cg),
        # SpectralTransform
        w_st1=w(ks[3], cg2, in_cg),
        bn1_g=g(ks[4], cg2), bn1_b=b(ks[5], cg2),
        w_fu=w(ks[6], 2 * cg2, 2 * cg2),
        bnfu_g=g(ks[7], 2 * cg2), bnfu_b=b(ks[8], 2 * cg2),
        w_lfu=w(ks[9], 2 * cg2, 2 * cg2),
        bnlfu_g=g(ks[10], 2 * cg2), bnlfu_b=b(ks[11], 2 * cg2),
        w_st2=w(ks[12], out_cg, cg2),
        # FFC_BN_ACT norms
        bnl_g=g(ks[13], out_cl), bnl_b=b(ks[14], out_cl),
        bng_g=g(ks[15], out_cg), bng_b=b(ks[16], out_cg),
    )


if __name__ == "__main__":
    N, C_IN, C_OUT, H, W = 2, 16, 16, 16, 16
    key = jax.random.PRNGKey(0)
    kx, kp = jax.random.split(key)
    x = jax.random.normal(kx, (N, C_IN, H, W), jnp.float32)
    params = init_params(kp, C_IN, C_OUT)
    ops = prepare_operands(params, N, C_IN, C_OUT, H, W)

    fwd = jax.jit(ffc_bn_act_forward)
    out_l, out_g = fwd(x, ops)
    jax.block_until_ready((out_l, out_g))

    assert out_l.shape == (N, C_OUT // 2, H, W)
    assert out_g.shape == (N, C_OUT - C_OUT // 2, H, W)
    assert bool(jnp.all(jnp.isfinite(out_l))) and bool(jnp.all(jnp.isfinite(out_g)))
    print("KERNEL_OK")
</pallas_src>

<mosaic_0001>
module attributes {stable_mosaic.version = 11 : i64} {
  func.func @_ffc_kernel(%arg0: i32, %arg1: memref<32x256xf32, #tpu.memory_space<vmem>>, %arg2: memref<40x32xf32, #tpu.memory_space<vmem>>, %arg3: memref<16x8xf32, #tpu.memory_space<vmem>>, %arg4: memref<16x16xf32, #tpu.memory_space<vmem>>, %arg5: memref<16x16xf32, #tpu.memory_space<vmem>>, %arg6: memref<16x64xf32, #tpu.memory_space<vmem>>, %arg7: memref<16x16xf32, #tpu.memory_space<vmem>>, %arg8: memref<8x8xf32, #tpu.memory_space<vmem>>, %arg9: memref<16x16xf32, #tpu.memory_space<vmem>>, %arg10: memref<16x16xf32, #tpu.memory_space<vmem>>, %arg11: memref<2x8x1xf32, #tpu.memory_space<vmem>>, %arg12: memref<2x16x1xf32, #tpu.memory_space<vmem>>, %arg13: memref<2x16x1xf32, #tpu.memory_space<vmem>>, %arg14: memref<2x16x1xf32, #tpu.memory_space<vmem>>, %arg15: memref<2x16x1xf32, #tpu.memory_space<vmem>>, %arg16: memref<256x512xf32, #tpu.memory_space<any>>, %arg17: memref<256x256xf32, #tpu.memory_space<any>>, %arg18: memref<256x256xf32, #tpu.memory_space<any>>, %arg19: memref<256x1024xf32, #tpu.memory_space<any>>, %arg20: memref<128x256xf32, #tpu.memory_space<any>>, %arg21: memref<128x256xf32, #tpu.memory_space<any>>, %arg22: memref<16x256xf32, #tpu.memory_space<vmem>>, %arg23: memref<16x256xf32, #tpu.memory_space<vmem>>, %arg24: memref<256x512xf32, #tpu.memory_space<vmem>>, %arg25: memref<256x256xf32, #tpu.memory_space<vmem>>, %arg26: memref<256x256xf32, #tpu.memory_space<vmem>>, %arg27: memref<256x1024xf32, #tpu.memory_space<vmem>>, %arg28: memref<128x256xf32, #tpu.memory_space<vmem>>, %arg29: memref<128x256xf32, #tpu.memory_space<vmem>>, %arg30: memref<6x!tpu.dma_semaphore, #tpu.memory_space<semaphore_mem>>) attributes {dimension_semantics = [#tpu.dimension_semantics<arbitrary>], iteration_bounds = array<i64: 1>, scalar_prefetch = 0 : i64, scratch_operands = 7 : i64, tpu.core_type = #tpu.core_type<tc>, window_params = [{pipeline_mode = #tpu.pipeline_mode<synchronous>, transform_indices = @transform_0, window_bounds = array<i64: 32, 256>}, {pipeline_mode = #tpu.pipeline_mode<synchronous>, transform_indices = @transform_1, window_bounds = array<i64: 40, 32>}, {pipeline_mode = #tpu.pipeline_mode<synchronous>, transform_indices = @transform_2, window_bounds = array<i64: 16, 8>}, {pipeline_mode = #tpu.pipeline_mode<synchronous>, transform_indices = @transform_3, window_bounds = array<i64: 16, 16>}, {pipeline_mode = #tpu.pipeline_mode<synchronous>, transform_indices = @transform_4, window_bounds = array<i64: 16, 16>}, {pipeline_mode = #tpu.pipeline_mode<synchronous>, transform_indices = @transform_5, window_bounds = array<i64: 16, 64>}, {pipeline_mode = #tpu.pipeline_mode<synchronous>, transform_indices = @transform_6, window_bounds = array<i64: 16, 16>}, {pipeline_mode = #tpu.pipeline_mode<synchronous>, transform_indices = @transform_7, window_bounds = array<i64: 8, 8>}, {pipeline_mode = #tpu.pipeline_mode<synchronous>, transform_indices = @transform_8, window_bounds = array<i64: 16, 16>}, {pipeline_mode = #tpu.pipeline_mode<synchronous>, transform_indices = @transform_9, window_bounds = array<i64: 16, 16>}, {pipeline_mode = #tpu.pipeline_mode<synchronous>, transform_indices = @transform_10, window_bounds = array<i64: 2, 8, 1>}, {pipeline_mode = #tpu.pipeline_mode<synchronous>, transform_indices = @transform_11, window_bounds = array<i64: 2, 16, 1>}, {pipeline_mode = #tpu.pipeline_mode<synchronous>, transform_indices = @transform_12, window_bounds = array<i64: 2, 16, 1>}, {pipeline_mode = #tpu.pipeline_mode<synchronous>, transform_indices = @transform_13, window_bounds = array<i64: 2, 16, 1>}, {pipeline_mode = #tpu.pipeline_mode<synchronous>, transform_indices = @transform_14, window_bounds = array<i64: 2, 16, 1>}, {}, {}, {}, {}, {}, {}, {pipeline_mode = #tpu.pipeline_mode<synchronous>, transform_indices = @transform_21, window_bounds = array<i64: 16, 256>}, {pipeline_mode = #tpu.pipeline_mode<synchronous>, transform_indices = @transform_22, window_bounds = array<i64: 16, 256>}]} {
    %c0_i32 = arith.constant 0 : i32
    %0 = tpu.memref_slice %arg30[%c0_i32] : memref<6x!tpu.dma_semaphore, #tpu.memory_space<semaphore_mem>> -> memref<1x!tpu.dma_semaphore, #tpu.memory_space<semaphore_mem>>
    %1 = tpu.memref_squeeze %0 : memref<1x!tpu.dma_semaphore, #tpu.memory_space<semaphore_mem>> -> memref<!tpu.dma_semaphore, #tpu.memory_space<semaphore_mem>>
    tpu.enqueue_dma source(%arg16 : memref<256x512xf32, #tpu.memory_space<any>>) target(%arg24 : memref<256x512xf32, #tpu.memory_space<vmem>>) target_semaphore(%1 : memref<!tpu.dma_semaphore, #tpu.memory_space<semaphore_mem>>)
    %c1_i32 = arith.constant 1 : i32
    %2 = tpu.memref_slice %arg30[%c1_i32] : memref<6x!tpu.dma_semaphore, #tpu.memory_space<semaphore_mem>> -> memref<1x!tpu.dma_semaphore, #tpu.memory_space<semaphore_mem>>
    %3 = tpu.memref_squeeze %2 : memref<1x!tpu.dma_semaphore, #tpu.memory_space<semaphore_mem>> -> memref<!tpu.dma_semaphore, #tpu.memory_space<semaphore_mem>>
    tpu.enqueue_dma source(%arg17 : memref<256x256xf32, #tpu.memory_space<any>>) target(%arg25 : memref<256x256xf32, #tpu.memory_space<vmem>>) target_semaphore(%3 : memref<!tpu.dma_semaphore, #tpu.memory_space<semaphore_mem>>)
    %c2_i32 = arith.constant 2 : i32
    %4 = tpu.memref_slice %arg30[%c2_i32] : memref<6x!tpu.dma_semaphore, #tpu.memory_space<semaphore_mem>> -> memref<1x!tpu.dma_semaphore, #tpu.memory_space<semaphore_mem>>
    %5 = tpu.memref_squeeze %4 : memref<1x!tpu.dma_semaphore, #tpu.memory_space<semaphore_mem>> -> memref<!tpu.dma_semaphore, #tpu.memory_space<semaphore_mem>>
    tpu.enqueue_dma source(%arg18 : memref<256x256xf32, #tpu.memory_space<any>>) target(%arg26 : memref<256x256xf32, #tpu.memory_space<vmem>>) target_semaphore(%5 : memref<!tpu.dma_semaphore, #tpu.memory_space<semaphore_mem>>)
    %c3_i32 = arith.constant 3 : i32
    %6 = tpu.memref_slice %arg30[%c3_i32] : memref<6x!tpu.dma_semaphore, #tpu.memory_space<semaphore_mem>> -> memref<1x!tpu.dma_semaphore, #tpu.memory_space<semaphore_mem>>
    %7 = tpu.memref_squeeze %6 : memref<1x!tpu.dma_semaphore, #tpu.memory_space<semaphore_mem>> -> memref<!tpu.dma_semaphore, #tpu.memory_space<semaphore_mem>>
    tpu.enqueue_dma source(%arg19 : memref<256x1024xf32, #tpu.memory_space<any>>) target(%arg27 : memref<256x1024xf32, #tpu.memory_space<vmem>>) target_semaphore(%7 : memref<!tpu.dma_semaphore, #tpu.memory_space<semaphore_mem>>)
    %c4_i32 = arith.constant 4 : i32
    %8 = tpu.memref_slice %arg30[%c4_i32] : memref<6x!tpu.dma_semaphore, #tpu.memory_space<semaphore_mem>> -> memref<1x!tpu.dma_semaphore, #tpu.memory_space<semaphore_mem>>
    %9 = tpu.memref_squeeze %8 : memref<1x!tpu.dma_semaphore, #tpu.memory_space<semaphore_mem>> -> memref<!tpu.dma_semaphore, #tpu.memory_space<semaphore_mem>>
    tpu.enqueue_dma source(%arg20 : memref<128x256xf32, #tpu.memory_space<any>>) target(%arg28 : memref<128x256xf32, #tpu.memory_space<vmem>>) target_semaphore(%9 : memref<!tpu.dma_semaphore, #tpu.memory_space<semaphore_mem>>)
    %c5_i32 = arith.constant 5 : i32
    %10 = tpu.memref_slice %arg30[%c5_i32] : memref<6x!tpu.dma_semaphore, #tpu.memory_space<semaphore_mem>> -> memref<1x!tpu.dma_semaphore, #tpu.memory_space<semaphore_mem>>
    %11 = tpu.memref_squeeze %10 : memref<1x!tpu.dma_semaphore, #tpu.memory_space<semaphore_mem>> -> memref<!tpu.dma_semaphore, #tpu.memory_space<semaphore_mem>>
    tpu.enqueue_dma source(%arg21 : memref<128x256xf32, #tpu.memory_space<any>>) target(%arg29 : memref<128x256xf32, #tpu.memory_space<vmem>>) target_semaphore(%11 : memref<!tpu.dma_semaphore, #tpu.memory_space<semaphore_mem>>)
    %c0 = arith.constant 0 : index
    %c0_0 = arith.constant 0 : index
    %12 = vector.load %arg1[%c0, %c0_0] : memref<32x256xf32, #tpu.memory_space<vmem>>, vector<32x256xf32>
    %c0_1 = arith.constant 0 : index
    %c0_2 = arith.constant 0 : index
    %13 = vector.load %arg2[%c0_1, %c0_2] : memref<40x32xf32, #tpu.memory_space<vmem>>, vector<40x32xf32>
    %cst = arith.constant dense<0.000000e+00> : vector<40x256xf32>
    %14 = tpu.matmul %13, %12, %cst {dimension_numbers = #tpu.dot_dimension_numbers<[1], [0], [0], [1], [0, 0, 1, 1], [], []>} : vector<40x32xf32>, vector<32x256xf32>, vector<40x256xf32> -> vector<40x256xf32>
    %15 = vector.extract_strided_slice %14 {offsets = [16, 0], sizes = [16, 256], strides = [1, 1]} : vector<40x256xf32> to vector<16x256xf32>
    %16 = vector.extract_strided_slice %14 {offsets = [0, 0], sizes = [16, 256], strides = [1, 1]} : vector<40x256xf32> to vector<16x256xf32>
    %c0_3 = arith.constant 0 : index
    %c0_4 = arith.constant 0 : index
    %17 = vector.load %arg7[%c0_3, %c0_4] : memref<16x16xf32, #tpu.memory_space<vmem>>, vector<16x16xf32>
    %c0_5 = arith.constant 0 : index
    %c0_6 = arith.constant 0 : index
    %c0_7 = arith.constant 0 : index
    %18 = vector.load %arg14[%c0_5, %c0_6, %c0_7] : memref<2x16x1xf32, #tpu.memory_space<vmem>>, vector<1x16x1xf32>
    %19 = vector.shape_cast %18 : vector<1x16x1xf32> to vector<16x1xf32>
    %c1 = arith.constant 1 : index
    %c0_8 = arith.constant 0 : index
    %c0_9 = arith.constant 0 : index
    %20 = vector.load %arg14[%c1, %c0_8, %c0_9] : memref<2x16x1xf32, #tpu.memory_space<vmem>>, vector<1x16x1xf32>
    %21 = vector.shape_cast %20 : vector<1x16x1xf32> to vector<16x1xf32>
    %cst_10 = arith.constant dense<0.000000e+00> : vector<16xf32>
    %22 = vector.multi_reduction <add>, %16, %cst_10 [1] : vector<16x256xf32> to vector<16xf32>
    %23 = vector.shape_cast %22 : vector<16xf32> to vector<16x1xf32>
    %24 = arith.mulf %16, %16 : vector<16x256xf32>
    %cst_11 = arith.constant dense<0.000000e+00> : vector<16xf32>
    %25 = vector.multi_reduction <add>, %24, %cst_11 [1] : vector<16x256xf32> to vector<16xf32>
    %26 = vector.shape_cast %25 : vector<16xf32> to vector<16x1xf32>
    %cst_12 = arith.constant dense<0.000000e+00> : vector<16x1xf32>
    %27 = tpu.matmul %17, %23, %cst_12 {dimension_numbers = #tpu.dot_dimension_numbers<[1], [0], [0], [1], [0, 0, 1, 1], [], []>} : vector<16x16xf32>, vector<16x1xf32>, vector<16x1xf32> -> vector<16x1xf32>
    %cst_13 = arith.constant 0.001953125 : f32
    %28 = vector.broadcast %cst_13 : f32 to vector<16x1xf32>
    %29 = arith.mulf %27, %28 : vector<16x1xf32>
    %cst_14 = arith.constant dense<0.000000e+00> : vector<16x1xf32>
    %30 = tpu.matmul %17, %26, %cst_14 {dimension_numbers = #tpu.dot_dimension_numbers<[1], [0], [0], [1], [0, 0, 1, 1], [], []>} : vector<16x16xf32>, vector<16x1xf32>, vector<16x1xf32> -> vector<16x1xf32>
    %cst_15 = arith.constant 0.001953125 : f32
    %31 = vector.broadcast %cst_15 : f32 to vector<16x1xf32>
    %32 = arith.mulf %30, %31 : vector<16x1xf32>
    %33 = arith.mulf %29, %29 : vector<16x1xf32>
    %34 = arith.subf %32, %33 : vector<16x1xf32>
    %cst_16 = arith.constant 9.99999974E-6 : f32
    %35 = vector.broadcast %cst_16 : f32 to vector<16x1xf32>
    %36 = arith.addf %34, %35 : vector<16x1xf32>
    %37 = math.rsqrt %36 : vector<16x1xf32>
    %38 = arith.mulf %37, %19 : vector<16x1xf32>
    %39 = vector.broadcast %29 : vector<16x1xf32> to vector<16x256xf32>
    %40 = arith.subf %16, %39 : vector<16x256xf32>
    %41 = vector.broadcast %38 : vector<16x1xf32> to vector<16x256xf32>
    %42 = arith.mulf %40, %41 : vector<16x256xf32>
    %43 = vector.broadcast %21 : vector<16x1xf32> to vector<16x256xf32>
    %44 = arith.addf %42, %43 : vector<16x256xf32>
    %cst_17 = arith.constant 0.000000e+00 : f32
    %45 = vector.broadcast %cst_17 : f32 to vector<16x256xf32>
    %46 = arith.maximumf %44, %45 : vector<16x256xf32>
    %c0_18 = arith.constant 0 : index
    %c0_19 = arith.constant 0 : index
    %47 = vector.load %arg22[%c0_18, %c0_19] : memref<16x256xf32, #tpu.memory_space<vmem>>, vector<16x256xf32>
    tpu.vector_store %arg22[%c0_18, %c0_19], %46 {strides = array<i32>} : memref<16x256xf32, #tpu.memory_space<vmem>>, vector<16x256xf32>,
    %48 = vector.extract_strided_slice %14 {offsets = [32, 0], sizes = [8, 256], strides = [1, 1]} : vector<40x256xf32> to vector<8x256xf32>
    %c0_20 = arith.constant 0 : index
    %c0_21 = arith.constant 0 : index
    %49 = vector.load %arg8[%c0_20, %c0_21] : memref<8x8xf32, #tpu.memory_space<vmem>>, vector<8x8xf32>
    %c0_22 = arith.constant 0 : index
    %c0_23 = arith.constant 0 : index
    %c0_24 = arith.constant 0 : index
    %50 = vector.load %arg11[%c0_22, %c0_23, %c0_24] : memref<2x8x1xf32, #tpu.memory_space<vmem>>, vector<1x8x1xf32>
    %51 = vector.shape_cast %50 : vector<1x8x1xf32> to vector<8x1xf32>
    %c1_25 = arith.constant 1 : index
    %c0_26 = arith.constant 0 : index
    %c0_27 = arith.constant 0 : index
    %52 = vector.load %arg11[%c1_25, %c0_26, %c0_27] : memref<2x8x1xf32, #tpu.memory_space<vmem>>, vector<1x8x1xf32>
    %53 = vector.shape_cast %52 : vector<1x8x1xf32> to vector<8x1xf32>
    %cst_28 = arith.constant dense<0.000000e+00> : vector<8xf32>
    %54 = vector.multi_reduction <add>, %48, %cst_28 [1] : vector<8x256xf32> to vector<8xf32>
    %55 = vector.shape_cast %54 : vector<8xf32> to vector<8x1xf32>
    %56 = arith.mulf %48, %48 : vector<8x256xf32>
    %cst_29 = arith.constant dense<0.000000e+00> : vector<8xf32>
    %57 = vector.multi_reduction <add>, %56, %cst_29 [1] : vector<8x256xf32> to vector<8xf32>
    %58 = vector.shape_cast %57 : vector<8xf32> to vector<8x1xf32>
    %cst_30 = arith.constant dense<0.000000e+00> : vector<8x1xf32>
    %59 = tpu.matmul %49, %55, %cst_30 {dimension_numbers = #tpu.dot_dimension_numbers<[1], [0], [0], [1], [0, 0, 1, 1], [], []>} : vector<8x8xf32>, vector<8x1xf32>, vector<8x1xf32> -> vector<8x1xf32>
    %cst_31 = arith.constant 0.001953125 : f32
    %60 = vector.broadcast %cst_31 : f32 to vector<8x1xf32>
    %61 = arith.mulf %59, %60 : vector<8x1xf32>
    %cst_32 = arith.constant dense<0.000000e+00> : vector<8x1xf32>
    %62 = tpu.matmul %49, %58, %cst_32 {dimension_numbers = #tpu.dot_dimension_numbers<[1], [0], [0], [1], [0, 0, 1, 1], [], []>} : vector<8x8xf32>, vector<8x1xf32>, vector<8x1xf32> -> vector<8x1xf32>
    %cst_33 = arith.constant 0.001953125 : f32
    %63 = vector.broadcast %cst_33 : f32 to vector<8x1xf32>
    %64 = arith.mulf %62, %63 : vector<8x1xf32>
    %65 = arith.mulf %61, %61 : vector<8x1xf32>
    %66 = arith.subf %64, %65 : vector<8x1xf32>
    %cst_34 = arith.constant 9.99999974E-6 : f32
    %67 = vector.broadcast %cst_34 : f32 to vector<8x1xf32>
    %68 = arith.addf %66, %67 : vector<8x1xf32>
    %69 = math.rsqrt %68 : vector<8x1xf32>
    %70 = arith.mulf %69, %51 : vector<8x1xf32>
    %71 = vector.broadcast %61 : vector<8x1xf32> to vector<8x256xf32>
    %72 = arith.subf %48, %71 : vector<8x256xf32>
    %73 = vector.broadcast %70 : vector<8x1xf32> to vector<8x256xf32>
    %74 = arith.mulf %72, %73 : vector<8x256xf32>
    %75 = vector.broadcast %53 : vector<8x1xf32> to vector<8x256xf32>
    %76 = arith.addf %74, %75 : vector<8x256xf32>
    %cst_35 = arith.constant 0.000000e+00 : f32
    %77 = vector.broadcast %cst_35 : f32 to vector<8x256xf32>
    %78 = arith.maximumf %76, %77 : vector<8x256xf32>
    %c0_i32_36 = arith.constant 0 : i32
    %79 = tpu.memref_slice %arg30[%c0_i32_36] : memref<6x!tpu.dma_semaphore, #tpu.memory_space<semaphore_mem>> -> memref<1x!tpu.dma_semaphore, #tpu.memory_space<semaphore_mem>>
    %80 = tpu.memref_squeeze %79 : memref<1x!tpu.dma_semaphore, #tpu.memory_space<semaphore_mem>> -> memref<!tpu.dma_semaphore, #tpu.memory_space<semaphore_mem>>
    tpu.wait_dma2 semaphore(%80 : memref<!tpu.dma_semaphore, #tpu.memory_space<semaphore_mem>>) src(%arg16 : memref<256x512xf32, #tpu.memory_space<any>>) dst(%arg24 : memref<256x512xf32, #tpu.memory_space<vmem>>)
    %c0_37 = arith.constant 0 : index
    %c0_38 = arith.constant 0 : index
    %81 = vector.load %arg24[%c0_37, %c0_38] : memref<256x512xf32, #tpu.memory_space<vmem>>, vector<256x512xf32>
    %cst_39 = arith.constant dense<0.000000e+00> : vector<8x512xf32>
    %82 = tpu.matmul %78, %81, %cst_39 {dimension_numbers = #tpu.dot_dimension_numbers<[1], [0], [0], [1], [0, 0, 1, 1], [], []>} : vector<8x256xf32>, vector<256x512xf32>, vector<8x512xf32> -> vector<8x512xf32>
    %83 = vector.extract_strided_slice %82 {offsets = [0, 0], sizes = [8, 256], strides = [1, 1]} : vector<8x512xf32> to vector<8x256xf32>
    %84 = vector.extract_strided_slice %82 {offsets = [0, 256], sizes = [8, 256], strides = [1, 1]} : vector<8x512xf32> to vector<8x256xf32>
    %85 = tpu.concatenate %83, %84 in 0 : vector<8x256xf32>, vector<8x256xf32> -> vector<16x256xf32>
    %c0_40 = arith.constant 0 : index
    %c0_41 = arith.constant 0 : index
    %86 = vector.load %arg4[%c0_40, %c0_41] : memref<16x16xf32, #tpu.memory_space<vmem>>, vector<16x16xf32>
    %cst_42 = arith.constant dense<0.000000e+00> : vector<16x256xf32>
    %87 = tpu.matmul %86, %85, %cst_42 {dimension_numbers = #tpu.dot_dimension_numbers<[1], [0], [0], [1], [0, 0, 1, 1], [], []>} : vector<16x16xf32>, vector<16x256xf32>, vector<16x256xf32> -> vector<16x256xf32>
    %c0_43 = arith.constant 0 : index
    %c0_44 = arith.constant 0 : index
    %88 = vector.load %arg10[%c0_43, %c0_44] : memref<16x16xf32, #tpu.memory_space<vmem>>, vector<16x16xf32>
    %c0_45 = arith.constant 0 : index
    %c0_46 = arith.constant 0 : index
    %c0_47 = arith.constant 0 : index
    %89 = vector.load %arg12[%c0_45, %c0_46, %c0_47] : memref<2x16x1xf32, #tpu.memory_space<vmem>>, vector<1x16x1xf32>
    %90 = vector.shape_cast %89 : vector<1x16x1xf32> to vector<16x1xf32>
    %c1_48 = arith.constant 1 : index
    %c0_49 = arith.constant 0 : index
    %c0_50 = arith.constant 0 : index
    %91 = vector.load %arg12[%c1_48, %c0_49, %c0_50] : memref<2x16x1xf32, #tpu.memory_space<vmem>>, vector<1x16x1xf32>
    %92 = vector.shape_cast %91 : vector<1x16x1xf32> to vector<16x1xf32>
    %cst_51 = arith.constant dense<0.000000e+00> : vector<16xf32>
    %93 = vector.multi_reduction <add>, %87, %cst_51 [1] : vector<16x256xf32> to vector<16xf32>
    %94 = vector.shape_cast %93 : vector<16xf32> to vector<16x1xf32>
    %95 = arith.mulf %87, %87 : vector<16x256xf32>
    %cst_52 = arith.constant dense<0.000000e+00> : vector<16xf32>
    %96 = vector.multi_reduction <add>, %95, %cst_52 [1] : vector<16x256xf32> to vector<16xf32>
    %97 = vector.shape_cast %96 : vector<16xf32> to vector<16x1xf32>
    %cst_53 = arith.constant dense<0.000000e+00> : vector<16x1xf32>
    %98 = tpu.matmul %88, %94, %cst_53 {dimension_numbers = #tpu.dot_dimension_numbers<[1], [0], [0], [1], [0, 0, 1, 1], [], []>} : vector<16x16xf32>, vector<16x1xf32>, vector<16x1xf32> -> vector<16x1xf32>
    %cst_54 = arith.constant 0.00347222225 : f32
    %99 = vector.broadcast %cst_54 : f32 to vector<16x1xf32>
    %100 = arith.mulf %98, %99 : vector<16x1xf32>
    %cst_55 = arith.constant dense<0.000000e+00> : vector<16x1xf32>
    %101 = tpu.matmul %88, %97, %cst_55 {dimension_numbers = #tpu.dot_dimension_numbers<[1], [0], [0], [1], [0, 0, 1, 1], [], []>} : vector<16x16xf32>, vector<16x1xf32>, vector<16x1xf32> -> vector<16x1xf32>
    %cst_56 = arith.constant 0.00347222225 : f32
    %102 = vector.broadcast %cst_56 : f32 to vector<16x1xf32>
    %103 = arith.mulf %101, %102 : vector<16x1xf32>
    %104 = arith.mulf %100, %100 : vector<16x1xf32>
    %105 = arith.subf %103, %104 : vector<16x1xf32>
    %cst_57 = arith.constant 9.99999974E-6 : f32
    %106 = vector.broadcast %cst_57 : f32 to vector<16x1xf32>
    %107 = arith.addf %105, %106 : vector<16x1xf32>
    %108 = math.rsqrt %107 : vector<16x1xf32>
    %109 = arith.mulf %108, %90 : vector<16x1xf32>
    %110 = vector.broadcast %100 : vector<16x1xf32> to vector<16x256xf32>
    %111 = arith.subf %87, %110 : vector<16x256xf32>
    %112 = vector.broadcast %109 : vector<16x1xf32> to vector<16x256xf32>
    %113 = arith.mulf %111, %112 : vector<16x256xf32>
    %114 = vector.broadcast %92 : vector<16x1xf32> to vector<16x256xf32>
    %115 = arith.addf %113, %114 : vector<16x256xf32>
    %cst_58 = arith.constant 0.000000e+00 : f32
    %116 = vector.broadcast %cst_58 : f32 to vector<16x256xf32>
    %117 = arith.maximumf %115, %116 : vector<16x256xf32>
    %c3_i32_59 = arith.constant 3 : i32
    %118 = tpu.memref_slice %arg30[%c3_i32_59] : memref<6x!tpu.dma_semaphore, #tpu.memory_space<semaphore_mem>> -> memref<1x!tpu.dma_semaphore, #tpu.memory_space<semaphore_mem>>
    %119 = tpu.memref_squeeze %118 : memref<1x!tpu.dma_semaphore, #tpu.memory_space<semaphore_mem>> -> memref<!tpu.dma_semaphore, #tpu.memory_space<semaphore_mem>>
    tpu.wait_dma2 semaphore(%119 : memref<!tpu.dma_semaphore, #tpu.memory_space<semaphore_mem>>) src(%arg19 : memref<256x1024xf32, #tpu.memory_space<any>>) dst(%arg27 : memref<256x1024xf32, #tpu.memory_space<vmem>>)
    %c0_60 = arith.constant 0 : index
    %c0_61 = arith.constant 0 : index
    %120 = vector.load %arg27[%c0_60, %c0_61] : memref<256x1024xf32, #tpu.memory_space<vmem>>, vector<256x1024xf32>
    %cst_62 = arith.constant dense<0.000000e+00> : vector<8x1024xf32>
    %121 = tpu.matmul %78, %120, %cst_62 {dimension_numbers = #tpu.dot_dimension_numbers<[1], [0], [0], [1], [0, 0, 1, 1], [], []>} : vector<8x256xf32>, vector<256x1024xf32>, vector<8x1024xf32> -> vector<8x1024xf32>
    %122 = vector.extract_strided_slice %121 {offsets = [0, 0], sizes = [8, 128], strides = [1, 1]} : vector<8x1024xf32> to vector<8x128xf32>
    %123 = vector.extract_strided_slice %121 {offsets = [0, 128], sizes = [8, 128], strides = [1, 1]} : vector<8x1024xf32> to vector<8x128xf32>
    %124 = vector.extract_strided_slice %121 {offsets = [0, 256], sizes = [8, 128], strides = [1, 1]} : vector<8x1024xf32> to vector<8x128xf32>
    %125 = vector.extract_strided_slice %121 {offsets = [0, 384], sizes = [8, 128], strides = [1, 1]} : vector<8x1024xf32> to vector<8x128xf32>
    %126 = vector.extract_strided_slice %121 {offsets = [0, 512], sizes = [8, 128], strides = [1, 1]} : vector<8x1024xf32> to vector<8x128xf32>
    %127 = vector.extract_strided_slice %121 {offsets = [0, 640], sizes = [8, 128], strides = [1, 1]} : vector<8x1024xf32> to vector<8x128xf32>
    %128 = vector.extract_strided_slice %121 {offsets = [0, 768], sizes = [8, 128], strides = [1, 1]} : vector<8x1024xf32> to vector<8x128xf32>
    %129 = vector.extract_strided_slice %121 {offsets = [0, 896], sizes = [8, 128], strides = [1, 1]} : vector<8x1024xf32> to vector<8x128xf32>
    %130 = tpu.concatenate %122, %123, %124, %125, %126, %127, %128, %129 in 0 : vector<8x128xf32>, vector<8x128xf32>, vector<8x128xf32>, vector<8x128xf32>, vector<8x128xf32>, vector<8x128xf32>, vector<8x128xf32>, vector<8x128xf32> -> vector<64x128xf32>
    %c0_63 = arith.constant 0 : index
    %c0_64 = arith.constant 0 : index
    %131 = vector.load %arg6[%c0_63, %c0_64] : memref<16x64xf32, #tpu.memory_space<vmem>>, vector<16x64xf32>
    %cst_65 = arith.constant dense<0.000000e+00> : vector<16x128xf32>
    %132 = tpu.matmul %131, %130, %cst_65 {dimension_numbers = #tpu.dot_dimension_numbers<[1], [0], [0], [1], [0, 0, 1, 1], [], []>} : vector<16x64xf32>, vector<64x128xf32>, vector<16x128xf32> -> vector<16x128xf32>
    %c0_66 = arith.constant 0 : index
    %c0_67 = arith.constant 0 : index
    %133 = vector.load %arg5[%c0_66, %c0_67] : memref<16x16xf32, #tpu.memory_space<vmem>>, vector<16x16xf32>
    %cst_68 = arith.constant dense<0.000000e+00> : vector<16x128xf32>
    %134 = tpu.matmul %133, %132, %cst_68 {dimension_numbers = #tpu.dot_dimension_numbers<[1], [0], [0], [1], [0, 0, 1, 1], [], []>} : vector<16x16xf32>, vector<16x128xf32>, vector<16x128xf32> -> vector<16x128xf32>
    %c0_69 = arith.constant 0 : index
    %c0_70 = arith.constant 0 : index
    %135 = vector.load %arg10[%c0_69, %c0_70] : memref<16x16xf32, #tpu.memory_space<vmem>>, vector<16x16xf32>
    %c0_71 = arith.constant 0 : index
    %c0_72 = arith.constant 0 : index
    %c0_73 = arith.constant 0 : index
    %136 = vector.load %arg13[%c0_71, %c0_72, %c0_73] : memref<2x16x1xf32, #tpu.memory_space<vmem>>, vector<1x16x1xf32>
    %137 = vector.shape_cast %136 : vector<1x16x1xf32> to vector<16x1xf32>
    %c1_74 = arith.constant 1 : index
    %c0_75 = arith.constant 0 : index
    %c0_76 = arith.constant 0 : index
    %138 = vector.load %arg13[%c1_74, %c0_75, %c0_76] : memref<2x16x1xf32, #tpu.memory_space<vmem>>, vector<1x16x1xf32>
    %139 = vector.shape_cast %138 : vector<1x16x1xf32> to vector<16x1xf32>
    %cst_77 = arith.constant dense<0.000000e+00> : vector<16xf32>
    %140 = vector.multi_reduction <add>, %134, %cst_77 [1] : vector<16x128xf32> to vector<16xf32>
    %141 = vector.shape_cast %140 : vector<16xf32> to vector<16x1xf32>
    %142 = arith.mulf %134, %134 : vector<16x128xf32>
    %cst_78 = arith.constant dense<0.000000e+00> : vector<16xf32>
    %143 = vector.multi_reduction <add>, %142, %cst_78 [1] : vector<16x128xf32> to vector<16xf32>
    %144 = vector.shape_cast %143 : vector<16xf32> to vector<16x1xf32>
    %cst_79 = arith.constant dense<0.000000e+00> : vector<16x1xf32>
    %145 = tpu.matmul %135, %141, %cst_79 {dimension_numbers = #tpu.dot_dimension_numbers<[1], [0], [0], [1], [0, 0, 1, 1], [], []>} : vector<16x16xf32>, vector<16x1xf32>, vector<16x1xf32> -> vector<16x1xf32>
    %cst_80 = arith.constant 1.250000e-02 : f32
    %146 = vector.broadcast %cst_80 : f32 to vector<16x1xf32>
    %147 = arith.mulf %145, %146 : vector<16x1xf32>
    %cst_81 = arith.constant dense<0.000000e+00> : vector<16x1xf32>
    %148 = tpu.matmul %135, %144, %cst_81 {dimension_numbers = #tpu.dot_dimension_numbers<[1], [0], [0], [1], [0, 0, 1, 1], [], []>} : vector<16x16xf32>, vector<16x1xf32>, vector<16x1xf32> -> vector<16x1xf32>
    %cst_82 = arith.constant 1.250000e-02 : f32
    %149 = vector.broadcast %cst_82 : f32 to vector<16x1xf32>
    %150 = arith.mulf %148, %149 : vector<16x1xf32>
    %151 = arith.mulf %147, %147 : vector<16x1xf32>
    %152 = arith.subf %150, %151 : vector<16x1xf32>
    %cst_83 = arith.constant 9.99999974E-6 : f32
    %153 = vector.broadcast %cst_83 : f32 to vector<16x1xf32>
    %154 = arith.addf %152, %153 : vector<16x1xf32>
    %155 = math.rsqrt %154 : vector<16x1xf32>
    %156 = arith.mulf %155, %137 : vector<16x1xf32>
    %157 = vector.broadcast %147 : vector<16x1xf32> to vector<16x128xf32>
    %158 = arith.subf %134, %157 : vector<16x128xf32>
    %159 = vector.broadcast %156 : vector<16x1xf32> to vector<16x128xf32>
    %160 = arith.mulf %158, %159 : vector<16x128xf32>
    %161 = vector.broadcast %139 : vector<16x1xf32> to vector<16x128xf32>
    %162 = arith.addf %160, %161 : vector<16x128xf32>
    %cst_84 = arith.constant 0.000000e+00 : f32
    %163 = vector.broadcast %cst_84 : f32 to vector<16x128xf32>
    %164 = arith.maximumf %162, %163 : vector<16x128xf32>
    %c1_i32_85 = arith.constant 1 : i32
    %165 = tpu.memref_slice %arg30[%c1_i32_85] : memref<6x!tpu.dma_semaphore, #tpu.memory_space<semaphore_mem>> -> memref<1x!tpu.dma_semaphore, #tpu.memory_space<semaphore_mem>>
    %166 = tpu.memref_squeeze %165 : memref<1x!tpu.dma_semaphore, #tpu.memory_space<semaphore_mem>> -> memref<!tpu.dma_semaphore, #tpu.memory_space<semaphore_mem>>
    tpu.wait_dma2 semaphore(%166 : memref<!tpu.dma_semaphore, #tpu.memory_space<semaphore_mem>>) src(%arg17 : memref<256x256xf32, #tpu.memory_space<any>>) dst(%arg25 : memref<256x256xf32, #tpu.memory_space<vmem>>)
    %c2_i32_86 = arith.constant 2 : i32
    %167 = tpu.memref_slice %arg30[%c2_i32_86] : memref<6x!tpu.dma_semaphore, #tpu.memory_space<semaphore_mem>> -> memref<1x!tpu.dma_semaphore, #tpu.memory_space<semaphore_mem>>
    %168 = tpu.memref_squeeze %167 : memref<1x!tpu.dma_semaphore, #tpu.memory_space<semaphore_mem>> -> memref<!tpu.dma_semaphore, #tpu.memory_space<semaphore_mem>>
    tpu.wait_dma2 semaphore(%168 : memref<!tpu.dma_semaphore, #tpu.memory_space<semaphore_mem>>) src(%arg18 : memref<256x256xf32, #tpu.memory_space<any>>) dst(%arg26 : memref<256x256xf32, #tpu.memory_space<vmem>>)
    %169 = vector.extract_strided_slice %117 {offsets = [0, 0], sizes = [8, 256], strides = [1, 1]} : vector<16x256xf32> to vector<8x256xf32>
    %c0_87 = arith.constant 0 : index
    %c0_88 = arith.constant 0 : index
    %170 = vector.load %arg25[%c0_87, %c0_88] : memref<256x256xf32, #tpu.memory_space<vmem>>, vector<256x256xf32>
    %cst_89 = arith.constant dense<0.000000e+00> : vector<8x256xf32>
    %171 = tpu.matmul %169, %170, %cst_89 {dimension_numbers = #tpu.dot_dimension_numbers<[1], [0], [0], [1], [0, 0, 1, 1], [], []>} : vector<8x256xf32>, vector<256x256xf32>, vector<8x256xf32> -> vector<8x256xf32>
    %172 = vector.extract_strided_slice %117 {offsets = [8, 0], sizes = [8, 256], strides = [1, 1]} : vector<16x256xf32> to vector<8x256xf32>
    %c0_90 = arith.constant 0 : index
    %c0_91 = arith.constant 0 : index
    %173 = vector.load %arg26[%c0_90, %c0_91] : memref<256x256xf32, #tpu.memory_space<vmem>>, vector<256x256xf32>
    %cst_92 = arith.constant dense<0.000000e+00> : vector<8x256xf32>
    %174 = tpu.matmul %172, %173, %cst_92 {dimension_numbers = #tpu.dot_dimension_numbers<[1], [0], [0], [1], [0, 0, 1, 1], [], []>} : vector<8x256xf32>, vector<256x256xf32>, vector<8x256xf32> -> vector<8x256xf32>
    %175 = arith.addf %171, %174 : vector<8x256xf32>
    %c4_i32_93 = arith.constant 4 : i32
    %176 = tpu.memref_slice %arg30[%c4_i32_93] : memref<6x!tpu.dma_semaphore, #tpu.memory_space<semaphore_mem>> -> memref<1x!tpu.dma_semaphore, #tpu.memory_space<semaphore_mem>>
    %177 = tpu.memref_squeeze %176 : memref<1x!tpu.dma_semaphore, #tpu.memory_space<semaphore_mem>> -> memref<!tpu.dma_semaphore, #tpu.memory_space<semaphore_mem>>
    tpu.wait_dma2 semaphore(%177 : memref<!tpu.dma_semaphore, #tpu.memory_space<semaphore_mem>>) src(%arg20 : memref<128x256xf32, #tpu.memory_space<any>>) dst(%arg28 : memref<128x256xf32, #tpu.memory_space<vmem>>)
    %c5_i32_94 = arith.constant 5 : i32
    %178 = tpu.memref_slice %arg30[%c5_i32_94] : memref<6x!tpu.dma_semaphore, #tpu.memory_space<semaphore_mem>> -> memref<1x!tpu.dma_semaphore, #tpu.memory_space<semaphore_mem>>
    %179 = tpu.memref_squeeze %178 : memref<1x!tpu.dma_semaphore, #tpu.memory_space<semaphore_mem>> -> memref<!tpu.dma_semaphore, #tpu.memory_space<semaphore_mem>>
    tpu.wait_dma2 semaphore(%179 : memref<!tpu.dma_semaphore, #tpu.memory_space<semaphore_mem>>) src(%arg21 : memref<128x256xf32, #tpu.memory_space<any>>) dst(%arg29 : memref<128x256xf32, #tpu.memory_space<vmem>>)
    %180 = vector.extract_strided_slice %164 {offsets = [0, 0], sizes = [8, 128], strides = [1, 1]} : vector<16x128xf32> to vector<8x128xf32>
    %c0_95 = arith.constant 0 : index
    %c0_96 = arith.constant 0 : index
    %181 = vector.load %arg28[%c0_95, %c0_96] : memref<128x256xf32, #tpu.memory_space<vmem>>, vector<128x256xf32>
    %cst_97 = arith.constant dense<0.000000e+00> : vector<8x256xf32>
    %182 = tpu.matmul %180, %181, %cst_97 {dimension_numbers = #tpu.dot_dimension_numbers<[1], [0], [0], [1], [0, 0, 1, 1], [], []>} : vector<8x128xf32>, vector<128x256xf32>, vector<8x256xf32> -> vector<8x256xf32>
    %183 = vector.extract_strided_slice %164 {offsets = [8, 0], sizes = [8, 128], strides = [1, 1]} : vector<16x128xf32> to vector<8x128xf32>
    %c0_98 = arith.constant 0 : index
    %c0_99 = arith.constant 0 : index
    %184 = vector.load %arg29[%c0_98, %c0_99] : memref<128x256xf32, #tpu.memory_space<vmem>>, vector<128x256xf32>
    %cst_100 = arith.constant dense<0.000000e+00> : vector<8x256xf32>
    %185 = tpu.matmul %183, %184, %cst_100 {dimension_numbers = #tpu.dot_dimension_numbers<[1], [0], [0], [1], [0, 0, 1, 1], [], []>} : vector<8x128xf32>, vector<128x256xf32>, vector<8x256xf32> -> vector<8x256xf32>
    %186 = arith.addf %182, %185 : vector<8x256xf32>
    %187 = arith.addf %78, %175 : vector<8x256xf32>
    %188 = arith.addf %187, %186 : vector<8x256xf32>
    %c0_101 = arith.constant 0 : index
    %c0_102 = arith.constant 0 : index
    %189 = vector.load %arg3[%c0_101, %c0_102] : memref<16x8xf32, #tpu.memory_space<vmem>>, vector<16x8xf32>
    %cst_103 = arith.constant dense<0.000000e+00> : vector<16x256xf32>
    %190 = tpu.matmul %189, %188, %cst_103 {dimension_numbers = #tpu.dot_dimension_numbers<[1], [0], [0], [1], [0, 0, 1, 1], [], []>} : vector<16x8xf32>, vector<8x256xf32>, vector<16x256xf32> -> vector<16x256xf32>
    %191 = arith.addf %190, %15 : vector<16x256xf32>
    %c0_104 = arith.constant 0 : index
    %c0_105 = arith.constant 0 : index
    %192 = vector.load %arg9[%c0_104, %c0_105] : memref<16x16xf32, #tpu.memory_space<vmem>>, vector<16x16xf32>
    %c0_106 = arith.constant 0 : index
    %c0_107 = arith.constant 0 : index
    %c0_108 = arith.constant 0 : index
    %193 = vector.load %arg15[%c0_106, %c0_107, %c0_108] : memref<2x16x1xf32, #tpu.memory_space<vmem>>, vector<1x16x1xf32>
    %194 = vector.shape_cast %193 : vector<1x16x1xf32> to vector<16x1xf32>
    %c1_109 = arith.constant 1 : index
    %c0_110 = arith.constant 0 : index
    %c0_111 = arith.constant 0 : index
    %195 = vector.load %arg15[%c1_109, %c0_110, %c0_111] : memref<2x16x1xf32, #tpu.memory_space<vmem>>, vector<1x16x1xf32>
    %196 = vector.shape_cast %195 : vector<1x16x1xf32> to vector<16x1xf32>
    %cst_112 = arith.constant dense<0.000000e+00> : vector<16xf32>
    %197 = vector.multi_reduction <add>, %191, %cst_112 [1] : vector<16x256xf32> to vector<16xf32>
    %198 = vector.shape_cast %197 : vector<16xf32> to vector<16x1xf32>
    %199 = arith.mulf %191, %191 : vector<16x256xf32>
    %cst_113 = arith.constant dense<0.000000e+00> : vector<16xf32>
    %200 = vector.multi_reduction <add>, %199, %cst_113 [1] : vector<16x256xf32> to vector<16xf32>
    %201 = vector.shape_cast %200 : vector<16xf32> to vector<16x1xf32>
    %cst_114 = arith.constant dense<0.000000e+00> : vector<16x1xf32>
    %202 = tpu.matmul %192, %198, %cst_114 {dimension_numbers = #tpu.dot_dimension_numbers<[1], [0], [0], [1], [0, 0, 1, 1], [], []>} : vector<16x16xf32>, vector<16x1xf32>, vector<16x1xf32> -> vector<16x1xf32>
    %cst_115 = arith.constant 0.001953125 : f32
    %203 = vector.broadcast %cst_115 : f32 to vector<16x1xf32>
    %204 = arith.mulf %202, %203 : vector<16x1xf32>
    %cst_116 = arith.constant dense<0.000000e+00> : vector<16x1xf32>
    %205 = tpu.matmul %192, %201, %cst_116 {dimension_numbers = #tpu.dot_dimension_numbers<[1], [0], [0], [1], [0, 0, 1, 1], [], []>} : vector<16x16xf32>, vector<16x1xf32>, vector<16x1xf32> -> vector<16x1xf32>
    %cst_117 = arith.constant 0.001953125 : f32
    %206 = vector.broadcast %cst_117 : f32 to vector<16x1xf32>
    %207 = arith.mulf %205, %206 : vector<16x1xf32>
    %208 = arith.mulf %204, %204 : vector<16x1xf32>
    %209 = arith.subf %207, %208 : vector<16x1xf32>
    %cst_118 = arith.constant 9.99999974E-6 : f32
    %210 = vector.broadcast %cst_118 : f32 to vector<16x1xf32>
    %211 = arith.addf %209, %210 : vector<16x1xf32>
    %212 = math.rsqrt %211 : vector<16x1xf32>
    %213 = arith.mulf %212, %194 : vector<16x1xf32>
    %214 = vector.broadcast %204 : vector<16x1xf32> to vector<16x256xf32>
    %215 = arith.subf %191, %214 : vector<16x256xf32>
    %216 = vector.broadcast %213 : vector<16x1xf32> to vector<16x256xf32>
    %217 = arith.mulf %215, %216 : vector<16x256xf32>
    %218 = vector.broadcast %196 : vector<16x1xf32> to vector<16x256xf32>
    %219 = arith.addf %217, %218 : vector<16x256xf32>
    %cst_119 = arith.constant 0.000000e+00 : f32
    %220 = vector.broadcast %cst_119 : f32 to vector<16x256xf32>
    %221 = arith.maximumf %219, %220 : vector<16x256xf32>
    %c0_120 = arith.constant 0 : index
    %c0_121 = arith.constant 0 : index
    %222 = vector.load %arg23[%c0_120, %c0_121] : memref<16x256xf32, #tpu.memory_space<vmem>>, vector<16x256xf32>
    tpu.vector_store %arg23[%c0_120, %c0_121], %221 {strides = array<i32>} : memref<16x256xf32, #tpu.memory_space<vmem>>, vector<16x256xf32>,
    return
  }
  func.func @transform_0(%arg0: i32) -> (i32, i32) {
    %c0_i32 = arith.constant 0 : i32
    %c0_i32_0 = arith.constant 0 : i32
    %c0_i32_1 = arith.constant 0 : i32
    return %c0_i32, %c0_i32_0 : i32, i32
  }
  func.func @transform_1(%arg0: i32) -> (i32, i32) {
    %c0_i32 = arith.constant 0 : i32
    %c0_i32_0 = arith.constant 0 : i32
    %c0_i32_1 = arith.constant 0 : i32
    return %c0_i32, %c0_i32_0 : i32, i32
  }
  func.func @transform_2(%arg0: i32) -> (i32, i32) {
    %c0_i32 = arith.constant 0 : i32
    %c0_i32_0 = arith.constant 0 : i32
    %c0_i32_1 = arith.constant 0 : i32
    return %c0_i32, %c0_i32_0 : i32, i32
  }
  func.func @transform_3(%arg0: i32) -> (i32, i32) {
    %c0_i32 = arith.constant 0 : i32
    %c0_i32_0 = arith.constant 0 : i32
    %c0_i32_1 = arith.constant 0 : i32
    return %c0_i32, %c0_i32_0 : i32, i32
  }
  func.func @transform_4(%arg0: i32) -> (i32, i32) {
    %c0_i32 = arith.constant 0 : i32
    %c0_i32_0 = arith.constant 0 : i32
    %c0_i32_1 = arith.constant 0 : i32
    return %c0_i32, %c0_i32_0 : i32, i32
  }
  func.func @transform_5(%arg0: i32) -> (i32, i32) {
    %c0_i32 = arith.constant 0 : i32
    %c0_i32_0 = arith.constant 0 : i32
    %c0_i32_1 = arith.constant 0 : i32
    return %c0_i32, %c0_i32_0 : i32, i32
  }
  func.func @transform_6(%arg0: i32) -> (i32, i32) {
    %c0_i32 = arith.constant 0 : i32
    %c0_i32_0 = arith.constant 0 : i32
    %c0_i32_1 = arith.constant 0 : i32
    return %c0_i32, %c0_i32_0 : i32, i32
  }
  func.func @transform_7(%arg0: i32) -> (i32, i32) {
    %c0_i32 = arith.constant 0 : i32
    %c0_i32_0 = arith.constant 0 : i32
    %c0_i32_1 = arith.constant 0 : i32
    return %c0_i32, %c0_i32_0 : i32, i32
  }
  func.func @transform_8(%arg0: i32) -> (i32, i32) {
    %c0_i32 = arith.constant 0 : i32
    %c0_i32_0 = arith.constant 0 : i32
    %c0_i32_1 = arith.constant 0 : i32
    return %c0_i32, %c0_i32_0 : i32, i32
  }
  func.func @transform_9(%arg0: i32) -> (i32, i32) {
    %c0_i32 = arith.constant 0 : i32
    %c0_i32_0 = arith.constant 0 : i32
    %c0_i32_1 = arith.constant 0 : i32
    return %c0_i32, %c0_i32_0 : i32, i32
  }
  func.func @transform_10(%arg0: i32) -> (i32, i32, i32) {
    %c0_i32 = arith.constant 0 : i32
    %c0_i32_0 = arith.constant 0 : i32
    %c0_i32_1 = arith.constant 0 : i32
    %c0_i32_2 = arith.constant 0 : i32
    return %c0_i32, %c0_i32_0, %c0_i32_1 : i32, i32, i32
  }
  func.func @transform_11(%arg0: i32) -> (i32, i32, i32) {
    %c0_i32 = arith.constant 0 : i32
    %c0_i32_0 = arith.constant 0 : i32
    %c0_i32_1 = arith.constant 0 : i32
    %c0_i32_2 = arith.constant 0 : i32
    return %c0_i32, %c0_i32_0, %c0_i32_1 : i32, i32, i32
  }
  func.func @transform_12(%arg0: i32) -> (i32, i32, i32) {
    %c0_i32 = arith.constant 0 : i32
    %c0_i32_0 = arith.constant 0 : i32
    %c0_i32_1 = arith.constant 0 : i32
    %c0_i32_2 = arith.constant 0 : i32
    return %c0_i32, %c0_i32_0, %c0_i32_1 : i32, i32, i32
  }
  func.func @transform_13(%arg0: i32) -> (i32, i32, i32) {
    %c0_i32 = arith.constant 0 : i32
    %c0_i32_0 = arith.constant 0 : i32
    %c0_i32_1 = arith.constant 0 : i32
    %c0_i32_2 = arith.constant 0 : i32
    return %c0_i32, %c0_i32_0, %c0_i32_1 : i32, i32, i32
  }
  func.func @transform_14(%arg0: i32) -> (i32, i32, i32) {
    %c0_i32 = arith.constant 0 : i32
    %c0_i32_0 = arith.constant 0 : i32
    %c0_i32_1 = arith.constant 0 : i32
    %c0_i32_2 = arith.constant 0 : i32
    return %c0_i32, %c0_i32_0, %c0_i32_1 : i32, i32, i32
  }
  func.func @transform_21(%arg0: i32) -> (i32, i32) {
    %c0_i32 = arith.constant 0 : i32
    %c0_i32_0 = arith.constant 0 : i32
    %c0_i32_1 = arith.constant 0 : i32
    return %c0_i32, %c0_i32_0 : i32, i32
  }
  func.func @transform_22(%arg0: i32) -> (i32, i32) {
    %c0_i32 = arith.constant 0 : i32
    %c0_i32_0 = arith.constant 0 : i32
    %c0_i32_1 = arith.constant 0 : i32
    return %c0_i32, %c0_i32_0 : i32, i32
  }
}

</mosaic_0001>

<llo_original>
// kernel: ffc_bn_act_forward.1
$region0: #{ffc_bn_act_forward.1}
  #allocation0 [shape = 'u32[]', space=smem, size = 0x4, offset = 0x4, fixed_abs, tag = 'smem constant byte address 0x4 - core index']
  #allocation1 [shape = 'u32[144,128]{1,0:T(1,128)}', space=vmem, size = 0x12000, scoped, tag = 'internal scratch']
  #allocation2 [shape = 'f32[256,512]{1,0:T(8,128)}', space=vmem, size = 0x80000, scoped, tag = 'scratch operand']
  #allocation3 [shape = 'f32[256,256]{1,0:T(8,128)}', space=vmem, size = 0x40000, scoped, tag = 'scratch operand']
  #allocation4 [shape = 'f32[256,256]{1,0:T(8,128)}', space=vmem, size = 0x40000, scoped, tag = 'scratch operand']
  #allocation5 [shape = 'f32[256,1024]{1,0:T(8,128)}', space=vmem, size = 0x100000, scoped, tag = 'scratch operand']
  #allocation6 [shape = 'f32[128,256]{1,0:T(8,128)}', space=vmem, size = 0x20000, scoped, tag = 'scratch operand']
  #allocation7 [shape = 'f32[128,256]{1,0:T(8,128)}', space=vmem, size = 0x20000, scoped, tag = 'scratch operand']
  #allocation8 [shape = 's32[6]{0}', space=sflag, size = 0x18, scoped, tag = 'scratch operand']
  #allocation13 [shape = 's32[]', space=sflag, size = 0x4, offset = 0, fixed_abs, tag = 'sflag constant byte address 0x0 - dummy sync flag']
  #allocation14 [shape = 's32[]', space=sflag, size = 0x4, offset = 0, fixed_abs, tag = 'sflag constant byte address 0x0 - dummy sync flag']
  #allocation15 [shape = 'u32[]', space=smem, size = 0x4, offset = 0x44, fixed_abs, tag = 'smem constant byte address 0x44 - assertion arg 0']
  #allocation16 [shape = 'u32[]', space=smem, size = 0x4, offset = 0x48, fixed_abs, tag = 'smem constant byte address 0x48 - assertion arg 1']
  #allocation17 [shape = 's32[]', space=sflag, size = 0x4, offset = 0, fixed_abs, tag = 'sflag constant byte address 0x0 - dummy sync flag']
  #allocation18 [shape = 's32[]', space=sflag, size = 0x4, offset = 0, fixed_abs, tag = 'sflag constant byte address 0x0 - dummy sync flag']
  #allocation19 [shape = 's32[]', space=sflag, size = 0x4, offset = 0, fixed_abs, tag = 'sflag constant byte address 0x0 - dummy sync flag']
  #allocation20 [shape = 's32[]', space=sflag, size = 0x4, offset = 0, fixed_abs, tag = 'sflag constant byte address 0x0 - dummy sync flag']
  #allocation21 [shape = 's32[]', space=sflag, size = 0x4, offset = 0, fixed_abs, tag = 'sflag constant byte address 0x0 - dummy sync flag']
  #allocation22 [shape = 's32[]', space=sflag, size = 0x4, offset = 0, fixed_abs, tag = 'sflag constant byte address 0x0 - dummy sync flag']
  #allocation23 [shape = 's32[]', space=sflag, size = 0x4, offset = 0, fixed_abs, tag = 'sflag constant byte address 0x0 - dummy sync flag']
  #allocation24 [shape = 's32[]', space=sflag, size = 0x4, offset = 0, fixed_abs, tag = 'sflag constant byte address 0x0 - dummy sync flag']
  %s0 = inlined_call_operand.vmem [shape: f32[32,256], index: 0, kind: input, shape index: {}]
  %s1 = inlined_call_operand.vmem [shape: f32[40,32], index: 1, kind: input, shape index: {}]
  %s2 = inlined_call_operand.vmem [shape: f32[16,8], index: 2, kind: input, shape index: {}]
  %s3 = inlined_call_operand.vmem [shape: f32[16,16], index: 3, kind: input, shape index: {}]
  %s4 = inlined_call_operand.vmem [shape: f32[16,16], index: 4, kind: input, shape index: {}]
  %s5 = inlined_call_operand.vmem [shape: f32[16,64], index: 5, kind: input, shape index: {}]
  %s6 = inlined_call_operand.vmem [shape: f32[16,16], index: 6, kind: input, shape index: {}]
  %s7 = inlined_call_operand.vmem [shape: f32[8,8], index: 7, kind: input, shape index: {}]
  %s8 = inlined_call_operand.hbm [shape: f32[16,16], index: 8, kind: input, shape index: {}]
  %s9 = inlined_call_operand.hbm [shape: f32[16,16], index: 9, kind: input, shape index: {}]
  %s10 = inlined_call_operand.vmem [shape: f32[2,8,1], index: 10, kind: input, shape index: {}]
  %s11 = inlined_call_operand.vmem [shape: f32[2,16,1], index: 11, kind: input, shape index: {}]
  %s12 = inlined_call_operand.vmem [shape: f32[2,16,1], index: 12, kind: input, shape index: {}]
  %s13 = inlined_call_operand.vmem [shape: f32[2,16,1], index: 13, kind: input, shape index: {}]
  %s14 = inlined_call_operand.vmem [shape: f32[2,16,1], index: 14, kind: input, shape index: {}]
  %s15 = inlined_call_operand.hbm [shape: f32[256,512], index: 15, kind: input, shape index: {}]
  %s16 = inlined_call_operand.vmem [shape: f32[256,256], index: 16, kind: input, shape index: {}]
  %s17 = inlined_call_operand.hbm [shape: f32[256,256], index: 17, kind: input, shape index: {}]
  %s18 = inlined_call_operand.hbm [shape: f32[256,1024], index: 18, kind: input, shape index: {}]
  %s19 = inlined_call_operand.vmem [shape: f32[128,256], index: 19, kind: input, shape index: {}]
  %s20 = inlined_call_operand.hbm [shape: f32[128,256], index: 20, kind: input, shape index: {}]
  %s21 = inlined_call_operand.vmem [shape: f32[16,256], index: 21, kind: output, shape index: {0}]
  %s22 = inlined_call_operand.vmem [shape: f32[16,256], index: 22, kind: output, shape index: {1}]
  %23 = xla_tuple %s21, %s22
  %s24 = sld [smem:[#allocation0]]
  $region170: #{ffc_bn_act_forward.1} parent=0
    _
  %s26 = ssub.s32 1, %s24
  %s27 = scalar_select 0, %s26, %s24
  $region1: #{ffc_bn_act_forward.1} parent=0
    #allocation9 [shape = 'u8[8192]{0}', space=vmem, size = 0x2000, scoped, tag = 'input window, operand 8, single buffered']
    #allocation10 [shape = 's32[1]{0}', space=sflag, size = 0x4, scoped, tag = 'scoped memory for ffc_bn_act_forward.1']
    #allocation11 [shape = 'u8[8192]{0}', space=vmem, size = 0x2000, scoped, tag = 'input window, operand 9, single buffered']
    #allocation12 [shape = 's32[1]{0}', space=sflag, size = 0x4, scoped, tag = 'scoped memory for ffc_bn_act_forward.1']
    %28 = vsyncpa [#allocation10], 0
    %29 = vsyncpa [#allocation12], 0
    // Predicated region
    $region2: #{ffc_bn_act_forward.1} parent=1 // pred_check
      _
    $region3: #{ffc_bn_act_forward.1} parent=1 // pred_check_branch
      %31 = sbr.rel (0) target = $region5
    $region4: #{ffc_bn_act_forward.1} parent=1 // pred_region
      _
    $region5: #{ffc_bn_act_forward.1} parent=1 // pred_fallthru
      _
    // Predicated region
    $region6: #{ffc_bn_act_forward.1} parent=1 // pred_check
      _
    $region7: #{ffc_bn_act_forward.1} parent=1 // pred_check_branch
      %33 = sbr.rel (0) target = $region9
    $region8: #{ffc_bn_act_forward.1} parent=1 // pred_region
      _
    $region9: #{ffc_bn_act_forward.1} parent=1 // pred_fallthru
      _
    // Predicated region
    $region10: #{ffc_bn_act_forward.1} parent=1 // pred_check
      _
    $region11: #{ffc_bn_act_forward.1} parent=1 // pred_check_branch
      %35 = sbr.rel (0) target = $region13
    $region12: #{ffc_bn_act_forward.1} parent=1 // pred_region
      _
    $region13: #{ffc_bn_act_forward.1} parent=1 // pred_fallthru
      _
    // Predicated region
    $region14: #{ffc_bn_act_forward.1} parent=1 // pred_check
      _
    $region15: #{ffc_bn_act_forward.1} parent=1 // pred_check_branch
      %37 = sbr.rel (0) target = $region17
    $region16: #{ffc_bn_act_forward.1} parent=1 // pred_region
      _
    $region17: #{ffc_bn_act_forward.1} parent=1 // pred_fallthru
      _
    // Predicated region
    $region18: #{ffc_bn_act_forward.1} parent=1 // pred_check
      _
    $region19: #{ffc_bn_act_forward.1} parent=1 // pred_check_branch
      %39 = sbr.rel (0) target = $region21
    $region20: #{ffc_bn_act_forward.1} parent=1 // pred_region
      _
    $region21: #{ffc_bn_act_forward.1} parent=1 // pred_fallthru
      _
    // Predicated region
    $region22: #{ffc_bn_act_forward.1} parent=1 // pred_check
      _
    $region23: #{ffc_bn_act_forward.1} parent=1 // pred_check_branch
      %41 = sbr.rel (0) target = $region25
    $region24: #{ffc_bn_act_forward.1} parent=1 // pred_region
      _
    $region25: #{ffc_bn_act_forward.1} parent=1 // pred_fallthru
      _
    // Predicated region
    $region26: #{ffc_bn_act_forward.1} parent=1 // pred_check
      _
    $region27: #{ffc_bn_act_forward.1} parent=1 // pred_check_branch
      %43 = sbr.rel (0) target = $region29
    $region28: #{ffc_bn_act_forward.1} parent=1 // pred_region
      _
    $region29: #{ffc_bn_act_forward.1} parent=1 // pred_fallthru
      _
    // Predicated region
    $region30: #{ffc_bn_act_forward.1} parent=1 // pred_check
      _
    $region31: #{ffc_bn_act_forward.1} parent=1 // pred_check_branch
      %45 = sbr.rel (0) target = $region33
    $region32: #{ffc_bn_act_forward.1} parent=1 // pred_region
      _
    $region33: #{ffc_bn_act_forward.1} parent=1 // pred_fallthru
      _
    // Predicated region
    $region34: #{ffc_bn_act_forward.1} parent=1 // pred_check
      _
    $region35: #{ffc_bn_act_forward.1} parent=1 // pred_check_branch
      %47 = sbr.rel (0) target = $region37
    $region36: #{ffc_bn_act_forward.1} parent=1 // pred_region
      %s49 = ssub.s32 256, 256
      %50 = vsyncadd [#allocation10], %s49
      %s51 = sshll.u32 [#allocation9], 4
      %s52 = int_to_ptr.vmem [resolvable:$true] %s51
      %57 = dma.hbm_to_vmem [thread:$0]  %s8, 256, %s52, [#allocation10], 128, 128, 8
    $region37: #{ffc_bn_act_forward.1} parent=1 // pred_fallthru
      _
    // Predicated region
    $region38: #{ffc_bn_act_forward.1} parent=1 // pred_check
      _
    $region39: #{ffc_bn_act_forward.1} parent=1 // pred_check_branch
      %59 = sbr.rel (0) target = $region41
    $region40: #{ffc_bn_act_forward.1} parent=1 // pred_region
      %s61 = ssub.s32 256, 256
      %62 = vsyncadd [#allocation12], %s61
      %s63 = sshll.u32 [#allocation11], 4
      %s64 = int_to_ptr.vmem [resolvable:$true] %s63
      %69 = dma.hbm_to_vmem [thread:$0]  %s9, 256, %s64, [#allocation12], 128, 128, 8
    $region41: #{ffc_bn_act_forward.1} parent=1 // pred_fallthru
      _
    // Predicated region
    $region42: #{ffc_bn_act_forward.1} parent=1 // pred_check
      _
    $region43: #{ffc_bn_act_forward.1} parent=1 // pred_check_branch
      %71 = sbr.rel (0) target = $region45
    $region44: #{ffc_bn_act_forward.1} parent=1 // pred_region
      _
    $region45: #{ffc_bn_act_forward.1} parent=1 // pred_fallthru
      _
    // Predicated region
    $region46: #{ffc_bn_act_forward.1} parent=1 // pred_check
      _
    $region47: #{ffc_bn_act_forward.1} parent=1 // pred_check_branch
      %73 = sbr.rel (0) target = $region49
    $region48: #{ffc_bn_act_forward.1} parent=1 // pred_region
      _
    $region49: #{ffc_bn_act_forward.1} parent=1 // pred_fallthru
      _
    // Predicated region
    $region50: #{ffc_bn_act_forward.1} parent=1 // pred_check
      _
    $region51: #{ffc_bn_act_forward.1} parent=1 // pred_check_branch
      %75 = sbr.rel (0) target = $region53
    $region52: #{ffc_bn_act_forward.1} parent=1 // pred_region
      _
    $region53: #{ffc_bn_act_forward.1} parent=1 // pred_fallthru
      _
    // Predicated region
    $region54: #{ffc_bn_act_forward.1} parent=1 // pred_check
      _
    $region55: #{ffc_bn_act_forward.1} parent=1 // pred_check_branch
      %77 = sbr.rel (0) target = $region57
    $region56: #{ffc_bn_act_forward.1} parent=1 // pred_region
      _
    $region57: #{ffc_bn_act_forward.1} parent=1 // pred_fallthru
      _
    // Predicated region
    $region58: #{ffc_bn_act_forward.1} parent=1 // pred_check
      _
    $region59: #{ffc_bn_act_forward.1} parent=1 // pred_check_branch
      %79 = sbr.rel (0) target = $region61
    $region60: #{ffc_bn_act_forward.1} parent=1 // pred_region
      _
    $region61: #{ffc_bn_act_forward.1} parent=1 // pred_fallthru
      _
    // Predicated region
    $region62: #{ffc_bn_act_forward.1} parent=1 // pred_check
      _
    $region63: #{ffc_bn_act_forward.1} parent=1 // pred_check_branch
      %81 = sbr.rel (0) target = $region65
    $region64: #{ffc_bn_act_forward.1} parent=1 // pred_region
      %82 = dma.done [#allocation10], 256
    $region65: #{ffc_bn_act_forward.1} parent=1 // pred_fallthru
      _
    // Predicated region
    $region66: #{ffc_bn_act_forward.1} parent=1 // pred_check
      _
    $region67: #{ffc_bn_act_forward.1} parent=1 // pred_check_branch
      %84 = sbr.rel (0) target = $region69
    $region68: #{ffc_bn_act_forward.1} parent=1 // pred_region
      %85 = dma.done [#allocation12], 256
    $region69: #{ffc_bn_act_forward.1} parent=1 // pred_fallthru
      _
    // Predicated region
    $region70: #{ffc_bn_act_forward.1} parent=1 // pred_check
      _
    $region71: #{ffc_bn_act_forward.1} parent=1 // pred_check_branch
      %87 = sbr.rel target = $region73
    $region72: #{ffc_bn_act_forward.1} parent=1 // pred_region
      %88 = sst [smem:[#allocation15]] [#allocation14]
      %89 = sst [smem:[#allocation16]] [#allocation13]
    $region73: #{ffc_bn_act_forward.1} parent=1 // pred_fallthru
      _
    %91 = shalt.err (0)
    %s93 = sshll.u32 [#allocation2], 4
    %s94 = int_to_ptr.vmem [resolvable:$true] %s93
    %96 = dma.hbm_to_vmem [thread:$0]  %s15, 16384, %s94, [#allocation8]
    %s97 = scalar_lea.sflag [#allocation8], 1
    %p99 = scmp.lt.u32.totalorder 512, 8
    %p100 = pneg %p99
    // Predicated region
    $region74: #{ffc_bn_act_forward.1} parent=1 // pred_check
      _
    $region75: #{ffc_bn_act_forward.1} parent=1 // pred_check_branch
      %102 = sbr.rel (%p99) target = $region77
    $region76: #{ffc_bn_act_forward.1} parent=1 // pred_region
      %s118 = sand.u32 512, 7
      %p119 = scmp.eq.s32.totalorder %s118, 0
      // Predicated region
      $region89: #{ffc_bn_act_forward.1} parent=76 // pred_check
        %p120 = pneg %p119
      $region90: #{ffc_bn_act_forward.1} parent=76 // pred_check_branch
        %122 = sbr.rel (%p120) target = $region92
      $region91: #{ffc_bn_act_forward.1} parent=76 // pred_region
        loop: start=0, step=1, limit=1
        $region93: #{ffc_bn_act_forward.1} parent=91 // loop_pre_header
          _
        $region94: #{ffc_bn_act_forward.1} parent=91 // loop_header
          %s124 = sphi 0, %s128
          %p125 = scmp.ge.s32.totalorder %s124, 1
          %s129 = sphi %s16, %s16
          %s130 = sphi [#allocation3], [#allocation3]
        $region95: #{ffc_bn_act_forward.1} parent=91 // loop_header_branch
          %127 = sbr.rel (%p125) target = $region99
        $region96: #{ffc_bn_act_forward.1} parent=91 // loop_body
          %v131 = vld [vmem:[%s129] sm:$0xff]
          %132 = vst [vmem:[%s130] sm:$0xff] %v131
          %v133 = vld [vmem:[%s129 + $0x8] sm:$0xff]
          %134 = vst [vmem:[%s130 + $0x8] sm:$0xff] %v133
          %v135 = vld [vmem:[%s129 + $0x10] sm:$0xff]
          %136 = vst [vmem:[%s130 + $0x10] sm:$0xff] %v135
          %v137 = vld [vmem:[%s129 + $0x18] sm:$0xff]
          %138 = vst [vmem:[%s130 + $0x18] sm:$0xff] %v137
          %v139 = vld [vmem:[%s129 + $0x20] sm:$0xff]
          %140 = vst [vmem:[%s130 + $0x20] sm:$0xff] %v139
          %v141 = vld [vmem:[%s129 + $0x28] sm:$0xff]
          %142 = vst [vmem:[%s130 + $0x28] sm:$0xff] %v141
          %v143 = vld [vmem:[%s129 + $0x30] sm:$0xff]
          %144 = vst [vmem:[%s130 + $0x30] sm:$0xff] %v143
          %v145 = vld [vmem:[%s129 + $0x38] sm:$0xff]
          %146 = vst [vmem:[%s130 + $0x38] sm:$0xff] %v145
          %v147 = vld [vmem:[%s129 + $0x40] sm:$0xff]
          %148 = vst [vmem:[%s130 + $0x40] sm:$0xff] %v147
          %v149 = vld [vmem:[%s129 + $0x48] sm:$0xff]
          %150 = vst [vmem:[%s130 + $0x48] sm:$0xff] %v149
          %v151 = vld [vmem:[%s129 + $0x50] sm:$0xff]
          %152 = vst [vmem:[%s130 + $0x50] sm:$0xff] %v151
          %v153 = vld [vmem:[%s129 + $0x58] sm:$0xff]
          %154 = vst [vmem:[%s130 + $0x58] sm:$0xff] %v153
          %v155 = vld [vmem:[%s129 + $0x60] sm:$0xff]
          %156 = vst [vmem:[%s130 + $0x60] sm:$0xff] %v155
          %v157 = vld [vmem:[%s129 + $0x68] sm:$0xff]
          %158 = vst [vmem:[%s130 + $0x68] sm:$0xff] %v157
          %v159 = vld [vmem:[%s129 + $0x70] sm:$0xff]
          %160 = vst [vmem:[%s130 + $0x70] sm:$0xff] %v159
          %v161 = vld [vmem:[%s129 + $0x78] sm:$0xff]
          %162 = vst [vmem:[%s130 + $0x78] sm:$0xff] %v161
          %v163 = vld [vmem:[%s129 + $0x80] sm:$0xff]
          %164 = vst [vmem:[%s130 + $0x80] sm:$0xff] %v163
          %v165 = vld [vmem:[%s129 + $0x88] sm:$0xff]
          %166 = vst [vmem:[%s130 + $0x88] sm:$0xff] %v165
          %v167 = vld [vmem:[%s129 + $0x90] sm:$0xff]
          %168 = vst [vmem:[%s130 + $0x90] sm:$0xff] %v167
          %v169 = vld [vmem:[%s129 + $0x98] sm:$0xff]
          %170 = vst [vmem:[%s130 + $0x98] sm:$0xff] %v169
          %v171 = vld [vmem:[%s129 + $0xa0] sm:$0xff]
          %172 = vst [vmem:[%s130 + $0xa0] sm:$0xff] %v171
          %v173 = vld [vmem:[%s129 + $0xa8] sm:$0xff]
          %174 = vst [vmem:[%s130 + $0xa8] sm:$0xff] %v173
          %v175 = vld [vmem:[%s129 + $0xb0] sm:$0xff]
          %176 = vst [vmem:[%s130 + $0xb0] sm:$0xff] %v175
          %v177 = vld [vmem:[%s129 + $0xb8] sm:$0xff]
          %178 = vst [vmem:[%s130 + $0xb8] sm:$0xff] %v177
          %v179 = vld [vmem:[%s129 + $0xc0] sm:$0xff]
          %180 = vst [vmem:[%s130 + $0xc0] sm:$0xff] %v179
          %v181 = vld [vmem:[%s129 + $0xc8] sm:$0xff]
          %182 = vst [vmem:[%s130 + $0xc8] sm:$0xff] %v181
          %v183 = vld [vmem:[%s129 + $0xd0] sm:$0xff]
          %184 = vst [vmem:[%s130 + $0xd0] sm:$0xff] %v183
          %v185 = vld [vmem:[%s129 + $0xd8] sm:$0xff]
          %186 = vst [vmem:[%s130 + $0xd8] sm:$0xff] %v185
          %v187 = vld [vmem:[%s129 + $0xe0] sm:$0xff]
          %188 = vst [vmem:[%s130 + $0xe0] sm:$0xff] %v187
          %v189 = vld [vmem:[%s129 + $0xe8] sm:$0xff]
          %190 = vst [vmem:[%s130 + $0xe8] sm:$0xff] %v189
          %v191 = vld [vmem:[%s129 + $0xf0] sm:$0xff]
          %192 = vst [vmem:[%s130 + $0xf0] sm:$0xff] %v191
          %v193 = vld [vmem:[%s129 + $0xf8] sm:$0xff]
          %194 = vst [vmem:[%s130 + $0xf8] sm:$0xff] %v193
          %v195 = vld [vmem:[%s129 + $0x100] sm:$0xff]
          %196 = vst [vmem:[%s130 + $0x100] sm:$0xff] %v195
          %v197 = vld [vmem:[%s129 + $0x108] sm:$0xff]
          %198 = vst [vmem:[%s130 + $0x108] sm:$0xff] %v197
          %v199 = vld [vmem:[%s129 + $0x110] sm:$0xff]
          %200 = vst [vmem:[%s130 + $0x110] sm:$0xff] %v199
          %v201 = vld [vmem:[%s129 + $0x118] sm:$0xff]
          %202 = vst [vmem:[%s130 + $0x118] sm:$0xff] %v201
          %v203 = vld [vmem:[%s129 + $0x120] sm:$0xff]
          %204 = vst [vmem:[%s130 + $0x120] sm:$0xff] %v203
          %v205 = vld [vmem:[%s129 + $0x128] sm:$0xff]
          %206 = vst [vmem:[%s130 + $0x128] sm:$0xff] %v205
          %v207 = vld [vmem:[%s129 + $0x130] sm:$0xff]
          %208 = vst [vmem:[%s130 + $0x130] sm:$0xff] %v207
          %v209 = vld [vmem:[%s129 + $0x138] sm:$0xff]
          %210 = vst [vmem:[%s130 + $0x138] sm:$0xff] %v209
          %v211 = vld [vmem:[%s129 + $0x140] sm:$0xff]
          %212 = vst [vmem:[%s130 + $0x140] sm:$0xff] %v211
          %v213 = vld [vmem:[%s129 + $0x148] sm:$0xff]
          %214 = vst [vmem:[%s130 + $0x148] sm:$0xff] %v213
          %v215 = vld [vmem:[%s129 + $0x150] sm:$0xff]
          %216 = vst [vmem:[%s130 + $0x150] sm:$0xff] %v215
          %v217 = vld [vmem:[%s129 + $0x158] sm:$0xff]
          %218 = vst [vmem:[%s130 + $0x158] sm:$0xff] %v217
          %v219 = vld [vmem:[%s129 + $0x160] sm:$0xff]
          %220 = vst [vmem:[%s130 + $0x160] sm:$0xff] %v219
          %v221 = vld [vmem:[%s129 + $0x168] sm:$0xff]
          %222 = vst [vmem:[%s130 + $0x168] sm:$0xff] %v221
          %v223 = vld [vmem:[%s129 + $0x170] sm:$0xff]
          %224 = vst [vmem:[%s130 + $0x170] sm:$0xff] %v223
          %v225 = vld [vmem:[%s129 + $0x178] sm:$0xff]
          %226 = vst [vmem:[%s130 + $0x178] sm:$0xff] %v225
          %v227 = vld [vmem:[%s129 + $0x180] sm:$0xff]
          %228 = vst [vmem:[%s130 + $0x180] sm:$0xff] %v227
          %v229 = vld [vmem:[%s129 + $0x188] sm:$0xff]
          %230 = vst [vmem:[%s130 + $0x188] sm:$0xff] %v229
          %v231 = vld [vmem:[%s129 + $0x190] sm:$0xff]
          %232 = vst [vmem:[%s130 + $0x190] sm:$0xff] %v231
          %v233 = vld [vmem:[%s129 + $0x198] sm:$0xff]
          %234 = vst [vmem:[%s130 + $0x198] sm:$0xff] %v233
          %v235 = vld [vmem:[%s129 + $0x1a0] sm:$0xff]
          %236 = vst [vmem:[%s130 + $0x1a0] sm:$0xff] %v235
          %v237 = vld [vmem:[%s129 + $0x1a8] sm:$0xff]
          %238 = vst [vmem:[%s130 + $0x1a8] sm:$0xff] %v237
          %v239 = vld [vmem:[%s129 + $0x1b0] sm:$0xff]
          %240 = vst [vmem:[%s130 + $0x1b0] sm:$0xff] %v239
          %v241 = vld [vmem:[%s129 + $0x1b8] sm:$0xff]
          %242 = vst [vmem:[%s130 + $0x1b8] sm:$0xff] %v241
          %v243 = vld [vmem:[%s129 + $0x1c0] sm:$0xff]
          %244 = vst [vmem:[%s130 + $0x1c0] sm:$0xff] %v243
          %v245 = vld [vmem:[%s129 + $0x1c8] sm:$0xff]
          %246 = vst [vmem:[%s130 + $0x1c8] sm:$0xff] %v245
          %v247 = vld [vmem:[%s129 + $0x1d0] sm:$0xff]
          %248 = vst [vmem:[%s130 + $0x1d0] sm:$0xff] %v247
          %v249 = vld [vmem:[%s129 + $0x1d8] sm:$0xff]
          %250 = vst [vmem:[%s130 + $0x1d8] sm:$0xff] %v249
          %v251 = vld [vmem:[%s129 + $0x1e0] sm:$0xff]
          %252 = vst [vmem:[%s130 + $0x1e0] sm:$0xff] %v251
          %v253 = vld [vmem:[%s129 + $0x1e8] sm:$0xff]
          %254 = vst [vmem:[%s130 + $0x1e8] sm:$0xff] %v253
          %v255 = vld [vmem:[%s129 + $0x1f0] sm:$0xff]
          %256 = vst [vmem:[%s130 + $0x1f0] sm:$0xff] %v255
          %v257 = vld [vmem:[%s129 + $0x1f8] sm:$0xff]
          %258 = vst [vmem:[%s130 + $0x1f8] sm:$0xff] %v257
        $region97: #{ffc_bn_act_forward.1} parent=91 // loop_footer
          %s128 = sadd.s32 1, %s124
        $region98: #{ffc_bn_act_forward.1} parent=91 // loop_footer_branch
          %123 = sbr.rel target = $region94
        $region99: #{ffc_bn_act_forward.1} parent=91 // loop_exit
          _
      $region92: #{ffc_bn_act_forward.1} parent=76 // pred_fallthru
        _
      %p259 = pneg %p119
      // Predicated region
      $region100: #{ffc_bn_act_forward.1} parent=76 // pred_check
        _
      $region101: #{ffc_bn_act_forward.1} parent=76 // pred_check_branch
        %261 = sbr.rel (%p119) target = $region103
      $region102: #{ffc_bn_act_forward.1} parent=76 // pred_region
        %s262 = sand.u32 512, 7
      $region103: #{ffc_bn_act_forward.1} parent=76 // pred_fallthru
        _
    $region77: #{ffc_bn_act_forward.1} parent=1 // pred_fallthru
      _
    // Predicated region
    $region78: #{ffc_bn_act_forward.1} parent=1 // pred_check
      %p103 = pneg %p99
    $region79: #{ffc_bn_act_forward.1} parent=1 // pred_check_branch
      %105 = sbr.rel (%p103) target = $region81
    $region80: #{ffc_bn_act_forward.1} parent=1 // pred_region
      %s106 = sshll.u32 1, 512
      %s107 = ssub.s32 %s106, 1
      loop: start=0, step=1, limit=1
      $region82: #{ffc_bn_act_forward.1} parent=80 // loop_pre_header
        _
      $region83: #{ffc_bn_act_forward.1} parent=80 // loop_header
        %s109 = sphi 0, %s113
        %p110 = scmp.ge.s32.totalorder %s109, 1
        %s114 = sphi %s16, %s16
        %s115 = sphi [#allocation3], [#allocation3]
      $region84: #{ffc_bn_act_forward.1} parent=80 // loop_header_branch
        %112 = sbr.rel (%p110) target = $region88
      $region85: #{ffc_bn_act_forward.1} parent=80 // loop_body
        %v116 = vld [vmem:[%s114] sm:%s107]
        %117 = vst [vmem:[%s115] sm:%s107] %v116
      $region86: #{ffc_bn_act_forward.1} parent=80 // loop_footer
        %s113 = sadd.s32 1, %s109
      $region87: #{ffc_bn_act_forward.1} parent=80 // loop_footer_branch
        %108 = sbr.rel target = $region83
      $region88: #{ffc_bn_act_forward.1} parent=80 // loop_exit
        _
    $region81: #{ffc_bn_act_forward.1} parent=1 // pred_fallthru
      _
    // Predicated region
    $region104: #{ffc_bn_act_forward.1} parent=1 // pred_check
      _
    $region105: #{ffc_bn_act_forward.1} parent=1 // pred_check_branch
      %265 = sbr.rel (0) target = $region107
    $region106: #{ffc_bn_act_forward.1} parent=1 // pred_region
      %266 = vsyncadd %s97, 8192
    $region107: #{ffc_bn_act_forward.1} parent=1 // pred_fallthru
      _
    %s267 = scalar_lea.sflag [#allocation8], 2
    // Predicated region
    $region108: #{ffc_bn_act_forward.1} parent=1 // pred_check
      _
    $region109: #{ffc_bn_act_forward.1} parent=1 // pred_check_branch
      %269 = sbr.rel target = $region111
    $region110: #{ffc_bn_act_forward.1} parent=1 // pred_region
      %270 = sst [smem:[#allocation15]] [#allocation19]
      %271 = sst [smem:[#allocation16]] [#allocation18]
    $region111: #{ffc_bn_act_forward.1} parent=1 // pred_fallthru
      _
    %273 = shalt.err (0)
    %s275 = sshll.u32 [#allocation4], 4
    %s276 = int_to_ptr.vmem [resolvable:$true] %s275
    %278 = dma.hbm_to_vmem [thread:$0]  %s17, 8192, %s276, %s267
    %s279 = scalar_lea.sflag [#allocation8], 3
    // Predicated region
    $region112: #{ffc_bn_act_forward.1} parent=1 // pred_check
      _
    $region113: #{ffc_bn_act_forward.1} parent=1 // pred_check_branch
      %281 = sbr.rel target = $region115
    $region114: #{ffc_bn_act_forward.1} parent=1 // pred_region
      %282 = sst [smem:[#allocation15]] [#allocation21]
      %283 = sst [smem:[#allocation16]] [#allocation20]
    $region115: #{ffc_bn_act_forward.1} parent=1 // pred_fallthru
      _
    %285 = shalt.err (0)
    %s287 = sshll.u32 [#allocation5], 4
    %s288 = int_to_ptr.vmem [resolvable:$true] %s287
    %290 = dma.hbm_to_vmem [thread:$0]  %s18, 32768, %s288, %s279
    %s291 = scalar_lea.sflag [#allocation8], 4
    %p293 = scmp.lt.u32.totalorder 256, 8
    %p294 = pneg %p293
    // Predicated region
    $region116: #{ffc_bn_act_forward.1} parent=1 // pred_check
      _
    $region117: #{ffc_bn_act_forward.1} parent=1 // pred_check_branch
      %296 = sbr.rel (%p293) target = $region119
    $region118: #{ffc_bn_act_forward.1} parent=1 // pred_region
      %s312 = sand.u32 256, 7
      %p313 = scmp.eq.s32.totalorder %s312, 0
      // Predicated region
      $region131: #{ffc_bn_act_forward.1} parent=118 // pred_check
        %p314 = pneg %p313
      $region132: #{ffc_bn_act_forward.1} parent=118 // pred_check_branch
        %316 = sbr.rel (%p314) target = $region134
      $region133: #{ffc_bn_act_forward.1} parent=118 // pred_region
        loop: start=0, step=1, limit=1
        $region135: #{ffc_bn_act_forward.1} parent=133 // loop_pre_header
          _
        $region136: #{ffc_bn_act_forward.1} parent=133 // loop_header
          %s318 = sphi 0, %s322
          %p319 = scmp.ge.s32.totalorder %s318, 1
          %s323 = sphi %s19, %s19
          %s324 = sphi [#allocation6], [#allocation6]
        $region137: #{ffc_bn_act_forward.1} parent=133 // loop_header_branch
          %321 = sbr.rel (%p319) target = $region141
        $region138: #{ffc_bn_act_forward.1} parent=133 // loop_body
          %v325 = vld [vmem:[%s323] sm:$0xff]
          %326 = vst [vmem:[%s324] sm:$0xff] %v325
          %v327 = vld [vmem:[%s323 + $0x8] sm:$0xff]
          %328 = vst [vmem:[%s324 + $0x8] sm:$0xff] %v327
          %v329 = vld [vmem:[%s323 + $0x10] sm:$0xff]
          %330 = vst [vmem:[%s324 + $0x10] sm:$0xff] %v329
          %v331 = vld [vmem:[%s323 + $0x18] sm:$0xff]
          %332 = vst [vmem:[%s324 + $0x18] sm:$0xff] %v331
          %v333 = vld [vmem:[%s323 + $0x20] sm:$0xff]
          %334 = vst [vmem:[%s324 + $0x20] sm:$0xff] %v333
          %v335 = vld [vmem:[%s323 + $0x28] sm:$0xff]
          %336 = vst [vmem:[%s324 + $0x28] sm:$0xff] %v335
          %v337 = vld [vmem:[%s323 + $0x30] sm:$0xff]
          %338 = vst [vmem:[%s324 + $0x30] sm:$0xff] %v337
          %v339 = vld [vmem:[%s323 + $0x38] sm:$0xff]
          %340 = vst [vmem:[%s324 + $0x38] sm:$0xff] %v339
          %v341 = vld [vmem:[%s323 + $0x40] sm:$0xff]
          %342 = vst [vmem:[%s324 + $0x40] sm:$0xff] %v341
          %v343 = vld [vmem:[%s323 + $0x48] sm:$0xff]
          %344 = vst [vmem:[%s324 + $0x48] sm:$0xff] %v343
          %v345 = vld [vmem:[%s323 + $0x50] sm:$0xff]
          %346 = vst [vmem:[%s324 + $0x50] sm:$0xff] %v345
          %v347 = vld [vmem:[%s323 + $0x58] sm:$0xff]
          %348 = vst [vmem:[%s324 + $0x58] sm:$0xff] %v347
          %v349 = vld [vmem:[%s323 + $0x60] sm:$0xff]
          %350 = vst [vmem:[%s324 + $0x60] sm:$0xff] %v349
          %v351 = vld [vmem:[%s323 + $0x68] sm:$0xff]
          %352 = vst [vmem:[%s324 + $0x68] sm:$0xff] %v351
          %v353 = vld [vmem:[%s323 + $0x70] sm:$0xff]
          %354 = vst [vmem:[%s324 + $0x70] sm:$0xff] %v353
          %v355 = vld [vmem:[%s323 + $0x78] sm:$0xff]
          %356 = vst [vmem:[%s324 + $0x78] sm:$0xff] %v355
          %v357 = vld [vmem:[%s323 + $0x80] sm:$0xff]
          %358 = vst [vmem:[%s324 + $0x80] sm:$0xff] %v357
          %v359 = vld [vmem:[%s323 + $0x88] sm:$0xff]
          %360 = vst [vmem:[%s324 + $0x88] sm:$0xff] %v359
          %v361 = vld [vmem:[%s323 + $0x90] sm:$0xff]
          %362 = vst [vmem:[%s324 + $0x90] sm:$0xff] %v361
          %v363 = vld [vmem:[%s323 + $0x98] sm:$0xff]
          %364 = vst [vmem:[%s324 + $0x98] sm:$0xff] %v363
          %v365 = vld [vmem:[%s323 + $0xa0] sm:$0xff]
          %366 = vst [vmem:[%s324 + $0xa0] sm:$0xff] %v365
          %v367 = vld [vmem:[%s323 + $0xa8] sm:$0xff]
          %368 = vst [vmem:[%s324 + $0xa8] sm:$0xff] %v367
          %v369 = vld [vmem:[%s323 + $0xb0] sm:$0xff]
          %370 = vst [vmem:[%s324 + $0xb0] sm:$0xff] %v369
          %v371 = vld [vmem:[%s323 + $0xb8] sm:$0xff]
          %372 = vst [vmem:[%s324 + $0xb8] sm:$0xff] %v371
          %v373 = vld [vmem:[%s323 + $0xc0] sm:$0xff]
          %374 = vst [vmem:[%s324 + $0xc0] sm:$0xff] %v373
          %v375 = vld [vmem:[%s323 + $0xc8] sm:$0xff]
          %376 = vst [vmem:[%s324 + $0xc8] sm:$0xff] %v375
          %v377 = vld [vmem:[%s323 + $0xd0] sm:$0xff]
          %378 = vst [vmem:[%s324 + $0xd0] sm:$0xff] %v377
          %v379 = vld [vmem:[%s323 + $0xd8] sm:$0xff]
          %380 = vst [vmem:[%s324 + $0xd8] sm:$0xff] %v379
          %v381 = vld [vmem:[%s323 + $0xe0] sm:$0xff]
          %382 = vst [vmem:[%s324 + $0xe0] sm:$0xff] %v381
          %v383 = vld [vmem:[%s323 + $0xe8] sm:$0xff]
          %384 = vst [vmem:[%s324 + $0xe8] sm:$0xff] %v383
          %v385 = vld [vmem:[%s323 + $0xf0] sm:$0xff]
          %386 = vst [vmem:[%s324 + $0xf0] sm:$0xff] %v385
          %v387 = vld [vmem:[%s323 + $0xf8] sm:$0xff]
          %388 = vst [vmem:[%s324 + $0xf8] sm:$0xff] %v387
        $region139: #{ffc_bn_act_forward.1} parent=133 // loop_footer
          %s322 = sadd.s32 1, %s318
        $region140: #{ffc_bn_act_forward.1} parent=133 // loop_footer_branch
          %317 = sbr.rel target = $region136
        $region141: #{ffc_bn_act_forward.1} parent=133 // loop_exit
          _
      $region134: #{ffc_bn_act_forward.1} parent=118 // pred_fallthru
        _
      %p389 = pneg %p313
      // Predicated region
      $region142: #{ffc_bn_act_forward.1} parent=118 // pred_check
        _
      $region143: #{ffc_bn_act_forward.1} parent=118 // pred_check_branch
        %391 = sbr.rel (%p313) target = $region145
      $region144: #{ffc_bn_act_forward.1} parent=118 // pred_region
        %s392 = sand.u32 256, 7
      $region145: #{ffc_bn_act_forward.1} parent=118 // pred_fallthru
        _
    $region119: #{ffc_bn_act_forward.1} parent=1 // pred_fallthru
      _
    // Predicated region
    $region120: #{ffc_bn_act_forward.1} parent=1 // pred_check
      %p297 = pneg %p293
    $region121: #{ffc_bn_act_forward.1} parent=1 // pred_check_branch
      %299 = sbr.rel (%p297) target = $region123
    $region122: #{ffc_bn_act_forward.1} parent=1 // pred_region
      %s300 = sshll.u32 1, 256
      %s301 = ssub.s32 %s300, 1
      loop: start=0, step=1, limit=1
      $region124: #{ffc_bn_act_forward.1} parent=122 // loop_pre_header
        _
      $region125: #{ffc_bn_act_forward.1} parent=122 // loop_header
        %s303 = sphi 0, %s307
        %p304 = scmp.ge.s32.totalorder %s303, 1
        %s308 = sphi %s19, %s19
        %s309 = sphi [#allocation6], [#allocation6]
      $region126: #{ffc_bn_act_forward.1} parent=122 // loop_header_branch
        %306 = sbr.rel (%p304) target = $region130
      $region127: #{ffc_bn_act_forward.1} parent=122 // loop_body
        %v310 = vld [vmem:[%s308] sm:%s301]
        %311 = vst [vmem:[%s309] sm:%s301] %v310
      $region128: #{ffc_bn_act_forward.1} parent=122 // loop_footer
        %s307 = sadd.s32 1, %s303
      $region129: #{ffc_bn_act_forward.1} parent=122 // loop_footer_branch
        %302 = sbr.rel target = $region125
      $region130: #{ffc_bn_act_forward.1} parent=122 // loop_exit
        _
    $region123: #{ffc_bn_act_forward.1} parent=1 // pred_fallthru
      _
    // Predicated region
    $region146: #{ffc_bn_act_forward.1} parent=1 // pred_check
      _
    $region147: #{ffc_bn_act_forward.1} parent=1 // pred_check_branch
      %395 = sbr.rel (0) target = $region149
    $region148: #{ffc_bn_act_forward.1} parent=1 // pred_region
      %396 = vsyncadd %s291, 4096
    $region149: #{ffc_bn_act_forward.1} parent=1 // pred_fallthru
      _
    %s397 = scalar_lea.sflag [#allocation8], 5
    // Predicated region
    $region150: #{ffc_bn_act_forward.1} parent=1 // pred_check
      _
    $region151: #{ffc_bn_act_forward.1} parent=1 // pred_check_branch
      %399 = sbr.rel target = $region153
    $region152: #{ffc_bn_act_forward.1} parent=1 // pred_region
      %400 = sst [smem:[#allocation15]] [#allocation24]
      %401 = sst [smem:[#allocation16]] [#allocation23]
    $region153: #{ffc_bn_act_forward.1} parent=1 // pred_fallthru
      _
    %403 = shalt.err (0)
    %s405 = sshll.u32 [#allocation7], 4
    %s406 = int_to_ptr.vmem [resolvable:$true] %s405
    %408 = dma.hbm_to_vmem [thread:$0]  %s20, 4096, %s406, %s397
    %v409 = vld [vmem:[%s0] sm:$0xff]
    %v410 = vld [vmem:[%s0 + $0x8] sm:$0xff]
    %v411 = vld [vmem:[%s0 + $0x10] sm:$0xff]
    %v412 = vld [vmem:[%s0 + $0x18] sm:$0xff]
    %v413 = vld [vmem:[%s0 + $0x20] sm:$0xff]
    %v414 = vld [vmem:[%s0 + $0x28] sm:$0xff]
    %v415 = vld [vmem:[%s0 + $0x30] sm:$0xff]
    %v416 = vld [vmem:[%s0 + $0x38] sm:$0xff]
    %v417 = vld [vmem:[%s1] sm:$0xff]
    %v418 = vld [vmem:[%s1 + $0x8] sm:$0xff]
    %v419 = vld [vmem:[%s1 + $0x10] sm:$0xff]
    %v420 = vld [vmem:[%s1 + $0x18] sm:$0xff]
    %v421 = vld [vmem:[%s1 + $0x20] sm:$0xff]
    %vm422 = vcmask 261120
    %v424 = vsel %vm422, %v417, 0
    %v427 = vsel %vm422, %v418, 0
    %v430 = vsel %vm422, %v419, 0
    %v433 = vsel %vm422, %v420, 0
    %v436 = vsel %vm422, %v421, 0
    %438 = vmatprep.subr.mxu0 0.0
    %439 = vmatpush1.msra.mxu0 0.0
    %440 = vmatprep.subr.mxu0 0.0
    %441 = vmatpush1.msra.mxu0 0.0
    %442 = vmatprep.subr.mxu0 0.0
    %443 = vmatpush1.msra.mxu0 0.0
    %444 = vmatprep.subr.mxu0 0.0
    %445 = vmatpush1.msra.mxu0 0.0
    %446 = vmatprep.subr.mxu0 0.0
    %447 = vmatpush1.msra.mxu0 0.0
    %448 = vmatprep.subr.mxu0 0.0
    %449 = vmatpush1.msra.mxu0 0.0
    %450 = vmatprep.subr.mxu0 0.0
    %451 = vmatpush1.msra.mxu0 0.0
    %452 = vmatprep.subr.mxu0 0.0
    %453 = vmatpush1.msra.mxu0 0.0
    %454 = vmatprep.subr.mxu0 0.0
    %455 = vmatpush1.msra.mxu0 0.0
    %456 = vmatprep.subr.mxu0 0.0
    %457 = vmatpush1.msra.mxu0 0.0
    %458 = vmatprep.subr.mxu0 0.0
    %459 = vmatpush1.msra.mxu0 0.0
    %460 = vmatprep.subr.mxu0 0.0
    %461 = vmatpush1.msra.mxu0 0.0
    %462 = vmatprep.subr.mxu0 %v416
    %463 = vmatpush1.msra.mxu0 %v415
    %464 = vmatprep.subr.mxu0 %v414
    %465 = vmatpush1.msra.mxu0 %v413
    %466 = vmatprep.subr.mxu0 %v412
    %467 = vmatpush1.msra.mxu0 %v411
    %468 = vmatprep.subr.mxu0 %v410
    %469 = vmatpush1.msra.mxu0 %v409
    %470 = vmatprep.subr.mxu0 0.0
    %471 = vmatpush2.msra.mxu0 0.0
    %472 = vmatprep.subr.mxu0 0.0
    %473 = vmatpush2.msra.mxu0 0.0
    %474 = vmatprep.subr.mxu0 0.0
    %475 = vmatpush2.msra.mxu0 0.0
    %476 = vmatprep.subr.mxu0 0.0
    %477 = vmatpush2.msra.mxu0 0.0
    %478 = vmatprep.subr.mxu0 0.0
    %479 = vmatpush2.msra.mxu0 0.0
    %480 = vmatprep.subr.mxu0 0.0
    %481 = vmatpush2.msra.mxu0 0.0
    %482 = vmatprep.subr.mxu0 0.0
    %483 = vmatpush2.msra.mxu0 0.0
    %484 = vmatprep.subr.mxu0 0.0
    %485 = vmatpush2.msra.mxu0 0.0
    %486 = vmatprep.subr.mxu0 0.0
    %487 = vmatpush2.msra.mxu0 0.0
    %488 = vmatprep.subr.mxu0 0.0
    %489 = vmatpush2.msra.mxu0 0.0
    %490 = vmatprep.subr.mxu0 0.0
    %491 = vmatpush2.msra.mxu0 0.0
    %492 = vmatprep.subr.mxu0 0.0
    %493 = vmatpush2.msra.mxu0 0.0
    %494 = vmatprep.subr.mxu0 0.0
    %495 = vmatpush2.msra.mxu0 0.0
    %496 = vmatprep.subr.mxu0 0.0
    %497 = vmatpush2.msra.mxu0 0.0
    %498 = vmatprep.subr.mxu0 0.0
    %499 = vmatpush2.msra.mxu0 0.0
    %500 = vmatprep.subr.mxu0 0.0
    %501 = vmatpush2.msra.mxu0 0.0
    %502 = vmatprep.mubr.f32.mxu0 0.0
    %503 = vmatmul.mubr.f32.gmra.mxu0 %v424
    %v504 = vpop.f32.mrf.mxu0
    %v505 = vadd.f32 0.0, %v504
    %v506 = vpop.f32.mrf.mxu0
    %v507 = vadd.f32 0.0, %v506
    %508 = vmatprep.mubr.f32.mxu0 0.0
    %509 = vmatmul.mubr.f32.gmra.mxu0 %v427
    %v510 = vpop.f32.mrf.mxu0
    %v511 = vadd.f32 0.0, %v510
    %v512 = vpop.f32.mrf.mxu0
    %v513 = vadd.f32 0.0, %v512
    %514 = vmatprep.mubr.f32.mxu0 0.0
    %515 = vmatmul.mubr.f32.gmra.mxu0 %v430
    %v516 = vpop.f32.mrf.mxu0
    %v517 = vadd.f32 0.0, %v516
    %v518 = vpop.f32.mrf.mxu0
    %v519 = vadd.f32 0.0, %v518
    %520 = vmatprep.mubr.f32.mxu0 0.0
    %521 = vmatmul.mubr.f32.gmra.mxu0 %v433
    %v522 = vpop.f32.mrf.mxu0
    %v523 = vadd.f32 0.0, %v522
    %v524 = vpop.f32.mrf.mxu0
    %v525 = vadd.f32 0.0, %v524
    %526 = vmatprep.mubr.f32.mxu0 0.0
    %527 = vmatmul.mubr.f32.gmra.mxu0 %v436
    %v528 = vpop.f32.mrf.mxu0
    %v529 = vadd.f32 0.0, %v528
    %v530 = vpop.f32.mrf.mxu0
    %v531 = vadd.f32 0.0, %v530
    %532 = vdwg.mxu0
    %v533 = vld [vmem:[%s6] sm:$0xff]
    %v534 = vld [vmem:[%s6 + $0x8] sm:$0xff]
    %v535 = vld [vmem:[%s13] sm:$0xff]
    %v536 = vld [vmem:[%s13 + $0x8] sm:$0xff]
    %s537 = scalar_lea.vmem %s13, 16
    %v538 = vld [vmem:[%s537] sm:$0xff]
    %v539 = vld [vmem:[%s537 + $0x8] sm:$0xff]
    %v540 = vadd.f32 %v505, %v507
    %541 = vadd.xlane.f32.xlu0 %v540
    %v542 = vpop.xlane.xlu0 %541
    %v543 = vadd.f32 %v511, %v513
    %544 = vadd.xlane.f32.xlu0 %v543
    %v545 = vpop.xlane.xlu0 %544
    %v546 = vmul.f32 %v505, %v505
    %v547 = vmul.f32 %v507, %v507
    %v548 = vmul.f32 %v511, %v511
    %v549 = vmul.f32 %v513, %v513
    %v550 = vadd.f32 %v546, %v547
    %551 = vadd.xlane.f32.xlu0 %v550
    %v552 = vpop.xlane.xlu0 %551
    %v553 = vadd.f32 %v548, %v549
    %554 = vadd.xlane.f32.xlu0 %v553
    %v555 = vpop.xlane.xlu0 %554
    %vm556 = vcmask 130048
    %v558 = vsel %vm556, %v533, 0
    %v561 = vsel %vm556, %v534, 0
    %563 = vmatprep.subr.mxu0 0.0
    %564 = vmatpush1.msra.mxu0 0.0
    %565 = vmatprep.subr.mxu0 0.0
    %566 = vmatpush1.msra.mxu0 0.0
    %567 = vmatprep.subr.mxu0 0.0
    %568 = vmatpush1.msra.mxu0 0.0
    %569 = vmatprep.subr.mxu0 0.0
    %570 = vmatpush1.msra.mxu0 0.0
    %571 = vmatprep.subr.mxu0 0.0
    %572 = vmatpush1.msra.mxu0 0.0
    %573 = vmatprep.subr.mxu0 0.0
    %574 = vmatpush1.msra.mxu0 0.0
    %575 = vmatprep.subr.mxu0 0.0
    %576 = vmatpush1.msra.mxu0 0.0
    %577 = vmatprep.subr.mxu0 0.0
    %578 = vmatpush1.msra.mxu0 0.0
    %579 = vmatprep.subr.mxu0 0.0
    %580 = vmatpush1.msra.mxu0 0.0
    %581 = vmatprep.subr.mxu0 0.0
    %582 = vmatpush1.msra.mxu0 0.0
    %583 = vmatprep.subr.mxu0 0.0
    %584 = vmatpush1.msra.mxu0 0.0
    %585 = vmatprep.subr.mxu0 0.0
    %586 = vmatpush1.msra.mxu0 0.0
    %587 = vmatprep.subr.mxu0 0.0
    %588 = vmatpush1.msra.mxu0 0.0
    %589 = vmatprep.subr.mxu0 0.0
    %590 = vmatpush1.msra.mxu0 0.0
    %591 = vmatprep.subr.mxu0 0.0
    %592 = vmatpush1.msra.mxu0 %v545
    %593 = vmatprep.subr.mxu0 0.0
    %594 = vmatpush1.msra.mxu0 %v542
    %595 = vmatprep.subr.mxu0 0.0
    %596 = vmatpush2.msra.mxu0 0.0
    %597 = vmatprep.subr.mxu0 0.0
    %598 = vmatpush2.msra.mxu0 0.0
    %599 = vmatprep.subr.mxu0 0.0
    %600 = vmatpush2.msra.mxu0 0.0
    %601 = vmatprep.subr.mxu0 0.0
    %602 = vmatpush2.msra.mxu0 0.0
    %603 = vmatprep.subr.mxu0 0.0
    %604 = vmatpush2.msra.mxu0 0.0
    %605 = vmatprep.subr.mxu0 0.0
    %606 = vmatpush2.msra.mxu0 0.0
    %607 = vmatprep.subr.mxu0 0.0
    %608 = vmatpush2.msra.mxu0 0.0
    %609 = vmatprep.subr.mxu0 0.0
    %610 = vmatpush2.msra.mxu0 0.0
    %611 = vmatprep.subr.mxu0 0.0
    %612 = vmatpush2.msra.mxu0 0.0
    %613 = vmatprep.subr.mxu0 0.0
    %614 = vmatpush2.msra.mxu0 0.0
    %615 = vmatprep.subr.mxu0 0.0
    %616 = vmatpush2.msra.mxu0 0.0
    %617 = vmatprep.subr.mxu0 0.0
    %618 = vmatpush2.msra.mxu0 0.0
    %619 = vmatprep.subr.mxu0 0.0
    %620 = vmatpush2.msra.mxu0 0.0
    %621 = vmatprep.subr.mxu0 0.0
    %622 = vmatpush2.msra.mxu0 0.0
    %623 = vmatprep.subr.mxu0 0.0
    %624 = vmatpush2.msra.mxu0 0.0
    %625 = vmatprep.subr.mxu0 0.0
    %626 = vmatpush2.msra.mxu0 0.0
    %627 = vmatprep.mubr.f32.mxu0 0.0
    %628 = vmatmul.mubr.f32.gmra.mxu0 %v558
    %v629 = vpop.f32.mrf.mxu0
    %v630 = vadd.f32 0.0, %v629
    %v631 = vpop.f32.mrf.mxu0
    %632 = vmatprep.mubr.f32.mxu0 0.0
    %633 = vmatmul.mubr.f32.gmra.mxu0 %v561
    %v634 = vpop.f32.mrf.mxu0
    %v635 = vadd.f32 0.0, %v634
    %v636 = vpop.f32.mrf.mxu0
    %637 = vdwg.mxu0
    %v638 = vmul.f32 %v630, 0.001953125
    %v639 = vmul.f32 %v635, 0.001953125
    %640 = vmatprep.subr.mxu0 0.0
    %641 = vmatpush1.msra.mxu0 0.0
    %642 = vmatprep.subr.mxu0 0.0
    %643 = vmatpush1.msra.mxu0 0.0
    %644 = vmatprep.subr.mxu0 0.0
    %645 = vmatpush1.msra.mxu0 0.0
    %646 = vmatprep.subr.mxu0 0.0
    %647 = vmatpush1.msra.mxu0 0.0
    %648 = vmatprep.subr.mxu0 0.0
    %649 = vmatpush1.msra.mxu0 0.0
    %650 = vmatprep.subr.mxu0 0.0
    %651 = vmatpush1.msra.mxu0 0.0
    %652 = vmatprep.subr.mxu0 0.0
    %653 = vmatpush1.msra.mxu0 0.0
    %654 = vmatprep.subr.mxu0 0.0
    %655 = vmatpush1.msra.mxu0 0.0
    %656 = vmatprep.subr.mxu0 0.0
    %657 = vmatpush1.msra.mxu0 0.0
    %658 = vmatprep.subr.mxu0 0.0
    %659 = vmatpush1.msra.mxu0 0.0
    %660 = vmatprep.subr.mxu0 0.0
    %661 = vmatpush1.msra.mxu0 0.0
    %662 = vmatprep.subr.mxu0 0.0
    %663 = vmatpush1.msra.mxu0 0.0
    %664 = vmatprep.subr.mxu0 0.0
    %665 = vmatpush1.msra.mxu0 0.0
    %666 = vmatprep.subr.mxu0 0.0
    %667 = vmatpush1.msra.mxu0 0.0
    %668 = vmatprep.subr.mxu0 0.0
    %669 = vmatpush1.msra.mxu0 %v555
    %670 = vmatprep.subr.mxu0 0.0
    %671 = vmatpush1.msra.mxu0 %v552
    %672 = vmatprep.subr.mxu0 0.0
    %673 = vmatpush2.msra.mxu0 0.0
    %674 = vmatprep.subr.mxu0 0.0
    %675 = vmatpush2.msra.mxu0 0.0
    %676 = vmatprep.subr.mxu0 0.0
    %677 = vmatpush2.msra.mxu0 0.0
    %678 = vmatprep.subr.mxu0 0.0
    %679 = vmatpush2.msra.mxu0 0.0
    %680 = vmatprep.subr.mxu0 0.0
    %681 = vmatpush2.msra.mxu0 0.0
    %682 = vmatprep.subr.mxu0 0.0
    %683 = vmatpush2.msra.mxu0 0.0
    %684 = vmatprep.subr.mxu0 0.0
    %685 = vmatpush2.msra.mxu0 0.0
    %686 = vmatprep.subr.mxu0 0.0
    %687 = vmatpush2.msra.mxu0 0.0
    %688 = vmatprep.subr.mxu0 0.0
    %689 = vmatpush2.msra.mxu0 0.0
    %690 = vmatprep.subr.mxu0 0.0
    %691 = vmatpush2.msra.mxu0 0.0
    %692 = vmatprep.subr.mxu0 0.0
    %693 = vmatpush2.msra.mxu0 0.0
    %694 = vmatprep.subr.mxu0 0.0
    %695 = vmatpush2.msra.mxu0 0.0
    %696 = vmatprep.subr.mxu0 0.0
    %697 = vmatpush2.msra.mxu0 0.0
    %698 = vmatprep.subr.mxu0 0.0
    %699 = vmatpush2.msra.mxu0 0.0
    %700 = vmatprep.subr.mxu0 0.0
    %701 = vmatpush2.msra.mxu0 0.0
    %702 = vmatprep.subr.mxu0 0.0
    %703 = vmatpush2.msra.mxu0 0.0
    %704 = vmatprep.mubr.f32.mxu0 0.0
    %705 = vmatmul.mubr.f32.gmra.mxu0 %v558
    %v706 = vpop.f32.mrf.mxu0
    %v707 = vadd.f32 0.0, %v706
    %v708 = vpop.f32.mrf.mxu0
    %709 = vmatprep.mubr.f32.mxu0 0.0
    %710 = vmatmul.mubr.f32.gmra.mxu0 %v561
    %v711 = vpop.f32.mrf.mxu0
    %v712 = vadd.f32 0.0, %v711
    %v713 = vpop.f32.mrf.mxu0
    %714 = vdwg.mxu0
    %v715 = vmul.f32 %v707, 0.001953125
    %v716 = vmul.f32 %v712, 0.001953125
    %v717 = vmul.f32 %v638, %v638
    %v718 = vmul.f32 %v639, %v639
    %v719 = vsub.f32 %v715, %v717
    %v720 = vsub.f32 %v716, %v718
    %v721 = vadd.f32 %v719, 1e-05
    %v722 = vadd.f32 %v720, 1e-05
    %v723 = vrsqrt.pop %v721
    %v724 = vrsqrt.pop %v722
    %v725 = vmul.f32 %v723, %v535
    %v726 = vmul.f32 %v724, %v536
    %728 = vset.pattern.permute.xlu0 0
    %729 = vperm.xlu0 %728, %v638
    %v730 = vpop.permute.xlu0 %729
    %733 = vset.pattern.permute.xlu0 0
    %734 = vperm.xlu0 %733, %v639
    %v735 = vpop.permute.xlu0 %734
    %v737 = vsub.f32 %v505, %v730
    %v738 = vsub.f32 %v507, %v730
    %v739 = vsub.f32 %v511, %v735
    %v740 = vsub.f32 %v513, %v735
    %742 = vset.pattern.permute.xlu0 0
    %743 = vperm.xlu0 %742, %v725
    %v744 = vpop.permute.xlu0 %743
    %747 = vset.pattern.permute.xlu0 0
    %748 = vperm.xlu0 %747, %v726
    %v749 = vpop.permute.xlu0 %748
    %v751 = vmul.f32 %v737, %v744
    %v752 = vmul.f32 %v738, %v744
    %v753 = vmul.f32 %v739, %v749
    %v754 = vmul.f32 %v740, %v749
    %756 = vset.pattern.permute.xlu0 0
    %757 = vperm.xlu0 %756, %v538
    %v758 = vpop.permute.xlu0 %757
    %761 = vset.pattern.permute.xlu0 0
    %762 = vperm.xlu0 %761, %v539
    %v763 = vpop.permute.xlu0 %762
    %v765 = vadd.f32 %v751, %v758
    %v766 = vadd.f32 %v752, %v758
    %v767 = vadd.f32 %v753, %v763
    %v768 = vadd.f32 %v754, %v763
    %v769 = vmax.f32 %v765, 0.0
    %v770 = vmax.f32 %v766, 0.0
    %v771 = vmax.f32 %v767, 0.0
    %v772 = vmax.f32 %v768, 0.0
    %773 = vst [vmem:[%s21] sm:$0xff] %v769
    %774 = vst [vmem:[%s21 + $0x8] sm:$0xff] %v770
    %775 = vst [vmem:[%s21 + $0x10] sm:$0xff] %v771
    %776 = vst [vmem:[%s21 + $0x18] sm:$0xff] %v772
    %v777 = vld [vmem:[%s7] sm:$0xff]
    %v778 = vld [vmem:[%s10] sm:$0xff]
    %s779 = scalar_lea.vmem %s10, 8
    %v780 = vld [vmem:[%s779] sm:$0xff]
    %v781 = vadd.f32 %v529, %v531
    %782 = vadd.xlane.f32.xlu0 %v781
    %v783 = vpop.xlane.xlu0 %782
    %v784 = vmul.f32 %v529, %v529
    %v785 = vmul.f32 %v531, %v531
    %v786 = vadd.f32 %v784, %v785
    %787 = vadd.xlane.f32.xlu0 %v786
    %v788 = vpop.xlane.xlu0 %787
    %vm789 = vcmask 64512
    %v791 = vsel %vm789, %v777, 0
    %793 = vmatprep.subr.mxu0 0.0
    %794 = vmatpush1.msra.mxu0 0.0
    %795 = vmatprep.subr.mxu0 0.0
    %796 = vmatpush1.msra.mxu0 0.0
    %797 = vmatprep.subr.mxu0 0.0
    %798 = vmatpush1.msra.mxu0 0.0
    %799 = vmatprep.subr.mxu0 0.0
    %800 = vmatpush1.msra.mxu0 0.0
    %801 = vmatprep.subr.mxu0 0.0
    %802 = vmatpush1.msra.mxu0 0.0
    %803 = vmatprep.subr.mxu0 0.0
    %804 = vmatpush1.msra.mxu0 0.0
    %805 = vmatprep.subr.mxu0 0.0
    %806 = vmatpush1.msra.mxu0 0.0
    %807 = vmatprep.subr.mxu0 0.0
    %808 = vmatpush1.msra.mxu0 0.0
    %809 = vmatprep.subr.mxu0 0.0
    %810 = vmatpush1.msra.mxu0 0.0
    %811 = vmatprep.subr.mxu0 0.0
    %812 = vmatpush1.msra.mxu0 0.0
    %813 = vmatprep.subr.mxu0 0.0
    %814 = vmatpush1.msra.mxu0 0.0
    %815 = vmatprep.subr.mxu0 0.0
    %816 = vmatpush1.msra.mxu0 0.0
    %817 = vmatprep.subr.mxu0 0.0
    %818 = vmatpush1.msra.mxu0 0.0
    %819 = vmatprep.subr.mxu0 0.0
    %820 = vmatpush1.msra.mxu0 0.0
    %821 = vmatprep.subr.mxu0 0.0
    %822 = vmatpush1.msra.mxu0 0.0
    %823 = vmatprep.subr.mxu0 0.0
    %824 = vmatpush1.msra.mxu0 %v783
    %825 = vmatprep.subr.mxu0 0.0
    %826 = vmatpush2.msra.mxu0 0.0
    %827 = vmatprep.subr.mxu0 0.0
    %828 = vmatpush2.msra.mxu0 0.0
    %829 = vmatprep.subr.mxu0 0.0
    %830 = vmatpush2.msra.mxu0 0.0
    %831 = vmatprep.subr.mxu0 0.0
    %832 = vmatpush2.msra.mxu0 0.0
    %833 = vmatprep.subr.mxu0 0.0
    %834 = vmatpush2.msra.mxu0 0.0
    %835 = vmatprep.subr.mxu0 0.0
    %836 = vmatpush2.msra.mxu0 0.0
    %837 = vmatprep.subr.mxu0 0.0
    %838 = vmatpush2.msra.mxu0 0.0
    %839 = vmatprep.subr.mxu0 0.0
    %840 = vmatpush2.msra.mxu0 0.0
    %841 = vmatprep.subr.mxu0 0.0
    %842 = vmatpush2.msra.mxu0 0.0
    %843 = vmatprep.subr.mxu0 0.0
    %844 = vmatpush2.msra.mxu0 0.0
    %845 = vmatprep.subr.mxu0 0.0
    %846 = vmatpush2.msra.mxu0 0.0
    %847 = vmatprep.subr.mxu0 0.0
    %848 = vmatpush2.msra.mxu0 0.0
    %849 = vmatprep.subr.mxu0 0.0
    %850 = vmatpush2.msra.mxu0 0.0
    %851 = vmatprep.subr.mxu0 0.0
    %852 = vmatpush2.msra.mxu0 0.0
    %853 = vmatprep.subr.mxu0 0.0
    %854 = vmatpush2.msra.mxu0 0.0
    %855 = vmatprep.subr.mxu0 0.0
    %856 = vmatpush2.msra.mxu0 0.0
    %857 = vmatprep.mubr.f32.mxu0 0.0
    %858 = vmatmul.mubr.f32.gmra.mxu0 %v791
    %v859 = vpop.f32.mrf.mxu0
    %v860 = vadd.f32 0.0, %v859
    %v861 = vpop.f32.mrf.mxu0
    %862 = vdwg.mxu0
    %v863 = vmul.f32 %v860, 0.001953125
    %864 = vmatprep.subr.mxu0 0.0
    %865 = vmatpush1.msra.mxu0 0.0
    %866 = vmatprep.subr.mxu0 0.0
    %867 = vmatpush1.msra.mxu0 0.0
    %868 = vmatprep.subr.mxu0 0.0
    %869 = vmatpush1.msra.mxu0 0.0
    %870 = vmatprep.subr.mxu0 0.0
    %871 = vmatpush1.msra.mxu0 0.0
    %872 = vmatprep.subr.mxu0 0.0
    %873 = vmatpush1.msra.mxu0 0.0
    %874 = vmatprep.subr.mxu0 0.0
    %875 = vmatpush1.msra.mxu0 0.0
    %876 = vmatprep.subr.mxu0 0.0
    %877 = vmatpush1.msra.mxu0 0.0
    %878 = vmatprep.subr.mxu0 0.0
    %879 = vmatpush1.msra.mxu0 0.0
    %880 = vmatprep.subr.mxu0 0.0
    %881 = vmatpush1.msra.mxu0 0.0
    %882 = vmatprep.subr.mxu0 0.0
    %883 = vmatpush1.msra.mxu0 0.0
    %884 = vmatprep.subr.mxu0 0.0
    %885 = vmatpush1.msra.mxu0 0.0
    %886 = vmatprep.subr.mxu0 0.0
    %887 = vmatpush1.msra.mxu0 0.0
    %888 = vmatprep.subr.mxu0 0.0
    %889 = vmatpush1.msra.mxu0 0.0
    %890 = vmatprep.subr.mxu0 0.0
    %891 = vmatpush1.msra.mxu0 0.0
    %892 = vmatprep.subr.mxu0 0.0
    %893 = vmatpush1.msra.mxu0 0.0
    %894 = vmatprep.subr.mxu0 0.0
    %895 = vmatpush1.msra.mxu0 %v788
    %896 = vmatprep.subr.mxu0 0.0
    %897 = vmatpush2.msra.mxu0 0.0
    %898 = vmatprep.subr.mxu0 0.0
    %899 = vmatpush2.msra.mxu0 0.0
    %900 = vmatprep.subr.mxu0 0.0
    %901 = vmatpush2.msra.mxu0 0.0
    %902 = vmatprep.subr.mxu0 0.0
    %903 = vmatpush2.msra.mxu0 0.0
    %904 = vmatprep.subr.mxu0 0.0
    %905 = vmatpush2.msra.mxu0 0.0
    %906 = vmatprep.subr.mxu0 0.0
    %907 = vmatpush2.msra.mxu0 0.0
    %908 = vmatprep.subr.mxu0 0.0
    %909 = vmatpush2.msra.mxu0 0.0
    %910 = vmatprep.subr.mxu0 0.0
    %911 = vmatpush2.msra.mxu0 0.0
    %912 = vmatprep.subr.mxu0 0.0
    %913 = vmatpush2.msra.mxu0 0.0
    %914 = vmatprep.subr.mxu0 0.0
    %915 = vmatpush2.msra.mxu0 0.0
    %916 = vmatprep.subr.mxu0 0.0
    %917 = vmatpush2.msra.mxu0 0.0
    %918 = vmatprep.subr.mxu0 0.0
    %919 = vmatpush2.msra.mxu0 0.0
    %920 = vmatprep.subr.mxu0 0.0
    %921 = vmatpush2.msra.mxu0 0.0
    %922 = vmatprep.subr.mxu0 0.0
    %923 = vmatpush2.msra.mxu0 0.0
    %924 = vmatprep.subr.mxu0 0.0
    %925 = vmatpush2.msra.mxu0 0.0
    %926 = vmatprep.subr.mxu0 0.0
    %927 = vmatpush2.msra.mxu0 0.0
    %928 = vmatprep.mubr.f32.mxu0 0.0
    %929 = vmatmul.mubr.f32.gmra.mxu0 %v791
    %v930 = vpop.f32.mrf.mxu0
    %v931 = vadd.f32 0.0, %v930
    %v932 = vpop.f32.mrf.mxu0
    %933 = vdwg.mxu0
    %v934 = vmul.f32 %v931, 0.001953125
    %v935 = vmul.f32 %v863, %v863
    %v936 = vsub.f32 %v934, %v935
    %v937 = vadd.f32 %v936, 1e-05
    %v938 = vrsqrt.pop %v937
    %v939 = vmul.f32 %v938, %v778
    %941 = vset.pattern.permute.xlu0 0
    %942 = vperm.xlu0 %941, %v863
    %v943 = vpop.permute.xlu0 %942
    %v945 = vsub.f32 %v529, %v943
    %v946 = vsub.f32 %v531, %v943
    %948 = vset.pattern.permute.xlu0 0
    %949 = vperm.xlu0 %948, %v939
    %v950 = vpop.permute.xlu0 %949
    %v952 = vmul.f32 %v945, %v950
    %v953 = vmul.f32 %v946, %v950
    %955 = vset.pattern.permute.xlu0 0
    %956 = vperm.xlu0 %955, %v780
    %v957 = vpop.permute.xlu0 %956
    %v959 = vadd.f32 %v952, %v957
    %v960 = vadd.f32 %v953, %v957
    %v961 = vmax.f32 %v959, 0.0
    %v962 = vmax.f32 %v960, 0.0
    %s963 = smul.u32 8, 32
    %s964 = smul.u32 %s963, 4
    %s965 = sshll.u32 %s964, 4
    %966 = dma.done [#allocation8], %s965
    %v967 = vld [vmem:[#allocation2] sm:$0xff]
    %v968 = vld [vmem:[#allocation2 + $0x8] sm:$0xff]
    %v969 = vld [vmem:[#allocation2 + $0x10] sm:$0xff]
    %v970 = vld [vmem:[#allocation2 + $0x18] sm:$0xff]
    %v971 = vld [vmem:[#allocation2 + $0x20] sm:$0xff]
    %v972 = vld [vmem:[#allocation2 + $0x28] sm:$0xff]
    %v973 = vld [vmem:[#allocation2 + $0x30] sm:$0xff]
    %v974 = vld [vmem:[#allocation2 + $0x38] sm:$0xff]
    %v975 = vld [vmem:[#allocation2 + $0x40] sm:$0xff]
    %v976 = vld [vmem:[#allocation2 + $0x48] sm:$0xff]
    %v977 = vld [vmem:[#allocation2 + $0x50] sm:$0xff]
    %v978 = vld [vmem:[#allocation2 + $0x58] sm:$0xff]
    %v979 = vld [vmem:[#allocation2 + $0x60] sm:$0xff]
    %v980 = vld [vmem:[#allocation2 + $0x68] sm:$0xff]
    %v981 = vld [vmem:[#allocation2 + $0x70] sm:$0xff]
    %v982 = vld [vmem:[#allocation2 + $0x78] sm:$0xff]
    %v983 = vld [vmem:[#allocation2 + $0x80] sm:$0xff]
    %v984 = vld [vmem:[#allocation2 + $0x88] sm:$0xff]
    %v985 = vld [vmem:[#allocation2 + $0x90] sm:$0xff]
    %v986 = vld [vmem:[#allocation2 + $0x98] sm:$0xff]
    %v987 = vld [vmem:[#allocation2 + $0xa0] sm:$0xff]
    %v988 = vld [vmem:[#allocation2 + $0xa8] sm:$0xff]
    %v989 = vld [vmem:[#allocation2 + $0xb0] sm:$0xff]
    %v990 = vld [vmem:[#allocation2 + $0xb8] sm:$0xff]
    %v991 = vld [vmem:[#allocation2 + $0xc0] sm:$0xff]
    %v992 = vld [vmem:[#allocation2 + $0xc8] sm:$0xff]
    %v993 = vld [vmem:[#allocation2 + $0xd0] sm:$0xff]
    %v994 = vld [vmem:[#allocation2 + $0xd8] sm:$0xff]
    %v995 = vld [vmem:[#allocation2 + $0xe0] sm:$0xff]
    %v996 = vld [vmem:[#allocation2 + $0xe8] sm:$0xff]
    %v997 = vld [vmem:[#allocation2 + $0xf0] sm:$0xff]
    %v998 = vld [vmem:[#allocation2 + $0xf8] sm:$0xff]
    %v999 = vld [vmem:[#allocation2 + $0x100] sm:$0xff]
    %v1000 = vld [vmem:[#allocation2 + $0x108] sm:$0xff]
    %v1001 = vld [vmem:[#allocation2 + $0x110] sm:$0xff]
    %v1002 = vld [vmem:[#allocation2 + $0x118] sm:$0xff]
    %v1003 = vld [vmem:[#allocation2 + $0x120] sm:$0xff]
    %v1004 = vld [vmem:[#allocation2 + $0x128] sm:$0xff]
    %v1005 = vld [vmem:[#allocation2 + $0x130] sm:$0xff]
    %v1006 = vld [vmem:[#allocation2 + $0x138] sm:$0xff]
    %v1007 = vld [vmem:[#allocation2 + $0x140] sm:$0xff]
    %v1008 = vld [vmem:[#allocation2 + $0x148] sm:$0xff]
    %v1009 = vld [vmem:[#allocation2 + $0x150] sm:$0xff]
    %v1010 = vld [vmem:[#allocation2 + $0x158] sm:$0xff]
    %v1011 = vld [vmem:[#allocation2 + $0x160] sm:$0xff]
    %v1012 = vld [vmem:[#allocation2 + $0x168] sm:$0xff]
    %v1013 = vld [vmem:[#allocation2 + $0x170] sm:$0xff]
    %v1014 = vld [vmem:[#allocation2 + $0x178] sm:$0xff]
    %v1015 = vld [vmem:[#allocation2 + $0x180] sm:$0xff]
    %v1016 = vld [vmem:[#allocation2 + $0x188] sm:$0xff]
    %v1017 = vld [vmem:[#allocation2 + $0x190] sm:$0xff]
    %v1018 = vld [vmem:[#allocation2 + $0x198] sm:$0xff]
    %v1019 = vld [vmem:[#allocation2 + $0x1a0] sm:$0xff]
    %v1020 = vld [vmem:[#allocation2 + $0x1a8] sm:$0xff]
    %v1021 = vld [vmem:[#allocation2 + $0x1b0] sm:$0xff]
    %v1022 = vld [vmem:[#allocation2 + $0x1b8] sm:$0xff]
    %v1023 = vld [vmem:[#allocation2 + $0x1c0] sm:$0xff]
    %v1024 = vld [vmem:[#allocation2 + $0x1c8] sm:$0xff]
    %v1025 = vld [vmem:[#allocation2 + $0x1d0] sm:$0xff]
    %v1026 = vld [vmem:[#allocation2 + $0x1d8] sm:$0xff]
    %v1027 = vld [vmem:[#allocation2 + $0x1e0] sm:$0xff]
    %v1028 = vld [vmem:[#allocation2 + $0x1e8] sm:$0xff]
    %v1029 = vld [vmem:[#allocation2 + $0x1f0] sm:$0xff]
    %v1030 = vld [vmem:[#allocation2 + $0x1f8] sm:$0xff]
    %v1031 = vld [vmem:[#allocation2 + $0x200] sm:$0xff]
    %v1032 = vld [vmem:[#allocation2 + $0x208] sm:$0xff]
    %v1033 = vld [vmem:[#allocation2 + $0x210] sm:$0xff]
    %v1034 = vld [vmem:[#allocation2 + $0x218] sm:$0xff]
    %v1035 = vld [vmem:[#allocation2 + $0x220] sm:$0xff]
    %v1036 = vld [vmem:[#allocation2 + $0x228] sm:$0xff]
    %v1037 = vld [vmem:[#allocation2 + $0x230] sm:$0xff]
    %v1038 = vld [vmem:[#allocation2 + $0x238] sm:$0xff]
    %v1039 = vld [vmem:[#allocation2 + $0x240] sm:$0xff]
    %v1040 = vld [vmem:[#allocation2 + $0x248] sm:$0xff]
    %v1041 = vld [vmem:[#allocation2 + $0x250] sm:$0xff]
    %v1042 = vld [vmem:[#allocation2 + $0x258] sm:$0xff]
    %v1043 = vld [vmem:[#allocation2 + $0x260] sm:$0xff]
    %v1044 = vld [vmem:[#allocation2 + $0x268] sm:$0xff]
    %v1045 = vld [vmem:[#allocation2 + $0x270] sm:$0xff]
    %v1046 = vld [vmem:[#allocation2 + $0x278] sm:$0xff]
    %v1047 = vld [vmem:[#allocation2 + $0x280] sm:$0xff]
    %v1048 = vld [vmem:[#allocation2 + $0x288] sm:$0xff]
    %v1049 = vld [vmem:[#allocation2 + $0x290] sm:$0xff]
    %v1050 = vld [vmem:[#allocation2 + $0x298] sm:$0xff]
    %v1051 = vld [vmem:[#allocation2 + $0x2a0] sm:$0xff]
    %v1052 = vld [vmem:[#allocation2 + $0x2a8] sm:$0xff]
    %v1053 = vld [vmem:[#allocation2 + $0x2b0] sm:$0xff]
    %v1054 = vld [vmem:[#allocation2 + $0x2b8] sm:$0xff]
    %v1055 = vld [vmem:[#allocation2 + $0x2c0] sm:$0xff]
    %v1056 = vld [vmem:[#allocation2 + $0x2c8] sm:$0xff]
    %v1057 = vld [vmem:[#allocation2 + $0x2d0] sm:$0xff]
    %v1058 = vld [vmem:[#allocation2 + $0x2d8] sm:$0xff]
    %v1059 = vld [vmem:[#allocation2 + $0x2e0] sm:$0xff]
    %v1060 = vld [vmem:[#allocation2 + $0x2e8] sm:$0xff]
    %v1061 = vld [vmem:[#allocation2 + $0x2f0] sm:$0xff]
    %v1062 = vld [vmem:[#allocation2 + $0x2f8] sm:$0xff]
    %v1063 = vld [vmem:[#allocation2 + $0x300] sm:$0xff]
    %v1064 = vld [vmem:[#allocation2 + $0x308] sm:$0xff]
    %v1065 = vld [vmem:[#allocation2 + $0x310] sm:$0xff]
    %v1066 = vld [vmem:[#allocation2 + $0x318] sm:$0xff]
    %v1067 = vld [vmem:[#allocation2 + $0x320] sm:$0xff]
    %v1068 = vld [vmem:[#allocation2 + $0x328] sm:$0xff]
    %v1069 = vld [vmem:[#allocation2 + $0x330] sm:$0xff]
    %v1070 = vld [vmem:[#allocation2 + $0x338] sm:$0xff]
    %v1071 = vld [vmem:[#allocation2 + $0x340] sm:$0xff]
    %v1072 = vld [vmem:[#allocation2 + $0x348] sm:$0xff]
    %v1073 = vld [vmem:[#allocation2 + $0x350] sm:$0xff]
    %v1074 = vld [vmem:[#allocation2 + $0x358] sm:$0xff]
    %v1075 = vld [vmem:[#allocation2 + $0x360] sm:$0xff]
    %v1076 = vld [vmem:[#allocation2 + $0x368] sm:$0xff]
    %v1077 = vld [vmem:[#allocation2 + $0x370] sm:$0xff]
    %v1078 = vld [vmem:[#allocation2 + $0x378] sm:$0xff]
    %v1079 = vld [vmem:[#allocation2 + $0x380] sm:$0xff]
    %v1080 = vld [vmem:[#allocation2 + $0x388] sm:$0xff]
    %v1081 = vld [vmem:[#allocation2 + $0x390] sm:$0xff]
    %v1082 = vld [vmem:[#allocation2 + $0x398] sm:$0xff]
    %v1083 = vld [vmem:[#allocation2 + $0x3a0] sm:$0xff]
    %v1084 = vld [vmem:[#allocation2 + $0x3a8] sm:$0xff]
    %v1085 = vld [vmem:[#allocation2 + $0x3b0] sm:$0xff]
    %v1086 = vld [vmem:[#allocation2 + $0x3b8] sm:$0xff]
    %v1087 = vld [vmem:[#allocation2 + $0x3c0] sm:$0xff]
    %v1088 = vld [vmem:[#allocation2 + $0x3c8] sm:$0xff]
    %v1089 = vld [vmem:[#allocation2 + $0x3d0] sm:$0xff]
    %v1090 = vld [vmem:[#allocation2 + $0x3d8] sm:$0xff]
    %v1091 = vld [vmem:[#allocation2 + $0x3e0] sm:$0xff]
    %v1092 = vld [vmem:[#allocation2 + $0x3e8] sm:$0xff]
    %v1093 = vld [vmem:[#allocation2 + $0x3f0] sm:$0xff]
    %v1094 = vld [vmem:[#allocation2 + $0x3f8] sm:$0xff]
    %1095 = vmatprep.subr.mxu0 %v1028
    %1096 = vmatpush1.msra.mxu0 %v1027
    %1097 = vmatprep.subr.mxu0 %v1024
    %1098 = vmatpush1.msra.mxu0 %v1023
    %1099 = vmatprep.subr.mxu0 %v1020
    %1100 = vmatpush1.msra.mxu0 %v1019
    %1101 = vmatprep.subr.mxu0 %v1016
    %1102 = vmatpush1.msra.mxu0 %v1015
    %1103 = vmatprep.subr.mxu0 %v1012
    %1104 = vmatpush1.msra.mxu0 %v1011
    %1105 = vmatprep.subr.mxu0 %v1008
    %1106 = vmatpush1.msra.mxu0 %v1007
    %1107 = vmatprep.subr.mxu0 %v1004
    %1108 = vmatpush1.msra.mxu0 %v1003
    %1109 = vmatprep.subr.mxu0 %v1000
    %1110 = vmatpush1.msra.mxu0 %v999
    %1111 = vmatprep.subr.mxu0 %v996
    %1112 = vmatpush1.msra.mxu0 %v995
    %1113 = vmatprep.subr.mxu0 %v992
    %1114 = vmatpush1.msra.mxu0 %v991
    %1115 = vmatprep.subr.mxu0 %v988
    %1116 = vmatpush1.msra.mxu0 %v987
    %1117 = vmatprep.subr.mxu0 %v984
    %1118 = vmatpush1.msra.mxu0 %v983
    %1119 = vmatprep.subr.mxu0 %v980
    %1120 = vmatpush1.msra.mxu0 %v979
    %1121 = vmatprep.subr.mxu0 %v976
    %1122 = vmatpush1.msra.mxu0 %v975
    %1123 = vmatprep.subr.mxu0 %v972
    %1124 = vmatpush1.msra.mxu0 %v971
    %1125 = vmatprep.subr.mxu0 %v968
    %1126 = vmatpush1.msra.mxu0 %v967
    %1127 = vmatprep.subr.mxu0 %v1092
    %1128 = vmatpush2.msra.mxu0 %v1091
    %1129 = vmatprep.subr.mxu0 %v1088
    %1130 = vmatpush2.msra.mxu0 %v1087
    %1131 = vmatprep.subr.mxu0 %v1084
    %1132 = vmatpush2.msra.mxu0 %v1083
    %1133 = vmatprep.subr.mxu0 %v1080
    %1134 = vmatpush2.msra.mxu0 %v1079
    %1135 = vmatprep.subr.mxu0 %v1076
    %1136 = vmatpush2.msra.mxu0 %v1075
    %1137 = vmatprep.subr.mxu0 %v1072
    %1138 = vmatpush2.msra.mxu0 %v1071
    %1139 = vmatprep.subr.mxu0 %v1068
    %1140 = vmatpush2.msra.mxu0 %v1067
    %1141 = vmatprep.subr.mxu0 %v1064
    %1142 = vmatpush2.msra.mxu0 %v1063
    %1143 = vmatprep.subr.mxu0 %v1060
    %1144 = vmatpush2.msra.mxu0 %v1059
    %1145 = vmatprep.subr.mxu0 %v1056
    %1146 = vmatpush2.msra.mxu0 %v1055
    %1147 = vmatprep.subr.mxu0 %v1052
    %1148 = vmatpush2.msra.mxu0 %v1051
    %1149 = vmatprep.subr.mxu0 %v1048
    %1150 = vmatpush2.msra.mxu0 %v1047
    %1151 = vmatprep.subr.mxu0 %v1044
    %1152 = vmatpush2.msra.mxu0 %v1043
    %1153 = vmatprep.subr.mxu0 %v1040
    %1154 = vmatpush2.msra.mxu0 %v1039
    %1155 = vmatprep.subr.mxu0 %v1036
    %1156 = vmatpush2.msra.mxu0 %v1035
    %1157 = vmatprep.subr.mxu0 %v1032
    %1158 = vmatpush2.msra.mxu0 %v1031
    %1159 = vmatprep.mubr.f32.mxu0 %v962
    %1160 = vmatmul.mubr.f32.gmra.mxu0 %v961
    %v1161 = vpop.f32.mrf.mxu0
    %v1162 = vadd.f32 0.0, %v1161
    %v1163 = vpop.f32.mrf.mxu0
    %v1164 = vadd.f32 0.0, %v1163
    %1165 = vdwg.mxu0
    %1166 = vmatprep.subr.mxu0 %v1030
    %1167 = vmatpush1.msra.mxu0 %v1029
    %1168 = vmatprep.subr.mxu0 %v1026
    %1169 = vmatpush1.msra.mxu0 %v1025
    %1170 = vmatprep.subr.mxu0 %v1022
    %1171 = vmatpush1.msra.mxu0 %v1021
    %1172 = vmatprep.subr.mxu0 %v1018
    %1173 = vmatpush1.msra.mxu0 %v1017
    %1174 = vmatprep.subr.mxu0 %v1014
    %1175 = vmatpush1.msra.mxu0 %v1013
    %1176 = vmatprep.subr.mxu0 %v1010
    %1177 = vmatpush1.msra.mxu0 %v1009
    %1178 = vmatprep.subr.mxu0 %v1006
    %1179 = vmatpush1.msra.mxu0 %v1005
    %1180 = vmatprep.subr.mxu0 %v1002
    %1181 = vmatpush1.msra.mxu0 %v1001
    %1182 = vmatprep.subr.mxu0 %v998
    %1183 = vmatpush1.msra.mxu0 %v997
    %1184 = vmatprep.subr.mxu0 %v994
    %1185 = vmatpush1.msra.mxu0 %v993
    %1186 = vmatprep.subr.mxu0 %v990
    %1187 = vmatpush1.msra.mxu0 %v989
    %1188 = vmatprep.subr.mxu0 %v986
    %1189 = vmatpush1.msra.mxu0 %v985
    %1190 = vmatprep.subr.mxu0 %v982
    %1191 = vmatpush1.msra.mxu0 %v981
    %1192 = vmatprep.subr.mxu0 %v978
    %1193 = vmatpush1.msra.mxu0 %v977
    %1194 = vmatprep.subr.mxu0 %v974
    %1195 = vmatpush1.msra.mxu0 %v973
    %1196 = vmatprep.subr.mxu0 %v970
    %1197 = vmatpush1.msra.mxu0 %v969
    %1198 = vmatprep.subr.mxu0 %v1094
    %1199 = vmatpush2.msra.mxu0 %v1093
    %1200 = vmatprep.subr.mxu0 %v1090
    %1201 = vmatpush2.msra.mxu0 %v1089
    %1202 = vmatprep.subr.mxu0 %v1086
    %1203 = vmatpush2.msra.mxu0 %v1085
    %1204 = vmatprep.subr.mxu0 %v1082
    %1205 = vmatpush2.msra.mxu0 %v1081
    %1206 = vmatprep.subr.mxu0 %v1078
    %1207 = vmatpush2.msra.mxu0 %v1077
    %1208 = vmatprep.subr.mxu0 %v1074
    %1209 = vmatpush2.msra.mxu0 %v1073
    %1210 = vmatprep.subr.mxu0 %v1070
    %1211 = vmatpush2.msra.mxu0 %v1069
    %1212 = vmatprep.subr.mxu0 %v1066
    %1213 = vmatpush2.msra.mxu0 %v1065
    %1214 = vmatprep.subr.mxu0 %v1062
    %1215 = vmatpush2.msra.mxu0 %v1061
    %1216 = vmatprep.subr.mxu0 %v1058
    %1217 = vmatpush2.msra.mxu0 %v1057
    %1218 = vmatprep.subr.mxu0 %v1054
    %1219 = vmatpush2.msra.mxu0 %v1053
    %1220 = vmatprep.subr.mxu0 %v1050
    %1221 = vmatpush2.msra.mxu0 %v1049
    %1222 = vmatprep.subr.mxu0 %v1046
    %1223 = vmatpush2.msra.mxu0 %v1045
    %1224 = vmatprep.subr.mxu0 %v1042
    %1225 = vmatpush2.msra.mxu0 %v1041
    %1226 = vmatprep.subr.mxu0 %v1038
    %1227 = vmatpush2.msra.mxu0 %v1037
    %1228 = vmatprep.subr.mxu0 %v1034
    %1229 = vmatpush2.msra.mxu0 %v1033
    %1230 = vmatprep.mubr.f32.mxu0 %v962
    %1231 = vmatmul.mubr.f32.gmra.mxu0 %v961
    %v1232 = vpop.f32.mrf.mxu0
    %v1233 = vadd.f32 0.0, %v1232
    %v1234 = vpop.f32.mrf.mxu0
    %v1235 = vadd.f32 0.0, %v1234
    %1236 = vdwg.mxu0
    %v1237 = vld [vmem:[%s3] sm:$0xff]
    %v1238 = vld [vmem:[%s3 + $0x8] sm:$0xff]
    %v1240 = vsel %vm556, %v1237, 0
    %v1243 = vsel %vm556, %v1238, 0
    %1245 = vmatprep.subr.mxu0 0.0
    %1246 = vmatpush1.msra.mxu0 0.0
    %1247 = vmatprep.subr.mxu0 0.0
    %1248 = vmatpush1.msra.mxu0 0.0
    %1249 = vmatprep.subr.mxu0 0.0
    %1250 = vmatpush1.msra.mxu0 0.0
    %1251 = vmatprep.subr.mxu0 0.0
    %1252 = vmatpush1.msra.mxu0 0.0
    %1253 = vmatprep.subr.mxu0 0.0
    %1254 = vmatpush1.msra.mxu0 0.0
    %1255 = vmatprep.subr.mxu0 0.0
    %1256 = vmatpush1.msra.mxu0 0.0
    %1257 = vmatprep.subr.mxu0 0.0
    %1258 = vmatpush1.msra.mxu0 0.0
    %1259 = vmatprep.subr.mxu0 0.0
    %1260 = vmatpush1.msra.mxu0 0.0
    %1261 = vmatprep.subr.mxu0 0.0
    %1262 = vmatpush1.msra.mxu0 0.0
    %1263 = vmatprep.subr.mxu0 0.0
    %1264 = vmatpush1.msra.mxu0 0.0
    %1265 = vmatprep.subr.mxu0 0.0
    %1266 = vmatpush1.msra.mxu0 0.0
    %1267 = vmatprep.subr.mxu0 0.0
    %1268 = vmatpush1.msra.mxu0 0.0
    %1269 = vmatprep.subr.mxu0 0.0
    %1270 = vmatpush1.msra.mxu0 0.0
    %1271 = vmatprep.subr.mxu0 0.0
    %1272 = vmatpush1.msra.mxu0 0.0
    %1273 = vmatprep.subr.mxu0 %v1235
    %1274 = vmatpush1.msra.mxu0 %v1233
    %1275 = vmatprep.subr.mxu0 %v1164
    %1276 = vmatpush1.msra.mxu0 %v1162
    %1277 = vmatprep.subr.mxu0 0.0
    %1278 = vmatpush2.msra.mxu0 0.0
    %1279 = vmatprep.subr.mxu0 0.0
    %1280 = vmatpush2.msra.mxu0 0.0
    %1281 = vmatprep.subr.mxu0 0.0
    %1282 = vmatpush2.msra.mxu0 0.0
    %1283 = vmatprep.subr.mxu0 0.0
    %1284 = vmatpush2.msra.mxu0 0.0
    %1285 = vmatprep.subr.mxu0 0.0
    %1286 = vmatpush2.msra.mxu0 0.0
    %1287 = vmatprep.subr.mxu0 0.0
    %1288 = vmatpush2.msra.mxu0 0.0
    %1289 = vmatprep.subr.mxu0 0.0
    %1290 = vmatpush2.msra.mxu0 0.0
    %1291 = vmatprep.subr.mxu0 0.0
    %1292 = vmatpush2.msra.mxu0 0.0
    %1293 = vmatprep.subr.mxu0 0.0
    %1294 = vmatpush2.msra.mxu0 0.0
    %1295 = vmatprep.subr.mxu0 0.0
    %1296 = vmatpush2.msra.mxu0 0.0
    %1297 = vmatprep.subr.mxu0 0.0
    %1298 = vmatpush2.msra.mxu0 0.0
    %1299 = vmatprep.subr.mxu0 0.0
    %1300 = vmatpush2.msra.mxu0 0.0
    %1301 = vmatprep.subr.mxu0 0.0
    %1302 = vmatpush2.msra.mxu0 0.0
    %1303 = vmatprep.subr.mxu0 0.0
    %1304 = vmatpush2.msra.mxu0 0.0
    %1305 = vmatprep.subr.mxu0 0.0
    %1306 = vmatpush2.msra.mxu0 0.0
    %1307 = vmatprep.subr.mxu0 0.0
    %1308 = vmatpush2.msra.mxu0 0.0
    %1309 = vmatprep.mubr.f32.mxu0 0.0
    %1310 = vmatmul.mubr.f32.gmra.mxu0 %v1240
    %v1311 = vpop.f32.mrf.mxu0
    %v1312 = vadd.f32 0.0, %v1311
    %v1313 = vpop.f32.mrf.mxu0
    %v1314 = vadd.f32 0.0, %v1313
    %1315 = vmatprep.mubr.f32.mxu0 0.0
    %1316 = vmatmul.mubr.f32.gmra.mxu0 %v1243
    %v1317 = vpop.f32.mrf.mxu0
    %v1318 = vadd.f32 0.0, %v1317
    %v1319 = vpop.f32.mrf.mxu0
    %v1320 = vadd.f32 0.0, %v1319
    %1321 = vdwg.mxu0
    %v1322 = vld [vmem:[#allocation11] sm:$0xff]
    %v1323 = vld [vmem:[#allocation11 + $0x8] sm:$0xff]
    %v1324 = vld [vmem:[%s11] sm:$0xff]
    %v1325 = vld [vmem:[%s11 + $0x8] sm:$0xff]
    %s1326 = scalar_lea.vmem %s11, 16
    %v1327 = vld [vmem:[%s1326] sm:$0xff]
    %v1328 = vld [vmem:[%s1326 + $0x8] sm:$0xff]
    %v1329 = vadd.f32 %v1312, %v1314
    %1330 = vadd.xlane.f32.xlu0 %v1329
    %v1331 = vpop.xlane.xlu0 %1330
    %v1332 = vadd.f32 %v1318, %v1320
    %1333 = vadd.xlane.f32.xlu0 %v1332
    %v1334 = vpop.xlane.xlu0 %1333
    %v1335 = vmul.f32 %v1312, %v1312
    %v1336 = vmul.f32 %v1314, %v1314
    %v1337 = vmul.f32 %v1318, %v1318
    %v1338 = vmul.f32 %v1320, %v1320
    %v1339 = vadd.f32 %v1335, %v1336
    %1340 = vadd.xlane.f32.xlu0 %v1339
    %v1341 = vpop.xlane.xlu0 %1340
    %v1342 = vadd.f32 %v1337, %v1338
    %1343 = vadd.xlane.f32.xlu0 %v1342
    %v1344 = vpop.xlane.xlu0 %1343
    %v1346 = vsel %vm556, %v1322, 0
    %v1349 = vsel %vm556, %v1323, 0
    %1351 = vmatprep.subr.mxu0 0.0
    %1352 = vmatpush1.msra.mxu0 0.0
    %1353 = vmatprep.subr.mxu0 0.0
    %1354 = vmatpush1.msra.mxu0 0.0
    %1355 = vmatprep.subr.mxu0 0.0
    %1356 = vmatpush1.msra.mxu0 0.0
    %1357 = vmatprep.subr.mxu0 0.0
    %1358 = vmatpush1.msra.mxu0 0.0
    %1359 = vmatprep.subr.mxu0 0.0
    %1360 = vmatpush1.msra.mxu0 0.0
    %1361 = vmatprep.subr.mxu0 0.0
    %1362 = vmatpush1.msra.mxu0 0.0
    %1363 = vmatprep.subr.mxu0 0.0
    %1364 = vmatpush1.msra.mxu0 0.0
    %1365 = vmatprep.subr.mxu0 0.0
    %1366 = vmatpush1.msra.mxu0 0.0
    %1367 = vmatprep.subr.mxu0 0.0
    %1368 = vmatpush1.msra.mxu0 0.0
    %1369 = vmatprep.subr.mxu0 0.0
    %1370 = vmatpush1.msra.mxu0 0.0
    %1371 = vmatprep.subr.mxu0 0.0
    %1372 = vmatpush1.msra.mxu0 0.0
    %1373 = vmatprep.subr.mxu0 0.0
    %1374 = vmatpush1.msra.mxu0 0.0
    %1375 = vmatprep.subr.mxu0 0.0
    %1376 = vmatpush1.msra.mxu0 0.0
    %1377 = vmatprep.subr.mxu0 0.0
    %1378 = vmatpush1.msra.mxu0 0.0
    %1379 = vmatprep.subr.mxu0 0.0
    %1380 = vmatpush1.msra.mxu0 %v1334
    %1381 = vmatprep.subr.mxu0 0.0
    %1382 = vmatpush1.msra.mxu0 %v1331
    %1383 = vmatprep.subr.mxu0 0.0
    %1384 = vmatpush2.msra.mxu0 0.0
    %1385 = vmatprep.subr.mxu0 0.0
    %1386 = vmatpush2.msra.mxu0 0.0
    %1387 = vmatprep.subr.mxu0 0.0
    %1388 = vmatpush2.msra.mxu0 0.0
    %1389 = vmatprep.subr.mxu0 0.0
    %1390 = vmatpush2.msra.mxu0 0.0
    %1391 = vmatprep.subr.mxu0 0.0
    %1392 = vmatpush2.msra.mxu0 0.0
    %1393 = vmatprep.subr.mxu0 0.0
    %1394 = vmatpush2.msra.mxu0 0.0
    %1395 = vmatprep.subr.mxu0 0.0
    %1396 = vmatpush2.msra.mxu0 0.0
    %1397 = vmatprep.subr.mxu0 0.0
    %1398 = vmatpush2.msra.mxu0 0.0
    %1399 = vmatprep.subr.mxu0 0.0
    %1400 = vmatpush2.msra.mxu0 0.0
    %1401 = vmatprep.subr.mxu0 0.0
    %1402 = vmatpush2.msra.mxu0 0.0
    %1403 = vmatprep.subr.mxu0 0.0
    %1404 = vmatpush2.msra.mxu0 0.0
    %1405 = vmatprep.subr.mxu0 0.0
    %1406 = vmatpush2.msra.mxu0 0.0
    %1407 = vmatprep.subr.mxu0 0.0
    %1408 = vmatpush2.msra.mxu0 0.0
    %1409 = vmatprep.subr.mxu0 0.0
    %1410 = vmatpush2.msra.mxu0 0.0
    %1411 = vmatprep.subr.mxu0 0.0
    %1412 = vmatpush2.msra.mxu0 0.0
    %1413 = vmatprep.subr.mxu0 0.0
    %1414 = vmatpush2.msra.mxu0 0.0
    %1415 = vmatprep.mubr.f32.mxu0 0.0
    %1416 = vmatmul.mubr.f32.gmra.mxu0 %v1346
    %v1417 = vpop.f32.mrf.mxu0
    %v1418 = vadd.f32 0.0, %v1417
    %v1419 = vpop.f32.mrf.mxu0
    %1420 = vmatprep.mubr.f32.mxu0 0.0
    %1421 = vmatmul.mubr.f32.gmra.mxu0 %v1349
    %v1422 = vpop.f32.mrf.mxu0
    %v1423 = vadd.f32 0.0, %v1422
    %v1424 = vpop.f32.mrf.mxu0
    %1425 = vdwg.mxu0
    %v1426 = vmul.f32 %v1418, 0.0034722222
    %v1427 = vmul.f32 %v1423, 0.0034722222
    %1428 = vmatprep.subr.mxu0 0.0
    %1429 = vmatpush1.msra.mxu0 0.0
    %1430 = vmatprep.subr.mxu0 0.0
    %1431 = vmatpush1.msra.mxu0 0.0
    %1432 = vmatprep.subr.mxu0 0.0
    %1433 = vmatpush1.msra.mxu0 0.0
    %1434 = vmatprep.subr.mxu0 0.0
    %1435 = vmatpush1.msra.mxu0 0.0
    %1436 = vmatprep.subr.mxu0 0.0
    %1437 = vmatpush1.msra.mxu0 0.0
    %1438 = vmatprep.subr.mxu0 0.0
    %1439 = vmatpush1.msra.mxu0 0.0
    %1440 = vmatprep.subr.mxu0 0.0
    %1441 = vmatpush1.msra.mxu0 0.0
    %1442 = vmatprep.subr.mxu0 0.0
    %1443 = vmatpush1.msra.mxu0 0.0
    %1444 = vmatprep.subr.mxu0 0.0
    %1445 = vmatpush1.msra.mxu0 0.0
    %1446 = vmatprep.subr.mxu0 0.0
    %1447 = vmatpush1.msra.mxu0 0.0
    %1448 = vmatprep.subr.mxu0 0.0
    %1449 = vmatpush1.msra.mxu0 0.0
    %1450 = vmatprep.subr.mxu0 0.0
    %1451 = vmatpush1.msra.mxu0 0.0
    %1452 = vmatprep.subr.mxu0 0.0
    %1453 = vmatpush1.msra.mxu0 0.0
    %1454 = vmatprep.subr.mxu0 0.0
    %1455 = vmatpush1.msra.mxu0 0.0
    %1456 = vmatprep.subr.mxu0 0.0
    %1457 = vmatpush1.msra.mxu0 %v1344
    %1458 = vmatprep.subr.mxu0 0.0
    %1459 = vmatpush1.msra.mxu0 %v1341
    %1460 = vmatprep.subr.mxu0 0.0
    %1461 = vmatpush2.msra.mxu0 0.0
    %1462 = vmatprep.subr.mxu0 0.0
    %1463 = vmatpush2.msra.mxu0 0.0
    %1464 = vmatprep.subr.mxu0 0.0
    %1465 = vmatpush2.msra.mxu0 0.0
    %1466 = vmatprep.subr.mxu0 0.0
    %1467 = vmatpush2.msra.mxu0 0.0
    %1468 = vmatprep.subr.mxu0 0.0
    %1469 = vmatpush2.msra.mxu0 0.0
    %1470 = vmatprep.subr.mxu0 0.0
    %1471 = vmatpush2.msra.mxu0 0.0
    %1472 = vmatprep.subr.mxu0 0.0
    %1473 = vmatpush2.msra.mxu0 0.0
    %1474 = vmatprep.subr.mxu0 0.0
    %1475 = vmatpush2.msra.mxu0 0.0
    %1476 = vmatprep.subr.mxu0 0.0
    %1477 = vmatpush2.msra.mxu0 0.0
    %1478 = vmatprep.subr.mxu0 0.0
    %1479 = vmatpush2.msra.mxu0 0.0
    %1480 = vmatprep.subr.mxu0 0.0
    %1481 = vmatpush2.msra.mxu0 0.0
    %1482 = vmatprep.subr.mxu0 0.0
    %1483 = vmatpush2.msra.mxu0 0.0
    %1484 = vmatprep.subr.mxu0 0.0
    %1485 = vmatpush2.msra.mxu0 0.0
    %1486 = vmatprep.subr.mxu0 0.0
    %1487 = vmatpush2.msra.mxu0 0.0
    %1488 = vmatprep.subr.mxu0 0.0
    %1489 = vmatpush2.msra.mxu0 0.0
    %1490 = vmatprep.subr.mxu0 0.0
    %1491 = vmatpush2.msra.mxu0 0.0
    %1492 = vmatprep.mubr.f32.mxu0 0.0
    %1493 = vmatmul.mubr.f32.gmra.mxu0 %v1346
    %v1494 = vpop.f32.mrf.mxu0
    %v1495 = vadd.f32 0.0, %v1494
    %v1496 = vpop.f32.mrf.mxu0
    %1497 = vmatprep.mubr.f32.mxu0 0.0
    %1498 = vmatmul.mubr.f32.gmra.mxu0 %v1349
    %v1499 = vpop.f32.mrf.mxu0
    %v1500 = vadd.f32 0.0, %v1499
    %v1501 = vpop.f32.mrf.mxu0
    %1502 = vdwg.mxu0
    %v1503 = vmul.f32 %v1495, 0.0034722222
    %v1504 = vmul.f32 %v1500, 0.0034722222
    %v1505 = vmul.f32 %v1426, %v1426
    %v1506 = vmul.f32 %v1427, %v1427
    %v1507 = vsub.f32 %v1503, %v1505
    %v1508 = vsub.f32 %v1504, %v1506
    %v1509 = vadd.f32 %v1507, 1e-05
    %v1510 = vadd.f32 %v1508, 1e-05
    %v1511 = vrsqrt.pop %v1509
    %v1512 = vrsqrt.pop %v1510
    %v1513 = vmul.f32 %v1511, %v1324
    %v1514 = vmul.f32 %v1512, %v1325
    %1516 = vset.pattern.permute.xlu0 0
    %1517 = vperm.xlu0 %1516, %v1426
    %v1518 = vpop.permute.xlu0 %1517
    %1521 = vset.pattern.permute.xlu0 0
    %1522 = vperm.xlu0 %1521, %v1427
    %v1523 = vpop.permute.xlu0 %1522
    %v1525 = vsub.f32 %v1312, %v1518
    %v1526 = vsub.f32 %v1314, %v1518
    %v1527 = vsub.f32 %v1318, %v1523
    %v1528 = vsub.f32 %v1320, %v1523
    %1530 = vset.pattern.permute.xlu0 0
    %1531 = vperm.xlu0 %1530, %v1513
    %v1532 = vpop.permute.xlu0 %1531
    %1535 = vset.pattern.permute.xlu0 0
    %1536 = vperm.xlu0 %1535, %v1514
    %v1537 = vpop.permute.xlu0 %1536
    %v1539 = vmul.f32 %v1525, %v1532
    %v1540 = vmul.f32 %v1526, %v1532
    %v1541 = vmul.f32 %v1527, %v1537
    %v1542 = vmul.f32 %v1528, %v1537
    %1544 = vset.pattern.permute.xlu0 0
    %1545 = vperm.xlu0 %1544, %v1327
    %v1546 = vpop.permute.xlu0 %1545
    %1549 = vset.pattern.permute.xlu0 0
    %1550 = vperm.xlu0 %1549, %v1328
    %v1551 = vpop.permute.xlu0 %1550
    %v1553 = vadd.f32 %v1539, %v1546
    %v1554 = vadd.f32 %v1540, %v1546
    %v1555 = vadd.f32 %v1541, %v1551
    %v1556 = vadd.f32 %v1542, %v1551
    %v1557 = vmax.f32 %v1553, 0.0
    %v1558 = vmax.f32 %v1554, 0.0
    %v1559 = vmax.f32 %v1555, 0.0
    %v1560 = vmax.f32 %v1556, 0.0
    %s1561 = smul.u32 %s963, 8
    %s1562 = sshll.u32 %s1561, 4
    %1563 = dma.done %s279, %s1562
    %v1564 = vld [vmem:[#allocation5] sm:$0xff]
    %v1565 = vld [vmem:[#allocation5 + $0x8] sm:$0xff]
    %v1566 = vld [vmem:[#allocation5 + $0x10] sm:$0xff]
    %v1567 = vld [vmem:[#allocation5 + $0x18] sm:$0xff]
    %v1568 = vld [vmem:[#allocation5 + $0x20] sm:$0xff]
    %v1569 = vld [vmem:[#allocation5 + $0x28] sm:$0xff]
    %v1570 = vld [vmem:[#allocation5 + $0x30] sm:$0xff]
    %v1571 = vld [vmem:[#allocation5 + $0x38] sm:$0xff]
    %v1572 = vld [vmem:[#allocation5 + $0x40] sm:$0xff]
    %v1573 = vld [vmem:[#allocation5 + $0x48] sm:$0xff]
    %v1574 = vld [vmem:[#allocation5 + $0x50] sm:$0xff]
    %v1575 = vld [vmem:[#allocation5 + $0x58] sm:$0xff]
    %v1576 = vld [vmem:[#allocation5 + $0x60] sm:$0xff]
    %v1577 = vld [vmem:[#allocation5 + $0x68] sm:$0xff]
    %v1578 = vld [vmem:[#allocation5 + $0x70] sm:$0xff]
    %v1579 = vld [vmem:[#allocation5 + $0x78] sm:$0xff]
    %v1580 = vld [vmem:[#allocation5 + $0x80] sm:$0xff]
    %v1581 = vld [vmem:[#allocation5 + $0x88] sm:$0xff]
    %v1582 = vld [vmem:[#allocation5 + $0x90] sm:$0xff]
    %v1583 = vld [vmem:[#allocation5 + $0x98] sm:$0xff]
    %v1584 = vld [vmem:[#allocation5 + $0xa0] sm:$0xff]
    %v1585 = vld [vmem:[#allocation5 + $0xa8] sm:$0xff]
    %v1586 = vld [vmem:[#allocation5 + $0xb0] sm:$0xff]
    %v1587 = vld [vmem:[#allocation5 + $0xb8] sm:$0xff]
    %v1588 = vld [vmem:[#allocation5 + $0xc0] sm:$0xff]
    %v1589 = vld [vmem:[#allocation5 + $0xc8] sm:$0xff]
    %v1590 = vld [vmem:[#allocation5 + $0xd0] sm:$0xff]
    %v1591 = vld [vmem:[#allocation5 + $0xd8] sm:$0xff]
    %v1592 = vld [vmem:[#allocation5 + $0xe0] sm:$0xff]
    %v1593 = vld [vmem:[#allocation5 + $0xe8] sm:$0xff]
    %v1594 = vld [vmem:[#allocation5 + $0xf0] sm:$0xff]
    %v1595 = vld [vmem:[#allocation5 + $0xf8] sm:$0xff]
    %v1596 = vld [vmem:[#allocation5 + $0x100] sm:$0xff]
    %v1597 = vld [vmem:[#allocation5 + $0x108] sm:$0xff]
    %v1598 = vld [vmem:[#allocation5 + $0x110] sm:$0xff]
    %v1599 = vld [vmem:[#allocation5 + $0x118] sm:$0xff]
    %v1600 = vld [vmem:[#allocation5 + $0x120] sm:$0xff]
    %v1601 = vld [vmem:[#allocation5 + $0x128] sm:$0xff]
    %v1602 = vld [vmem:[#allocation5 + $0x130] sm:$0xff]
    %v1603 = vld [vmem:[#allocation5 + $0x138] sm:$0xff]
    %v1604 = vld [vmem:[#allocation5 + $0x140] sm:$0xff]
    %v1605 = vld [vmem:[#allocation5 + $0x148] sm:$0xff]
    %v1606 = vld [vmem:[#allocation5 + $0x150] sm:$0xff]
    %v1607 = vld [vmem:[#allocation5 + $0x158] sm:$0xff]
    %v1608 = vld [vmem:[#allocation5 + $0x160] sm:$0xff]
    %v1609 = vld [vmem:[#allocation5 + $0x168] sm:$0xff]
    %v1610 = vld [vmem:[#allocation5 + $0x170] sm:$0xff]
    %v1611 = vld [vmem:[#allocation5 + $0x178] sm:$0xff]
    %v1612 = vld [vmem:[#allocation5 + $0x180] sm:$0xff]
    %v1613 = vld [vmem:[#allocation5 + $0x188] sm:$0xff]
    %v1614 = vld [vmem:[#allocation5 + $0x190] sm:$0xff]
    %v1615 = vld [vmem:[#allocation5 + $0x198] sm:$0xff]
    %v1616 = vld [vmem:[#allocation5 + $0x1a0] sm:$0xff]
    %v1617 = vld [vmem:[#allocation5 + $0x1a8] sm:$0xff]
    %v1618 = vld [vmem:[#allocation5 + $0x1b0] sm:$0xff]
    %v1619 = vld [vmem:[#allocation5 + $0x1b8] sm:$0xff]
    %v1620 = vld [vmem:[#allocation5 + $0x1c0] sm:$0xff]
    %v1621 = vld [vmem:[#allocation5 + $0x1c8] sm:$0xff]
    %v1622 = vld [vmem:[#allocation5 + $0x1d0] sm:$0xff]
    %v1623 = vld [vmem:[#allocation5 + $0x1d8] sm:$0xff]
    %v1624 = vld [vmem:[#allocation5 + $0x1e0] sm:$0xff]
    %v1625 = vld [vmem:[#allocation5 + $0x1e8] sm:$0xff]
    %v1626 = vld [vmem:[#allocation5 + $0x1f0] sm:$0xff]
    %v1627 = vld [vmem:[#allocation5 + $0x1f8] sm:$0xff]
    %v1628 = vld [vmem:[#allocation5 + $0x200] sm:$0xff]
    %v1629 = vld [vmem:[#allocation5 + $0x208] sm:$0xff]
    %v1630 = vld [vmem:[#allocation5 + $0x210] sm:$0xff]
    %v1631 = vld [vmem:[#allocation5 + $0x218] sm:$0xff]
    %v1632 = vld [vmem:[#allocation5 + $0x220] sm:$0xff]
    %v1633 = vld [vmem:[#allocation5 + $0x228] sm:$0xff]
    %v1634 = vld [vmem:[#allocation5 + $0x230] sm:$0xff]
    %v1635 = vld [vmem:[#allocation5 + $0x238] sm:$0xff]
    %v1636 = vld [vmem:[#allocation5 + $0x240] sm:$0xff]
    %v1637 = vld [vmem:[#allocation5 + $0x248] sm:$0xff]
    %v1638 = vld [vmem:[#allocation5 + $0x250] sm:$0xff]
    %v1639 = vld [vmem:[#allocation5 + $0x258] sm:$0xff]
    %v1640 = vld [vmem:[#allocation5 + $0x260] sm:$0xff]
    %v1641 = vld [vmem:[#allocation5 + $0x268] sm:$0xff]
    %v1642 = vld [vmem:[#allocation5 + $0x270] sm:$0xff]
    %v1643 = vld [vmem:[#allocation5 + $0x278] sm:$0xff]
    %v1644 = vld [vmem:[#allocation5 + $0x280] sm:$0xff]
    %v1645 = vld [vmem:[#allocation5 + $0x288] sm:$0xff]
    %v1646 = vld [vmem:[#allocation5 + $0x290] sm:$0xff]
    %v1647 = vld [vmem:[#allocation5 + $0x298] sm:$0xff]
    %v1648 = vld [vmem:[#allocation5 + $0x2a0] sm:$0xff]
    %v1649 = vld [vmem:[#allocation5 + $0x2a8] sm:$0xff]
    %v1650 = vld [vmem:[#allocation5 + $0x2b0] sm:$0xff]
    %v1651 = vld [vmem:[#allocation5 + $0x2b8] sm:$0xff]
    %v1652 = vld [vmem:[#allocation5 + $0x2c0] sm:$0xff]
    %v1653 = vld [vmem:[#allocation5 + $0x2c8] sm:$0xff]
    %v1654 = vld [vmem:[#allocation5 + $0x2d0] sm:$0xff]
    %v1655 = vld [vmem:[#allocation5 + $0x2d8] sm:$0xff]
    %v1656 = vld [vmem:[#allocation5 + $0x2e0] sm:$0xff]
    %v1657 = vld [vmem:[#allocation5 + $0x2e8] sm:$0xff]
    %v1658 = vld [vmem:[#allocation5 + $0x2f0] sm:$0xff]
    %v1659 = vld [vmem:[#allocation5 + $0x2f8] sm:$0xff]
    %v1660 = vld [vmem:[#allocation5 + $0x300] sm:$0xff]
    %v1661 = vld [vmem:[#allocation5 + $0x308] sm:$0xff]
    %v1662 = vld [vmem:[#allocation5 + $0x310] sm:$0xff]
    %v1663 = vld [vmem:[#allocation5 + $0x318] sm:$0xff]
    %v1664 = vld [vmem:[#allocation5 + $0x320] sm:$0xff]
    %v1665 = vld [vmem:[#allocation5 + $0x328] sm:$0xff]
    %v1666 = vld [vmem:[#allocation5 + $0x330] sm:$0xff]
    %v1667 = vld [vmem:[#allocation5 + $0x338] sm:$0xff]
    %v1668 = vld [vmem:[#allocation5 + $0x340] sm:$0xff]
    %v1669 = vld [vmem:[#allocation5 + $0x348] sm:$0xff]
    %v1670 = vld [vmem:[#allocation5 + $0x350] sm:$0xff]
    %v1671 = vld [vmem:[#allocation5 + $0x358] sm:$0xff]
    %v1672 = vld [vmem:[#allocation5 + $0x360] sm:$0xff]
    %v1673 = vld [vmem:[#allocation5 + $0x368] sm:$0xff]
    %v1674 = vld [vmem:[#allocation5 + $0x370] sm:$0xff]
    %v1675 = vld [vmem:[#allocation5 + $0x378] sm:$0xff]
    %v1676 = vld [vmem:[#allocation5 + $0x380] sm:$0xff]
    %v1677 = vld [vmem:[#allocation5 + $0x388] sm:$0xff]
    %v1678 = vld [vmem:[#allocation5 + $0x390] sm:$0xff]
    %v1679 = vld [vmem:[#allocation5 + $0x398] sm:$0xff]
    %v1680 = vld [vmem:[#allocation5 + $0x3a0] sm:$0xff]
    %v1681 = vld [vmem:[#allocation5 + $0x3a8] sm:$0xff]
    %v1682 = vld [vmem:[#allocation5 + $0x3b0] sm:$0xff]
    %v1683 = vld [vmem:[#allocation5 + $0x3b8] sm:$0xff]
    %v1684 = vld [vmem:[#allocation5 + $0x3c0] sm:$0xff]
    %v1685 = vld [vmem:[#allocation5 + $0x3c8] sm:$0xff]
    %v1686 = vld [vmem:[#allocation5 + $0x3d0] sm:$0xff]
    %v1687 = vld [vmem:[#allocation5 + $0x3d8] sm:$0xff]
    %v1688 = vld [vmem:[#allocation5 + $0x3e0] sm:$0xff]
    %v1689 = vld [vmem:[#allocation5 + $0x3e8] sm:$0xff]
    %v1690 = vld [vmem:[#allocation5 + $0x3f0] sm:$0xff]
    %v1691 = vld [vmem:[#allocation5 + $0x3f8] sm:$0xff]
    %v1692 = vld [vmem:[#allocation5 + $0x400] sm:$0xff]
    %v1693 = vld [vmem:[#allocation5 + $0x408] sm:$0xff]
    %v1694 = vld [vmem:[#allocation5 + $0x410] sm:$0xff]
    %v1695 = vld [vmem:[#allocation5 + $0x418] sm:$0xff]
    %v1696 = vld [vmem:[#allocation5 + $0x420] sm:$0xff]
    %v1697 = vld [vmem:[#allocation5 + $0x428] sm:$0xff]
    %v1698 = vld [vmem:[#allocation5 + $0x430] sm:$0xff]
    %v1699 = vld [vmem:[#allocation5 + $0x438] sm:$0xff]
    %v1700 = vld [vmem:[#allocation5 + $0x440] sm:$0xff]
    %v1701 = vld [vmem:[#allocation5 + $0x448] sm:$0xff]
    %v1702 = vld [vmem:[#allocation5 + $0x450] sm:$0xff]
    %v1703 = vld [vmem:[#allocation5 + $0x458] sm:$0xff]
    %v1704 = vld [vmem:[#allocation5 + $0x460] sm:$0xff]
    %v1705 = vld [vmem:[#allocation5 + $0x468] sm:$0xff]
    %v1706 = vld [vmem:[#allocation5 + $0x470] sm:$0xff]
    %v1707 = vld [vmem:[#allocation5 + $0x478] sm:$0xff]
    %v1708 = vld [vmem:[#allocation5 + $0x480] sm:$0xff]
    %v1709 = vld [vmem:[#allocation5 + $0x488] sm:$0xff]
    %v1710 = vld [vmem:[#allocation5 + $0x490] sm:$0xff]
    %v1711 = vld [vmem:[#allocation5 + $0x498] sm:$0xff]
    %v1712 = vld [vmem:[#allocation5 + $0x4a0] sm:$0xff]
    %v1713 = vld [vmem:[#allocation5 + $0x4a8] sm:$0xff]
    %v1714 = vld [vmem:[#allocation5 + $0x4b0] sm:$0xff]
    %v1715 = vld [vmem:[#allocation5 + $0x4b8] sm:$0xff]
    %v1716 = vld [vmem:[#allocation5 + $0x4c0] sm:$0xff]
    %v1717 = vld [vmem:[#allocation5 + $0x4c8] sm:$0xff]
    %v1718 = vld [vmem:[#allocation5 + $0x4d0] sm:$0xff]
    %v1719 = vld [vmem:[#allocation5 + $0x4d8] sm:$0xff]
    %v1720 = vld [vmem:[#allocation5 + $0x4e0] sm:$0xff]
    %v1721 = vld [vmem:[#allocation5 + $0x4e8] sm:$0xff]
    %v1722 = vld [vmem:[#allocation5 + $0x4f0] sm:$0xff]
    %v1723 = vld [vmem:[#allocation5 + $0x4f8] sm:$0xff]
    %v1724 = vld [vmem:[#allocation5 + $0x500] sm:$0xff]
    %v1725 = vld [vmem:[#allocation5 + $0x508] sm:$0xff]
    %v1726 = vld [vmem:[#allocation5 + $0x510] sm:$0xff]
    %v1727 = vld [vmem:[#allocation5 + $0x518] sm:$0xff]
    %v1728 = vld [vmem:[#allocation5 + $0x520] sm:$0xff]
    %v1729 = vld [vmem:[#allocation5 + $0x528] sm:$0xff]
    %v1730 = vld [vmem:[#allocation5 + $0x530] sm:$0xff]
    %v1731 = vld [vmem:[#allocation5 + $0x538] sm:$0xff]
    %v1732 = vld [vmem:[#allocation5 + $0x540] sm:$0xff]
    %v1733 = vld [vmem:[#allocation5 + $0x548] sm:$0xff]
    %v1734 = vld [vmem:[#allocation5 + $0x550] sm:$0xff]
    %v1735 = vld [vmem:[#allocation5 + $0x558] sm:$0xff]
    %v1736 = vld [vmem:[#allocation5 + $0x560] sm:$0xff]
    %v1737 = vld [vmem:[#allocation5 + $0x568] sm:$0xff]
    %v1738 = vld [vmem:[#allocation5 + $0x570] sm:$0xff]
    %v1739 = vld [vmem:[#allocation5 + $0x578] sm:$0xff]
    %v1740 = vld [vmem:[#allocation5 + $0x580] sm:$0xff]
    %v1741 = vld [vmem:[#allocation5 + $0x588] sm:$0xff]
    %v1742 = vld [vmem:[#allocation5 + $0x590] sm:$0xff]
    %v1743 = vld [vmem:[#allocation5 + $0x598] sm:$0xff]
    %v1744 = vld [vmem:[#allocation5 + $0x5a0] sm:$0xff]
    %v1745 = vld [vmem:[#allocation5 + $0x5a8] sm:$0xff]
    %v1746 = vld [vmem:[#allocation5 + $0x5b0] sm:$0xff]
    %v1747 = vld [vmem:[#allocation5 + $0x5b8] sm:$0xff]
    %v1748 = vld [vmem:[#allocation5 + $0x5c0] sm:$0xff]
    %v1749 = vld [vmem:[#allocation5 + $0x5c8] sm:$0xff]
    %v1750 = vld [vmem:[#allocation5 + $0x5d0] sm:$0xff]
    %v1751 = vld [vmem:[#allocation5 + $0x5d8] sm:$0xff]
    %v1752 = vld [vmem:[#allocation5 + $0x5e0] sm:$0xff]
    %v1753 = vld [vmem:[#allocation5 + $0x5e8] sm:$0xff]
    %v1754 = vld [vmem:[#allocation5 + $0x5f0] sm:$0xff]
    %v1755 = vld [vmem:[#allocation5 + $0x5f8] sm:$0xff]
    %v1756 = vld [vmem:[#allocation5 + $0x600] sm:$0xff]
    %v1757 = vld [vmem:[#allocation5 + $0x608] sm:$0xff]
    %v1758 = vld [vmem:[#allocation5 + $0x610] sm:$0xff]
    %v1759 = vld [vmem:[#allocation5 + $0x618] sm:$0xff]
    %v1760 = vld [vmem:[#allocation5 + $0x620] sm:$0xff]
    %v1761 = vld [vmem:[#allocation5 + $0x628] sm:$0xff]
    %v1762 = vld [vmem:[#allocation5 + $0x630] sm:$0xff]
    %v1763 = vld [vmem:[#allocation5 + $0x638] sm:$0xff]
    %v1764 = vld [vmem:[#allocation5 + $0x640] sm:$0xff]
    %v1765 = vld [vmem:[#allocation5 + $0x648] sm:$0xff]
    %v1766 = vld [vmem:[#allocation5 + $0x650] sm:$0xff]
    %v1767 = vld [vmem:[#allocation5 + $0x658] sm:$0xff]
    %v1768 = vld [vmem:[#allocation5 + $0x660] sm:$0xff]
    %v1769 = vld [vmem:[#allocation5 + $0x668] sm:$0xff]
    %v1770 = vld [vmem:[#allocation5 + $0x670] sm:$0xff]
    %v1771 = vld [vmem:[#allocation5 + $0x678] sm:$0xff]
    %v1772 = vld [vmem:[#allocation5 + $0x680] sm:$0xff]
    %v1773 = vld [vmem:[#allocation5 + $0x688] sm:$0xff]
    %v1774 = vld [vmem:[#allocation5 + $0x690] sm:$0xff]
    %v1775 = vld [vmem:[#allocation5 + $0x698] sm:$0xff]
    %v1776 = vld [vmem:[#allocation5 + $0x6a0] sm:$0xff]
    %v1777 = vld [vmem:[#allocation5 + $0x6a8] sm:$0xff]
    %v1778 = vld [vmem:[#allocation5 + $0x6b0] sm:$0xff]
    %v1779 = vld [vmem:[#allocation5 + $0x6b8] sm:$0xff]
    %v1780 = vld [vmem:[#allocation5 + $0x6c0] sm:$0xff]
    %v1781 = vld [vmem:[#allocation5 + $0x6c8] sm:$0xff]
    %v1782 = vld [vmem:[#allocation5 + $0x6d0] sm:$0xff]
    %v1783 = vld [vmem:[#allocation5 + $0x6d8] sm:$0xff]
    %v1784 = vld [vmem:[#allocation5 + $0x6e0] sm:$0xff]
    %v1785 = vld [vmem:[#allocation5 + $0x6e8] sm:$0xff]
    %v1786 = vld [vmem:[#allocation5 + $0x6f0] sm:$0xff]
    %v1787 = vld [vmem:[#allocation5 + $0x6f8] sm:$0xff]
    %v1788 = vld [vmem:[#allocation5 + $0x700] sm:$0xff]
    %v1789 = vld [vmem:[#allocation5 + $0x708] sm:$0xff]
    %v1790 = vld [vmem:[#allocation5 + $0x710] sm:$0xff]
    %v1791 = vld [vmem:[#allocation5 + $0x718] sm:$0xff]
    %v1792 = vld [vmem:[#allocation5 + $0x720] sm:$0xff]
    %v1793 = vld [vmem:[#allocation5 + $0x728] sm:$0xff]
    %v1794 = vld [vmem:[#allocation5 + $0x730] sm:$0xff]
    %v1795 = vld [vmem:[#allocation5 + $0x738] sm:$0xff]
    %v1796 = vld [vmem:[#allocation5 + $0x740] sm:$0xff]
    %v1797 = vld [vmem:[#allocation5 + $0x748] sm:$0xff]
    %v1798 = vld [vmem:[#allocation5 + $0x750] sm:$0xff]
    %v1799 = vld [vmem:[#allocation5 + $0x758] sm:$0xff]
    %v1800 = vld [vmem:[#allocation5 + $0x760] sm:$0xff]
    %v1801 = vld [vmem:[#allocation5 + $0x768] sm:$0xff]
    %v1802 = vld [vmem:[#allocation5 + $0x770] sm:$0xff]
    %v1803 = vld [vmem:[#allocation5 + $0x778] sm:$0xff]
    %v1804 = vld [vmem:[#allocation5 + $0x780] sm:$0xff]
    %v1805 = vld [vmem:[#allocation5 + $0x788] sm:$0xff]
    %v1806 = vld [vmem:[#allocation5 + $0x790] sm:$0xff]
    %v1807 = vld [vmem:[#allocation5 + $0x798] sm:$0xff]
    %v1808 = vld [vmem:[#allocation5 + $0x7a0] sm:$0xff]
    %v1809 = vld [vmem:[#allocation5 + $0x7a8] sm:$0xff]
    %v1810 = vld [vmem:[#allocation5 + $0x7b0] sm:$0xff]
    %v1811 = vld [vmem:[#allocation5 + $0x7b8] sm:$0xff]
    %v1812 = vld [vmem:[#allocation5 + $0x7c0] sm:$0xff]
    %v1813 = vld [vmem:[#allocation5 + $0x7c8] sm:$0xff]
    %v1814 = vld [vmem:[#allocation5 + $0x7d0] sm:$0xff]
    %v1815 = vld [vmem:[#allocation5 + $0x7d8] sm:$0xff]
    %v1816 = vld [vmem:[#allocation5 + $0x7e0] sm:$0xff]
    %v1817 = vld [vmem:[#allocation5 + $0x7e8] sm:$0xff]
    %v1818 = vld [vmem:[#allocation5 + $0x7f0] sm:$0xff]
    %v1819 = vld [vmem:[#allocation5 + $0x7f8] sm:$0xff]
    %1820 = vmatprep.subr.mxu0 %v1685
    %1821 = vmatpush1.msra.mxu0 %v1684
    %1822 = vmatprep.subr.mxu0 %v1677
    %1823 = vmatpush1.msra.mxu0 %v1676
    %1824 = vmatprep.subr.mxu0 %v1669
    %1825 = vmatpush1.msra.mxu0 %v1668
    %1826 = vmatprep.subr.mxu0 %v1661
    %1827 = vmatpush1.msra.mxu0 %v1660
    %1828 = vmatprep.subr.mxu0 %v1653
    %1829 = vmatpush1.msra.mxu0 %v1652
    %1830 = vmatprep.subr.mxu0 %v1645
    %1831 = vmatpush1.msra.mxu0 %v1644
    %1832 = vmatprep.subr.mxu0 %v1637
    %1833 = vmatpush1.msra.mxu0 %v1636
    %1834 = vmatprep.subr.mxu0 %v1629
    %1835 = vmatpush1.msra.mxu0 %v1628
    %1836 = vmatprep.subr.mxu0 %v1621
    %1837 = vmatpush1.msra.mxu0 %v1620
    %1838 = vmatprep.subr.mxu0 %v1613
    %1839 = vmatpush1.msra.mxu0 %v1612
    %1840 = vmatprep.subr.mxu0 %v1605
    %1841 = vmatpush1.msra.mxu0 %v1604
    %1842 = vmatprep.subr.mxu0 %v1597
    %1843 = vmatpush1.msra.mxu0 %v1596
    %1844 = vmatprep.subr.mxu0 %v1589
    %1845 = vmatpush1.msra.mxu0 %v1588
    %1846 = vmatprep.subr.mxu0 %v1581
    %1847 = vmatpush1.msra.mxu0 %v1580
    %1848 = vmatprep.subr.mxu0 %v1573
    %1849 = vmatpush1.msra.mxu0 %v1572
    %1850 = vmatprep.subr.mxu0 %v1565
    %1851 = vmatpush1.msra.mxu0 %v1564
    %1852 = vmatprep.subr.mxu0 %v1813
    %1853 = vmatpush2.msra.mxu0 %v1812
    %1854 = vmatprep.subr.mxu0 %v1805
    %1855 = vmatpush2.msra.mxu0 %v1804
    %1856 = vmatprep.subr.mxu0 %v1797
    %1857 = vmatpush2.msra.mxu0 %v1796
    %1858 = vmatprep.subr.mxu0 %v1789
    %1859 = vmatpush2.msra.mxu0 %v1788
    %1860 = vmatprep.subr.mxu0 %v1781
    %1861 = vmatpush2.msra.mxu0 %v1780
    %1862 = vmatprep.subr.mxu0 %v1773
    %1863 = vmatpush2.msra.mxu0 %v1772
    %1864 = vmatprep.subr.mxu0 %v1765
    %1865 = vmatpush2.msra.mxu0 %v1764
    %1866 = vmatprep.subr.mxu0 %v1757
    %1867 = vmatpush2.msra.mxu0 %v1756
    %1868 = vmatprep.subr.mxu0 %v1749
    %1869 = vmatpush2.msra.mxu0 %v1748
    %1870 = vmatprep.subr.mxu0 %v1741
    %1871 = vmatpush2.msra.mxu0 %v1740
    %1872 = vmatprep.subr.mxu0 %v1733
    %1873 = vmatpush2.msra.mxu0 %v1732
    %1874 = vmatprep.subr.mxu0 %v1725
    %1875 = vmatpush2.msra.mxu0 %v1724
    %1876 = vmatprep.subr.mxu0 %v1717
    %1877 = vmatpush2.msra.mxu0 %v1716
    %1878 = vmatprep.subr.mxu0 %v1709
    %1879 = vmatpush2.msra.mxu0 %v1708
    %1880 = vmatprep.subr.mxu0 %v1701
    %1881 = vmatpush2.msra.mxu0 %v1700
    %1882 = vmatprep.subr.mxu0 %v1693
    %1883 = vmatpush2.msra.mxu0 %v1692
    %1884 = vmatprep.mubr.f32.mxu0 %v962
    %1885 = vmatmul.mubr.f32.gmra.mxu0 %v961
    %v1886 = vpop.f32.mrf.mxu0
    %v1887 = vadd.f32 0.0, %v1886
    %v1888 = vpop.f32.mrf.mxu0
    %v1889 = vadd.f32 0.0, %v1888
    %1890 = vdwg.mxu0
    %1891 = vmatprep.subr.mxu0 %v1687
    %1892 = vmatpush1.msra.mxu0 %v1686
    %1893 = vmatprep.subr.mxu0 %v1679
    %1894 = vmatpush1.msra.mxu0 %v1678
    %1895 = vmatprep.subr.mxu0 %v1671
    %1896 = vmatpush1.msra.mxu0 %v1670
    %1897 = vmatprep.subr.mxu0 %v1663
    %1898 = vmatpush1.msra.mxu0 %v1662
    %1899 = vmatprep.subr.mxu0 %v1655
    %1900 = vmatpush1.msra.mxu0 %v1654
    %1901 = vmatprep.subr.mxu0 %v1647
    %1902 = vmatpush1.msra.mxu0 %v1646
    %1903 = vmatprep.subr.mxu0 %v1639
    %1904 = vmatpush1.msra.mxu0 %v1638
    %1905 = vmatprep.subr.mxu0 %v1631
    %1906 = vmatpush1.msra.mxu0 %v1630
    %1907 = vmatprep.subr.mxu0 %v1623
    %1908 = vmatpush1.msra.mxu0 %v1622
    %1909 = vmatprep.subr.mxu0 %v1615
    %1910 = vmatpush1.msra.mxu0 %v1614
    %1911 = vmatprep.subr.mxu0 %v1607
    %1912 = vmatpush1.msra.mxu0 %v1606
    %1913 = vmatprep.subr.mxu0 %v1599
    %1914 = vmatpush1.msra.mxu0 %v1598
    %1915 = vmatprep.subr.mxu0 %v1591
    %1916 = vmatpush1.msra.mxu0 %v1590
    %1917 = vmatprep.subr.mxu0 %v1583
    %1918 = vmatpush1.msra.mxu0 %v1582
    %1919 = vmatprep.subr.mxu0 %v1575
    %1920 = vmatpush1.msra.mxu0 %v1574
    %1921 = vmatprep.subr.mxu0 %v1567
    %1922 = vmatpush1.msra.mxu0 %v1566
    %1923 = vmatprep.subr.mxu0 %v1815
    %1924 = vmatpush2.msra.mxu0 %v1814
    %1925 = vmatprep.subr.mxu0 %v1807
    %1926 = vmatpush2.msra.mxu0 %v1806
    %1927 = vmatprep.subr.mxu0 %v1799
    %1928 = vmatpush2.msra.mxu0 %v1798
    %1929 = vmatprep.subr.mxu0 %v1791
    %1930 = vmatpush2.msra.mxu0 %v1790
    %1931 = vmatprep.subr.mxu0 %v1783
    %1932 = vmatpush2.msra.mxu0 %v1782
    %1933 = vmatprep.subr.mxu0 %v1775
    %1934 = vmatpush2.msra.mxu0 %v1774
    %1935 = vmatprep.subr.mxu0 %v1767
    %1936 = vmatpush2.msra.mxu0 %v1766
    %1937 = vmatprep.subr.mxu0 %v1759
    %1938 = vmatpush2.msra.mxu0 %v1758
    %1939 = vmatprep.subr.mxu0 %v1751
    %1940 = vmatpush2.msra.mxu0 %v1750
    %1941 = vmatprep.subr.mxu0 %v1743
    %1942 = vmatpush2.msra.mxu0 %v1742
    %1943 = vmatprep.subr.mxu0 %v1735
    %1944 = vmatpush2.msra.mxu0 %v1734
    %1945 = vmatprep.subr.mxu0 %v1727
    %1946 = vmatpush2.msra.mxu0 %v1726
    %1947 = vmatprep.subr.mxu0 %v1719
    %1948 = vmatpush2.msra.mxu0 %v1718
    %1949 = vmatprep.subr.mxu0 %v1711
    %1950 = vmatpush2.msra.mxu0 %v1710
    %1951 = vmatprep.subr.mxu0 %v1703
    %1952 = vmatpush2.msra.mxu0 %v1702
    %1953 = vmatprep.subr.mxu0 %v1695
    %1954 = vmatpush2.msra.mxu0 %v1694
    %1955 = vmatprep.mubr.f32.mxu0 %v962
    %1956 = vmatmul.mubr.f32.gmra.mxu0 %v961
    %v1957 = vpop.f32.mrf.mxu0
    %v1958 = vadd.f32 0.0, %v1957
    %v1959 = vpop.f32.mrf.mxu0
    %v1960 = vadd.f32 0.0, %v1959
    %1961 = vdwg.mxu0
    %1962 = vmatprep.subr.mxu0 %v1689
    %1963 = vmatpush1.msra.mxu0 %v1688
    %1964 = vmatprep.subr.mxu0 %v1681
    %1965 = vmatpush1.msra.mxu0 %v1680
    %1966 = vmatprep.subr.mxu0 %v1673
    %1967 = vmatpush1.msra.mxu0 %v1672
    %1968 = vmatprep.subr.mxu0 %v1665
    %1969 = vmatpush1.msra.mxu0 %v1664
    %1970 = vmatprep.subr.mxu0 %v1657
    %1971 = vmatpush1.msra.mxu0 %v1656
    %1972 = vmatprep.subr.mxu0 %v1649
    %1973 = vmatpush1.msra.mxu0 %v1648
    %1974 = vmatprep.subr.mxu0 %v1641
    %1975 = vmatpush1.msra.mxu0 %v1640
    %1976 = vmatprep.subr.mxu0 %v1633
    %1977 = vmatpush1.msra.mxu0 %v1632
    %1978 = vmatprep.subr.mxu0 %v1625
    %1979 = vmatpush1.msra.mxu0 %v1624
    %1980 = vmatprep.subr.mxu0 %v1617
    %1981 = vmatpush1.msra.mxu0 %v1616
    %1982 = vmatprep.subr.mxu0 %v1609
    %1983 = vmatpush1.msra.mxu0 %v1608
    %1984 = vmatprep.subr.mxu0 %v1601
    %1985 = vmatpush1.msra.mxu0 %v1600
    %1986 = vmatprep.subr.mxu0 %v1593
    %1987 = vmatpush1.msra.mxu0 %v1592
    %1988 = vmatprep.subr.mxu0 %v1585
    %1989 = vmatpush1.msra.mxu0 %v1584
    %1990 = vmatprep.subr.mxu0 %v1577
    %1991 = vmatpush1.msra.mxu0 %v1576
    %1992 = vmatprep.subr.mxu0 %v1569
    %1993 = vmatpush1.msra.mxu0 %v1568
    %1994 = vmatprep.subr.mxu0 %v1817
    %1995 = vmatpush2.msra.mxu0 %v1816
    %1996 = vmatprep.subr.mxu0 %v1809
    %1997 = vmatpush2.msra.mxu0 %v1808
    %1998 = vmatprep.subr.mxu0 %v1801
    %1999 = vmatpush2.msra.mxu0 %v1800
    %2000 = vmatprep.subr.mxu0 %v1793
    %2001 = vmatpush2.msra.mxu0 %v1792
    %2002 = vmatprep.subr.mxu0 %v1785
    %2003 = vmatpush2.msra.mxu0 %v1784
    %2004 = vmatprep.subr.mxu0 %v1777
    %2005 = vmatpush2.msra.mxu0 %v1776
    %2006 = vmatprep.subr.mxu0 %v1769
    %2007 = vmatpush2.msra.mxu0 %v1768
    %2008 = vmatprep.subr.mxu0 %v1761
    %2009 = vmatpush2.msra.mxu0 %v1760
    %2010 = vmatprep.subr.mxu0 %v1753
    %2011 = vmatpush2.msra.mxu0 %v1752
    %2012 = vmatprep.subr.mxu0 %v1745
    %2013 = vmatpush2.msra.mxu0 %v1744
    %2014 = vmatprep.subr.mxu0 %v1737
    %2015 = vmatpush2.msra.mxu0 %v1736
    %2016 = vmatprep.subr.mxu0 %v1729
    %2017 = vmatpush2.msra.mxu0 %v1728
    %2018 = vmatprep.subr.mxu0 %v1721
    %2019 = vmatpush2.msra.mxu0 %v1720
    %2020 = vmatprep.subr.mxu0 %v1713
    %2021 = vmatpush2.msra.mxu0 %v1712
    %2022 = vmatprep.subr.mxu0 %v1705
    %2023 = vmatpush2.msra.mxu0 %v1704
    %2024 = vmatprep.subr.mxu0 %v1697
    %2025 = vmatpush2.msra.mxu0 %v1696
    %2026 = vmatprep.mubr.f32.mxu0 %v962
    %2027 = vmatmul.mubr.f32.gmra.mxu0 %v961
    %v2028 = vpop.f32.mrf.mxu0
    %v2029 = vadd.f32 0.0, %v2028
    %v2030 = vpop.f32.mrf.mxu0
    %v2031 = vadd.f32 0.0, %v2030
    %2032 = vdwg.mxu0
    %2033 = vmatprep.subr.mxu0 %v1691
    %2034 = vmatpush1.msra.mxu0 %v1690
    %2035 = vmatprep.subr.mxu0 %v1683
    %2036 = vmatpush1.msra.mxu0 %v1682
    %2037 = vmatprep.subr.mxu0 %v1675
    %2038 = vmatpush1.msra.mxu0 %v1674
    %2039 = vmatprep.subr.mxu0 %v1667
    %2040 = vmatpush1.msra.mxu0 %v1666
    %2041 = vmatprep.subr.mxu0 %v1659
    %2042 = vmatpush1.msra.mxu0 %v1658
    %2043 = vmatprep.subr.mxu0 %v1651
    %2044 = vmatpush1.msra.mxu0 %v1650
    %2045 = vmatprep.subr.mxu0 %v1643
    %2046 = vmatpush1.msra.mxu0 %v1642
    %2047 = vmatprep.subr.mxu0 %v1635
    %2048 = vmatpush1.msra.mxu0 %v1634
    %2049 = vmatprep.subr.mxu0 %v1627
    %2050 = vmatpush1.msra.mxu0 %v1626
    %2051 = vmatprep.subr.mxu0 %v1619
    %2052 = vmatpush1.msra.mxu0 %v1618
    %2053 = vmatprep.subr.mxu0 %v1611
    %2054 = vmatpush1.msra.mxu0 %v1610
    %2055 = vmatprep.subr.mxu0 %v1603
    %2056 = vmatpush1.msra.mxu0 %v1602
    %2057 = vmatprep.subr.mxu0 %v1595
    %2058 = vmatpush1.msra.mxu0 %v1594
    %2059 = vmatprep.subr.mxu0 %v1587
    %2060 = vmatpush1.msra.mxu0 %v1586
    %2061 = vmatprep.subr.mxu0 %v1579
    %2062 = vmatpush1.msra.mxu0 %v1578
    %2063 = vmatprep.subr.mxu0 %v1571
    %2064 = vmatpush1.msra.mxu0 %v1570
    %2065 = vmatprep.subr.mxu0 %v1819
    %2066 = vmatpush2.msra.mxu0 %v1818
    %2067 = vmatprep.subr.mxu0 %v1811
    %2068 = vmatpush2.msra.mxu0 %v1810
    %2069 = vmatprep.subr.mxu0 %v1803
    %2070 = vmatpush2.msra.mxu0 %v1802
    %2071 = vmatprep.subr.mxu0 %v1795
    %2072 = vmatpush2.msra.mxu0 %v1794
    %2073 = vmatprep.subr.mxu0 %v1787
    %2074 = vmatpush2.msra.mxu0 %v1786
    %2075 = vmatprep.subr.mxu0 %v1779
    %2076 = vmatpush2.msra.mxu0 %v1778
    %2077 = vmatprep.subr.mxu0 %v1771
    %2078 = vmatpush2.msra.mxu0 %v1770
    %2079 = vmatprep.subr.mxu0 %v1763
    %2080 = vmatpush2.msra.mxu0 %v1762
    %2081 = vmatprep.subr.mxu0 %v1755
    %2082 = vmatpush2.msra.mxu0 %v1754
    %2083 = vmatprep.subr.mxu0 %v1747
    %2084 = vmatpush2.msra.mxu0 %v1746
    %2085 = vmatprep.subr.mxu0 %v1739
    %2086 = vmatpush2.msra.mxu0 %v1738
    %2087 = vmatprep.subr.mxu0 %v1731
    %2088 = vmatpush2.msra.mxu0 %v1730
    %2089 = vmatprep.subr.mxu0 %v1723
    %2090 = vmatpush2.msra.mxu0 %v1722
    %2091 = vmatprep.subr.mxu0 %v1715
    %2092 = vmatpush2.msra.mxu0 %v1714
    %2093 = vmatprep.subr.mxu0 %v1707
    %2094 = vmatpush2.msra.mxu0 %v1706
    %2095 = vmatprep.subr.mxu0 %v1699
    %2096 = vmatpush2.msra.mxu0 %v1698
    %2097 = vmatprep.mubr.f32.mxu0 %v962
    %2098 = vmatmul.mubr.f32.gmra.mxu0 %v961
    %v2099 = vpop.f32.mrf.mxu0
    %v2100 = vadd.f32 0.0, %v2099
    %v2101 = vpop.f32.mrf.mxu0
    %v2102 = vadd.f32 0.0, %v2101
    %2103 = vdwg.mxu0
    %v2104 = vld [vmem:[%s5] sm:$0xff]
    %v2105 = vld [vmem:[%s5 + $0x8] sm:$0xff]
    %vm2106 = vcmask 523264
    %v2108 = vsel %vm2106, %v2104, 0
    %v2111 = vsel %vm2106, %v2105, 0
    %2113 = vmatprep.subr.mxu0 0.0
    %2114 = vmatpush1.msra.mxu0 0.0
    %2115 = vmatprep.subr.mxu0 0.0
    %2116 = vmatpush1.msra.mxu0 0.0
    %2117 = vmatprep.subr.mxu0 0.0
    %2118 = vmatpush1.msra.mxu0 0.0
    %2119 = vmatprep.subr.mxu0 0.0
    %2120 = vmatpush1.msra.mxu0 0.0
    %2121 = vmatprep.subr.mxu0 0.0
    %2122 = vmatpush1.msra.mxu0 0.0
    %2123 = vmatprep.subr.mxu0 0.0
    %2124 = vmatpush1.msra.mxu0 0.0
    %2125 = vmatprep.subr.mxu0 0.0
    %2126 = vmatpush1.msra.mxu0 0.0
    %2127 = vmatprep.subr.mxu0 0.0
    %2128 = vmatpush1.msra.mxu0 0.0
    %2129 = vmatprep.subr.mxu0 0.0
    %2130 = vmatpush1.msra.mxu0 %v2102
    %2131 = vmatprep.subr.mxu0 0.0
    %2132 = vmatpush1.msra.mxu0 %v2100
    %2133 = vmatprep.subr.mxu0 0.0
    %2134 = vmatpush1.msra.mxu0 %v2031
    %2135 = vmatprep.subr.mxu0 0.0
    %2136 = vmatpush1.msra.mxu0 %v2029
    %2137 = vmatprep.subr.mxu0 0.0
    %2138 = vmatpush1.msra.mxu0 %v1960
    %2139 = vmatprep.subr.mxu0 0.0
    %2140 = vmatpush1.msra.mxu0 %v1958
    %2141 = vmatprep.subr.mxu0 0.0
    %2142 = vmatpush1.msra.mxu0 %v1889
    %2143 = vmatprep.subr.mxu0 0.0
    %2144 = vmatpush1.msra.mxu0 %v1887
    %2145 = vmatprep.subr.mxu0 0.0
    %2146 = vmatpush2.msra.mxu0 0.0
    %2147 = vmatprep.subr.mxu0 0.0
    %2148 = vmatpush2.msra.mxu0 0.0
    %2149 = vmatprep.subr.mxu0 0.0
    %2150 = vmatpush2.msra.mxu0 0.0
    %2151 = vmatprep.subr.mxu0 0.0
    %2152 = vmatpush2.msra.mxu0 0.0
    %2153 = vmatprep.subr.mxu0 0.0
    %2154 = vmatpush2.msra.mxu0 0.0
    %2155 = vmatprep.subr.mxu0 0.0
    %2156 = vmatpush2.msra.mxu0 0.0
    %2157 = vmatprep.subr.mxu0 0.0
    %2158 = vmatpush2.msra.mxu0 0.0
    %2159 = vmatprep.subr.mxu0 0.0
    %2160 = vmatpush2.msra.mxu0 0.0
    %2161 = vmatprep.subr.mxu0 0.0
    %2162 = vmatpush2.msra.mxu0 0.0
    %2163 = vmatprep.subr.mxu0 0.0
    %2164 = vmatpush2.msra.mxu0 0.0
    %2165 = vmatprep.subr.mxu0 0.0
    %2166 = vmatpush2.msra.mxu0 0.0
    %2167 = vmatprep.subr.mxu0 0.0
    %2168 = vmatpush2.msra.mxu0 0.0
    %2169 = vmatprep.subr.mxu0 0.0
    %2170 = vmatpush2.msra.mxu0 0.0
    %2171 = vmatprep.subr.mxu0 0.0
    %2172 = vmatpush2.msra.mxu0 0.0
    %2173 = vmatprep.subr.mxu0 0.0
    %2174 = vmatpush2.msra.mxu0 0.0
    %2175 = vmatprep.subr.mxu0 0.0
    %2176 = vmatpush2.msra.mxu0 0.0
    %2177 = vmatprep.mubr.f32.mxu0 0.0
    %2178 = vmatmul.mubr.f32.gmra.mxu0 %v2108
    %v2179 = vpop.f32.mrf.mxu0
    %v2180 = vadd.f32 0.0, %v2179
    %v2181 = vpop.f32.mrf.mxu0
    %2182 = vmatprep.mubr.f32.mxu0 0.0
    %2183 = vmatmul.mubr.f32.gmra.mxu0 %v2111
    %v2184 = vpop.f32.mrf.mxu0
    %v2185 = vadd.f32 0.0, %v2184
    %v2186 = vpop.f32.mrf.mxu0
    %2187 = vdwg.mxu0
    %v2188 = vld [vmem:[%s4] sm:$0xff]
    %v2189 = vld [vmem:[%s4 + $0x8] sm:$0xff]
    %v2191 = vsel %vm556, %v2188, 0
    %v2194 = vsel %vm556, %v2189, 0
    %2196 = vmatprep.subr.mxu0 0.0
    %2197 = vmatpush1.msra.mxu0 0.0
    %2198 = vmatprep.subr.mxu0 0.0
    %2199 = vmatpush1.msra.mxu0 0.0
    %2200 = vmatprep.subr.mxu0 0.0
    %2201 = vmatpush1.msra.mxu0 0.0
    %2202 = vmatprep.subr.mxu0 0.0
    %2203 = vmatpush1.msra.mxu0 0.0
    %2204 = vmatprep.subr.mxu0 0.0
    %2205 = vmatpush1.msra.mxu0 0.0
    %2206 = vmatprep.subr.mxu0 0.0
    %2207 = vmatpush1.msra.mxu0 0.0
    %2208 = vmatprep.subr.mxu0 0.0
    %2209 = vmatpush1.msra.mxu0 0.0
    %2210 = vmatprep.subr.mxu0 0.0
    %2211 = vmatpush1.msra.mxu0 0.0
    %2212 = vmatprep.subr.mxu0 0.0
    %2213 = vmatpush1.msra.mxu0 0.0
    %2214 = vmatprep.subr.mxu0 0.0
    %2215 = vmatpush1.msra.mxu0 0.0
    %2216 = vmatprep.subr.mxu0 0.0
    %2217 = vmatpush1.msra.mxu0 0.0
    %2218 = vmatprep.subr.mxu0 0.0
    %2219 = vmatpush1.msra.mxu0 0.0
    %2220 = vmatprep.subr.mxu0 0.0
    %2221 = vmatpush1.msra.mxu0 0.0
    %2222 = vmatprep.subr.mxu0 0.0
    %2223 = vmatpush1.msra.mxu0 0.0
    %2224 = vmatprep.subr.mxu0 0.0
    %2225 = vmatpush1.msra.mxu0 %v2185
    %2226 = vmatprep.subr.mxu0 0.0
    %2227 = vmatpush1.msra.mxu0 %v2180
    %2228 = vmatprep.subr.mxu0 0.0
    %2229 = vmatpush2.msra.mxu0 0.0
    %2230 = vmatprep.subr.mxu0 0.0
    %2231 = vmatpush2.msra.mxu0 0.0
    %2232 = vmatprep.subr.mxu0 0.0
    %2233 = vmatpush2.msra.mxu0 0.0
    %2234 = vmatprep.subr.mxu0 0.0
    %2235 = vmatpush2.msra.mxu0 0.0
    %2236 = vmatprep.subr.mxu0 0.0
    %2237 = vmatpush2.msra.mxu0 0.0
    %2238 = vmatprep.subr.mxu0 0.0
    %2239 = vmatpush2.msra.mxu0 0.0
    %2240 = vmatprep.subr.mxu0 0.0
    %2241 = vmatpush2.msra.mxu0 0.0
    %2242 = vmatprep.subr.mxu0 0.0
    %2243 = vmatpush2.msra.mxu0 0.0
    %2244 = vmatprep.subr.mxu0 0.0
    %2245 = vmatpush2.msra.mxu0 0.0
    %2246 = vmatprep.subr.mxu0 0.0
    %2247 = vmatpush2.msra.mxu0 0.0
    %2248 = vmatprep.subr.mxu0 0.0
    %2249 = vmatpush2.msra.mxu0 0.0
    %2250 = vmatprep.subr.mxu0 0.0
    %2251 = vmatpush2.msra.mxu0 0.0
    %2252 = vmatprep.subr.mxu0 0.0
    %2253 = vmatpush2.msra.mxu0 0.0
    %2254 = vmatprep.subr.mxu0 0.0
    %2255 = vmatpush2.msra.mxu0 0.0
    %2256 = vmatprep.subr.mxu0 0.0
    %2257 = vmatpush2.msra.mxu0 0.0
    %2258 = vmatprep.subr.mxu0 0.0
    %2259 = vmatpush2.msra.mxu0 0.0
    %2260 = vmatprep.mubr.f32.mxu0 0.0
    %2261 = vmatmul.mubr.f32.gmra.mxu0 %v2191
    %v2262 = vpop.f32.mrf.mxu0
    %v2263 = vadd.f32 0.0, %v2262
    %v2264 = vpop.f32.mrf.mxu0
    %2265 = vmatprep.mubr.f32.mxu0 0.0
    %2266 = vmatmul.mubr.f32.gmra.mxu0 %v2194
    %v2267 = vpop.f32.mrf.mxu0
    %v2268 = vadd.f32 0.0, %v2267
    %v2269 = vpop.f32.mrf.mxu0
    %2270 = vdwg.mxu0
    %v2271 = vld [vmem:[#allocation11] sm:$0xff]
    %v2272 = vld [vmem:[#allocation11 + $0x8] sm:$0xff]
    %v2273 = vld [vmem:[%s12] sm:$0xff]
    %v2274 = vld [vmem:[%s12 + $0x8] sm:$0xff]
    %s2275 = scalar_lea.vmem %s12, 16
    %v2276 = vld [vmem:[%s2275] sm:$0xff]
    %v2277 = vld [vmem:[%s2275 + $0x8] sm:$0xff]
    %2278 = vadd.xlane.f32.xlu0 %v2263
    %v2279 = vpop.xlane.xlu0 %2278
    %2280 = vadd.xlane.f32.xlu0 %v2268
    %v2281 = vpop.xlane.xlu0 %2280
    %v2282 = vmul.f32 %v2263, %v2263
    %v2283 = vmul.f32 %v2268, %v2268
    %2284 = vadd.xlane.f32.xlu0 %v2282
    %v2285 = vpop.xlane.xlu0 %2284
    %2286 = vadd.xlane.f32.xlu0 %v2283
    %v2287 = vpop.xlane.xlu0 %2286
    %v2289 = vsel %vm556, %v2271, 0
    %v2292 = vsel %vm556, %v2272, 0
    %2294 = vmatprep.subr.mxu0 0.0
    %2295 = vmatpush1.msra.mxu0 0.0
    %2296 = vmatprep.subr.mxu0 0.0
    %2297 = vmatpush1.msra.mxu0 0.0
    %2298 = vmatprep.subr.mxu0 0.0
    %2299 = vmatpush1.msra.mxu0 0.0
    %2300 = vmatprep.subr.mxu0 0.0
    %2301 = vmatpush1.msra.mxu0 0.0
    %2302 = vmatprep.subr.mxu0 0.0
    %2303 = vmatpush1.msra.mxu0 0.0
    %2304 = vmatprep.subr.mxu0 0.0
    %2305 = vmatpush1.msra.mxu0 0.0
    %2306 = vmatprep.subr.mxu0 0.0
    %2307 = vmatpush1.msra.mxu0 0.0
    %2308 = vmatprep.subr.mxu0 0.0
    %2309 = vmatpush1.msra.mxu0 0.0
    %2310 = vmatprep.subr.mxu0 0.0
    %2311 = vmatpush1.msra.mxu0 0.0
    %2312 = vmatprep.subr.mxu0 0.0
    %2313 = vmatpush1.msra.mxu0 0.0
    %2314 = vmatprep.subr.mxu0 0.0
    %2315 = vmatpush1.msra.mxu0 0.0
    %2316 = vmatprep.subr.mxu0 0.0
    %2317 = vmatpush1.msra.mxu0 0.0
    %2318 = vmatprep.subr.mxu0 0.0
    %2319 = vmatpush1.msra.mxu0 0.0
    %2320 = vmatprep.subr.mxu0 0.0
    %2321 = vmatpush1.msra.mxu0 0.0
    %2322 = vmatprep.subr.mxu0 0.0
    %2323 = vmatpush1.msra.mxu0 %v2281
    %2324 = vmatprep.subr.mxu0 0.0
    %2325 = vmatpush1.msra.mxu0 %v2279
    %2326 = vmatprep.subr.mxu0 0.0
    %2327 = vmatpush2.msra.mxu0 0.0
    %2328 = vmatprep.subr.mxu0 0.0
    %2329 = vmatpush2.msra.mxu0 0.0
    %2330 = vmatprep.subr.mxu0 0.0
    %2331 = vmatpush2.msra.mxu0 0.0
    %2332 = vmatprep.subr.mxu0 0.0
    %2333 = vmatpush2.msra.mxu0 0.0
    %2334 = vmatprep.subr.mxu0 0.0
    %2335 = vmatpush2.msra.mxu0 0.0
    %2336 = vmatprep.subr.mxu0 0.0
    %2337 = vmatpush2.msra.mxu0 0.0
    %2338 = vmatprep.subr.mxu0 0.0
    %2339 = vmatpush2.msra.mxu0 0.0
    %2340 = vmatprep.subr.mxu0 0.0
    %2341 = vmatpush2.msra.mxu0 0.0
    %2342 = vmatprep.subr.mxu0 0.0
    %2343 = vmatpush2.msra.mxu0 0.0
    %2344 = vmatprep.subr.mxu0 0.0
    %2345 = vmatpush2.msra.mxu0 0.0
    %2346 = vmatprep.subr.mxu0 0.0
    %2347 = vmatpush2.msra.mxu0 0.0
    %2348 = vmatprep.subr.mxu0 0.0
    %2349 = vmatpush2.msra.mxu0 0.0
    %2350 = vmatprep.subr.mxu0 0.0
    %2351 = vmatpush2.msra.mxu0 0.0
    %2352 = vmatprep.subr.mxu0 0.0
    %2353 = vmatpush2.msra.mxu0 0.0
    %2354 = vmatprep.subr.mxu0 0.0
    %2355 = vmatpush2.msra.mxu0 0.0
    %2356 = vmatprep.subr.mxu0 0.0
    %2357 = vmatpush2.msra.mxu0 0.0
    %2358 = vmatprep.mubr.f32.mxu0 0.0
    %2359 = vmatmul.mubr.f32.gmra.mxu0 %v2289
    %v2360 = vpop.f32.mrf.mxu0
    %v2361 = vadd.f32 0.0, %v2360
    %v2362 = vpop.f32.mrf.mxu0
    %2363 = vmatprep.mubr.f32.mxu0 0.0
    %2364 = vmatmul.mubr.f32.gmra.mxu0 %v2292
    %v2365 = vpop.f32.mrf.mxu0
    %v2366 = vadd.f32 0.0, %v2365
    %v2367 = vpop.f32.mrf.mxu0
    %2368 = vdwg.mxu0
    %v2369 = vmul.f32 %v2361, 0.0125
    %v2370 = vmul.f32 %v2366, 0.0125
    %2371 = vmatprep.subr.mxu0 0.0
    %2372 = vmatpush1.msra.mxu0 0.0
    %2373 = vmatprep.subr.mxu0 0.0
    %2374 = vmatpush1.msra.mxu0 0.0
    %2375 = vmatprep.subr.mxu0 0.0
    %2376 = vmatpush1.msra.mxu0 0.0
    %2377 = vmatprep.subr.mxu0 0.0
    %2378 = vmatpush1.msra.mxu0 0.0
    %2379 = vmatprep.subr.mxu0 0.0
    %2380 = vmatpush1.msra.mxu0 0.0
    %2381 = vmatprep.subr.mxu0 0.0
    %2382 = vmatpush1.msra.mxu0 0.0
    %2383 = vmatprep.subr.mxu0 0.0
    %2384 = vmatpush1.msra.mxu0 0.0
    %2385 = vmatprep.subr.mxu0 0.0
    %2386 = vmatpush1.msra.mxu0 0.0
    %2387 = vmatprep.subr.mxu0 0.0
    %2388 = vmatpush1.msra.mxu0 0.0
    %2389 = vmatprep.subr.mxu0 0.0
    %2390 = vmatpush1.msra.mxu0 0.0
    %2391 = vmatprep.subr.mxu0 0.0
    %2392 = vmatpush1.msra.mxu0 0.0
    %2393 = vmatprep.subr.mxu0 0.0
    %2394 = vmatpush1.msra.mxu0 0.0
    %2395 = vmatprep.subr.mxu0 0.0
    %2396 = vmatpush1.msra.mxu0 0.0
    %2397 = vmatprep.subr.mxu0 0.0
    %2398 = vmatpush1.msra.mxu0 0.0
    %2399 = vmatprep.subr.mxu0 0.0
    %2400 = vmatpush1.msra.mxu0 %v2287
    %2401 = vmatprep.subr.mxu0 0.0
    %2402 = vmatpush1.msra.mxu0 %v2285
    %2403 = vmatprep.subr.mxu0 0.0
    %2404 = vmatpush2.msra.mxu0 0.0
    %2405 = vmatprep.subr.mxu0 0.0
    %2406 = vmatpush2.msra.mxu0 0.0
    %2407 = vmatprep.subr.mxu0 0.0
    %2408 = vmatpush2.msra.mxu0 0.0
    %2409 = vmatprep.subr.mxu0 0.0
    %2410 = vmatpush2.msra.mxu0 0.0
    %2411 = vmatprep.subr.mxu0 0.0
    %2412 = vmatpush2.msra.mxu0 0.0
    %2413 = vmatprep.subr.mxu0 0.0
    %2414 = vmatpush2.msra.mxu0 0.0
    %2415 = vmatprep.subr.mxu0 0.0
    %2416 = vmatpush2.msra.mxu0 0.0
    %2417 = vmatprep.subr.mxu0 0.0
    %2418 = vmatpush2.msra.mxu0 0.0
    %2419 = vmatprep.subr.mxu0 0.0
    %2420 = vmatpush2.msra.mxu0 0.0
    %2421 = vmatprep.subr.mxu0 0.0
    %2422 = vmatpush2.msra.mxu0 0.0
    %2423 = vmatprep.subr.mxu0 0.0
    %2424 = vmatpush2.msra.mxu0 0.0
    %2425 = vmatprep.subr.mxu0 0.0
    %2426 = vmatpush2.msra.mxu0 0.0
    %2427 = vmatprep.subr.mxu0 0.0
    %2428 = vmatpush2.msra.mxu0 0.0
    %2429 = vmatprep.subr.mxu0 0.0
    %2430 = vmatpush2.msra.mxu0 0.0
    %2431 = vmatprep.subr.mxu0 0.0
    %2432 = vmatpush2.msra.mxu0 0.0
    %2433 = vmatprep.subr.mxu0 0.0
    %2434 = vmatpush2.msra.mxu0 0.0
    %2435 = vmatprep.mubr.f32.mxu0 0.0
    %2436 = vmatmul.mubr.f32.gmra.mxu0 %v2289
    %v2437 = vpop.f32.mrf.mxu0
    %v2438 = vadd.f32 0.0, %v2437
    %v2439 = vpop.f32.mrf.mxu0
    %2440 = vmatprep.mubr.f32.mxu0 0.0
    %2441 = vmatmul.mubr.f32.gmra.mxu0 %v2292
    %v2442 = vpop.f32.mrf.mxu0
    %v2443 = vadd.f32 0.0, %v2442
    %v2444 = vpop.f32.mrf.mxu0
    %2445 = vdwg.mxu0
    %v2446 = vmul.f32 %v2438, 0.0125
    %v2447 = vmul.f32 %v2443, 0.0125
    %v2448 = vmul.f32 %v2369, %v2369
    %v2449 = vmul.f32 %v2370, %v2370
    %v2450 = vsub.f32 %v2446, %v2448
    %v2451 = vsub.f32 %v2447, %v2449
    %v2452 = vadd.f32 %v2450, 1e-05
    %v2453 = vadd.f32 %v2451, 1e-05
    %v2454 = vrsqrt.pop %v2452
    %v2455 = vrsqrt.pop %v2453
    %v2456 = vmul.f32 %v2454, %v2273
    %v2457 = vmul.f32 %v2455, %v2274
    %2459 = vset.pattern.permute.xlu0 0
    %2460 = vperm.xlu0 %2459, %v2369
    %v2461 = vpop.permute.xlu0 %2460
    %2464 = vset.pattern.permute.xlu0 0
    %2465 = vperm.xlu0 %2464, %v2370
    %v2466 = vpop.permute.xlu0 %2465
    %v2468 = vsub.f32 %v2263, %v2461
    %v2469 = vsub.f32 %v2268, %v2466
    %2471 = vset.pattern.permute.xlu0 0
    %2472 = vperm.xlu0 %2471, %v2456
    %v2473 = vpop.permute.xlu0 %2472
    %2476 = vset.pattern.permute.xlu0 0
    %2477 = vperm.xlu0 %2476, %v2457
    %v2478 = vpop.permute.xlu0 %2477
    %v2480 = vmul.f32 %v2468, %v2473
    %v2481 = vmul.f32 %v2469, %v2478
    %2483 = vset.pattern.permute.xlu0 0
    %2484 = vperm.xlu0 %2483, %v2276
    %v2485 = vpop.permute.xlu0 %2484
    %2488 = vset.pattern.permute.xlu0 0
    %2489 = vperm.xlu0 %2488, %v2277
    %v2490 = vpop.permute.xlu0 %2489
    %v2492 = vadd.f32 %v2480, %v2485
    %v2493 = vadd.f32 %v2481, %v2490
    %v2494 = vmax.f32 %v2492, 0.0
    %v2495 = vmax.f32 %v2493, 0.0
    %s2496 = smul.u32 %s963, 2
    %s2497 = sshll.u32 %s2496, 4
    %2498 = dma.done %s97, %s2497
    %s2499 = sshll.u32 %s2496, 4
    %2500 = dma.done %s267, %s2499
    %v2501 = vld [vmem:[#allocation3] sm:$0xff]
    %v2502 = vld [vmem:[#allocation3 + $0x8] sm:$0xff]
    %v2503 = vld [vmem:[#allocation3 + $0x10] sm:$0xff]
    %v2504 = vld [vmem:[#allocation3 + $0x18] sm:$0xff]
    %v2505 = vld [vmem:[#allocation3 + $0x20] sm:$0xff]
    %v2506 = vld [vmem:[#allocation3 + $0x28] sm:$0xff]
    %v2507 = vld [vmem:[#allocation3 + $0x30] sm:$0xff]
    %v2508 = vld [vmem:[#allocation3 + $0x38] sm:$0xff]
    %v2509 = vld [vmem:[#allocation3 + $0x40] sm:$0xff]
    %v2510 = vld [vmem:[#allocation3 + $0x48] sm:$0xff]
    %v2511 = vld [vmem:[#allocation3 + $0x50] sm:$0xff]
    %v2512 = vld [vmem:[#allocation3 + $0x58] sm:$0xff]
    %v2513 = vld [vmem:[#allocation3 + $0x60] sm:$0xff]
    %v2514 = vld [vmem:[#allocation3 + $0x68] sm:$0xff]
    %v2515 = vld [vmem:[#allocation3 + $0x70] sm:$0xff]
    %v2516 = vld [vmem:[#allocation3 + $0x78] sm:$0xff]
    %v2517 = vld [vmem:[#allocation3 + $0x80] sm:$0xff]
    %v2518 = vld [vmem:[#allocation3 + $0x88] sm:$0xff]
    %v2519 = vld [vmem:[#allocation3 + $0x90] sm:$0xff]
    %v2520 = vld [vmem:[#allocation3 + $0x98] sm:$0xff]
    %v2521 = vld [vmem:[#allocation3 + $0xa0] sm:$0xff]
    %v2522 = vld [vmem:[#allocation3 + $0xa8] sm:$0xff]
    %v2523 = vld [vmem:[#allocation3 + $0xb0] sm:$0xff]
    %v2524 = vld [vmem:[#allocation3 + $0xb8] sm:$0xff]
    %v2525 = vld [vmem:[#allocation3 + $0xc0] sm:$0xff]
    %v2526 = vld [vmem:[#allocation3 + $0xc8] sm:$0xff]
    %v2527 = vld [vmem:[#allocation3 + $0xd0] sm:$0xff]
    %v2528 = vld [vmem:[#allocation3 + $0xd8] sm:$0xff]
    %v2529 = vld [vmem:[#allocation3 + $0xe0] sm:$0xff]
    %v2530 = vld [vmem:[#allocation3 + $0xe8] sm:$0xff]
    %v2531 = vld [vmem:[#allocation3 + $0xf0] sm:$0xff]
    %v2532 = vld [vmem:[#allocation3 + $0xf8] sm:$0xff]
    %v2533 = vld [vmem:[#allocation3 + $0x100] sm:$0xff]
    %v2534 = vld [vmem:[#allocation3 + $0x108] sm:$0xff]
    %v2535 = vld [vmem:[#allocation3 + $0x110] sm:$0xff]
    %v2536 = vld [vmem:[#allocation3 + $0x118] sm:$0xff]
    %v2537 = vld [vmem:[#allocation3 + $0x120] sm:$0xff]
    %v2538 = vld [vmem:[#allocation3 + $0x128] sm:$0xff]
    %v2539 = vld [vmem:[#allocation3 + $0x130] sm:$0xff]
    %v2540 = vld [vmem:[#allocation3 + $0x138] sm:$0xff]
    %v2541 = vld [vmem:[#allocation3 + $0x140] sm:$0xff]
    %v2542 = vld [vmem:[#allocation3 + $0x148] sm:$0xff]
    %v2543 = vld [vmem:[#allocation3 + $0x150] sm:$0xff]
    %v2544 = vld [vmem:[#allocation3 + $0x158] sm:$0xff]
    %v2545 = vld [vmem:[#allocation3 + $0x160] sm:$0xff]
    %v2546 = vld [vmem:[#allocation3 + $0x168] sm:$0xff]
    %v2547 = vld [vmem:[#allocation3 + $0x170] sm:$0xff]
    %v2548 = vld [vmem:[#allocation3 + $0x178] sm:$0xff]
    %v2549 = vld [vmem:[#allocation3 + $0x180] sm:$0xff]
    %v2550 = vld [vmem:[#allocation3 + $0x188] sm:$0xff]
    %v2551 = vld [vmem:[#allocation3 + $0x190] sm:$0xff]
    %v2552 = vld [vmem:[#allocation3 + $0x198] sm:$0xff]
    %v2553 = vld [vmem:[#allocation3 + $0x1a0] sm:$0xff]
    %v2554 = vld [vmem:[#allocation3 + $0x1a8] sm:$0xff]
    %v2555 = vld [vmem:[#allocation3 + $0x1b0] sm:$0xff]
    %v2556 = vld [vmem:[#allocation3 + $0x1b8] sm:$0xff]
    %v2557 = vld [vmem:[#allocation3 + $0x1c0] sm:$0xff]
    %v2558 = vld [vmem:[#allocation3 + $0x1c8] sm:$0xff]
    %v2559 = vld [vmem:[#allocation3 + $0x1d0] sm:$0xff]
    %v2560 = vld [vmem:[#allocation3 + $0x1d8] sm:$0xff]
    %v2561 = vld [vmem:[#allocation3 + $0x1e0] sm:$0xff]
    %v2562 = vld [vmem:[#allocation3 + $0x1e8] sm:$0xff]
    %v2563 = vld [vmem:[#allocation3 + $0x1f0] sm:$0xff]
    %v2564 = vld [vmem:[#allocation3 + $0x1f8] sm:$0xff]
    %v2565 = vld [vmem:[#allocation4] sm:$0xff]
    %v2566 = vld [vmem:[#allocation4 + $0x8] sm:$0xff]
    %v2567 = vld [vmem:[#allocation4 + $0x10] sm:$0xff]
    %v2568 = vld [vmem:[#allocation4 + $0x18] sm:$0xff]
    %v2569 = vld [vmem:[#allocation4 + $0x20] sm:$0xff]
    %v2570 = vld [vmem:[#allocation4 + $0x28] sm:$0xff]
    %v2571 = vld [vmem:[#allocation4 + $0x30] sm:$0xff]
    %v2572 = vld [vmem:[#allocation4 + $0x38] sm:$0xff]
    %v2573 = vld [vmem:[#allocation4 + $0x40] sm:$0xff]
    %v2574 = vld [vmem:[#allocation4 + $0x48] sm:$0xff]
    %v2575 = vld [vmem:[#allocation4 + $0x50] sm:$0xff]
    %v2576 = vld [vmem:[#allocation4 + $0x58] sm:$0xff]
    %v2577 = vld [vmem:[#allocation4 + $0x60] sm:$0xff]
    %v2578 = vld [vmem:[#allocation4 + $0x68] sm:$0xff]
    %v2579 = vld [vmem:[#allocation4 + $0x70] sm:$0xff]
    %v2580 = vld [vmem:[#allocation4 + $0x78] sm:$0xff]
    %v2581 = vld [vmem:[#allocation4 + $0x80] sm:$0xff]
    %v2582 = vld [vmem:[#allocation4 + $0x88] sm:$0xff]
    %v2583 = vld [vmem:[#allocation4 + $0x90] sm:$0xff]
    %v2584 = vld [vmem:[#allocation4 + $0x98] sm:$0xff]
    %v2585 = vld [vmem:[#allocation4 + $0xa0] sm:$0xff]
    %v2586 = vld [vmem:[#allocation4 + $0xa8] sm:$0xff]
    %v2587 = vld [vmem:[#allocation4 + $0xb0] sm:$0xff]
    %v2588 = vld [vmem:[#allocation4 + $0xb8] sm:$0xff]
    %v2589 = vld [vmem:[#allocation4 + $0xc0] sm:$0xff]
    %v2590 = vld [vmem:[#allocation4 + $0xc8] sm:$0xff]
    %v2591 = vld [vmem:[#allocation4 + $0xd0] sm:$0xff]
    %v2592 = vld [vmem:[#allocation4 + $0xd8] sm:$0xff]
    %v2593 = vld [vmem:[#allocation4 + $0xe0] sm:$0xff]
    %v2594 = vld [vmem:[#allocation4 + $0xe8] sm:$0xff]
    %v2595 = vld [vmem:[#allocation4 + $0xf0] sm:$0xff]
    %v2596 = vld [vmem:[#allocation4 + $0xf8] sm:$0xff]
    %v2597 = vld [vmem:[#allocation4 + $0x100] sm:$0xff]
    %v2598 = vld [vmem:[#allocation4 + $0x108] sm:$0xff]
    %v2599 = vld [vmem:[#allocation4 + $0x110] sm:$0xff]
    %v2600 = vld [vmem:[#allocation4 + $0x118] sm:$0xff]
    %v2601 = vld [vmem:[#allocation4 + $0x120] sm:$0xff]
    %v2602 = vld [vmem:[#allocation4 + $0x128] sm:$0xff]
    %v2603 = vld [vmem:[#allocation4 + $0x130] sm:$0xff]
    %v2604 = vld [vmem:[#allocation4 + $0x138] sm:$0xff]
    %v2605 = vld [vmem:[#allocation4 + $0x140] sm:$0xff]
    %v2606 = vld [vmem:[#allocation4 + $0x148] sm:$0xff]
    %v2607 = vld [vmem:[#allocation4 + $0x150] sm:$0xff]
    %v2608 = vld [vmem:[#allocation4 + $0x158] sm:$0xff]
    %v2609 = vld [vmem:[#allocation4 + $0x160] sm:$0xff]
    %v2610 = vld [vmem:[#allocation4 + $0x168] sm:$0xff]
    %v2611 = vld [vmem:[#allocation4 + $0x170] sm:$0xff]
    %v2612 = vld [vmem:[#allocation4 + $0x178] sm:$0xff]
    %v2613 = vld [vmem:[#allocation4 + $0x180] sm:$0xff]
    %v2614 = vld [vmem:[#allocation4 + $0x188] sm:$0xff]
    %v2615 = vld [vmem:[#allocation4 + $0x190] sm:$0xff]
    %v2616 = vld [vmem:[#allocation4 + $0x198] sm:$0xff]
    %v2617 = vld [vmem:[#allocation4 + $0x1a0] sm:$0xff]
    %v2618 = vld [vmem:[#allocation4 + $0x1a8] sm:$0xff]
    %v2619 = vld [vmem:[#allocation4 + $0x1b0] sm:$0xff]
    %v2620 = vld [vmem:[#allocation4 + $0x1b8] sm:$0xff]
    %v2621 = vld [vmem:[#allocation4 + $0x1c0] sm:$0xff]
    %v2622 = vld [vmem:[#allocation4 + $0x1c8] sm:$0xff]
    %v2623 = vld [vmem:[#allocation4 + $0x1d0] sm:$0xff]
    %v2624 = vld [vmem:[#allocation4 + $0x1d8] sm:$0xff]
    %v2625 = vld [vmem:[#allocation4 + $0x1e0] sm:$0xff]
    %v2626 = vld [vmem:[#allocation4 + $0x1e8] sm:$0xff]
    %v2627 = vld [vmem:[#allocation4 + $0x1f0] sm:$0xff]
    %v2628 = vld [vmem:[#allocation4 + $0x1f8] sm:$0xff]
    %2629 = vmatprep.subr.mxu0 %v2596
    %2630 = vmatpush1.msra.mxu0 %v2595
    %2631 = vmatprep.subr.mxu0 %v2594
    %2632 = vmatpush1.msra.mxu0 %v2593
    %2633 = vmatprep.subr.mxu0 %v2592
    %2634 = vmatpush1.msra.mxu0 %v2591
    %2635 = vmatprep.subr.mxu0 %v2590
    %2636 = vmatpush1.msra.mxu0 %v2589
    %2637 = vmatprep.subr.mxu0 %v2588
    %2638 = vmatpush1.msra.mxu0 %v2587
    %2639 = vmatprep.subr.mxu0 %v2586
    %2640 = vmatpush1.msra.mxu0 %v2585
    %2641 = vmatprep.subr.mxu0 %v2584
    %2642 = vmatpush1.msra.mxu0 %v2583
    %2643 = vmatprep.subr.mxu0 %v2582
    %2644 = vmatpush1.msra.mxu0 %v2581
    %2645 = vmatprep.subr.mxu0 %v2580
    %2646 = vmatpush1.msra.mxu0 %v2579
    %2647 = vmatprep.subr.mxu0 %v2578
    %2648 = vmatpush1.msra.mxu0 %v2577
    %2649 = vmatprep.subr.mxu0 %v2576
    %2650 = vmatpush1.msra.mxu0 %v2575
    %2651 = vmatprep.subr.mxu0 %v2574
    %2652 = vmatpush1.msra.mxu0 %v2573
    %2653 = vmatprep.subr.mxu0 %v2572
    %2654 = vmatpush1.msra.mxu0 %v2571
    %2655 = vmatprep.subr.mxu0 %v2570
    %2656 = vmatpush1.msra.mxu0 %v2569
    %2657 = vmatprep.subr.mxu0 %v2568
    %2658 = vmatpush1.msra.mxu0 %v2567
    %2659 = vmatprep.subr.mxu0 %v2566
    %2660 = vmatpush1.msra.mxu0 %v2565
    %2661 = vmatprep.subr.mxu0 %v2628
    %2662 = vmatpush2.msra.mxu0 %v2627
    %2663 = vmatprep.subr.mxu0 %v2626
    %2664 = vmatpush2.msra.mxu0 %v2625
    %2665 = vmatprep.subr.mxu0 %v2624
    %2666 = vmatpush2.msra.mxu0 %v2623
    %2667 = vmatprep.subr.mxu0 %v2622
    %2668 = vmatpush2.msra.mxu0 %v2621
    %2669 = vmatprep.subr.mxu0 %v2620
    %2670 = vmatpush2.msra.mxu0 %v2619
    %2671 = vmatprep.subr.mxu0 %v2618
    %2672 = vmatpush2.msra.mxu0 %v2617
    %2673 = vmatprep.subr.mxu0 %v2616
    %2674 = vmatpush2.msra.mxu0 %v2615
    %2675 = vmatprep.subr.mxu0 %v2614
    %2676 = vmatpush2.msra.mxu0 %v2613
    %2677 = vmatprep.subr.mxu0 %v2612
    %2678 = vmatpush2.msra.mxu0 %v2611
    %2679 = vmatprep.subr.mxu0 %v2610
    %2680 = vmatpush2.msra.mxu0 %v2609
    %2681 = vmatprep.subr.mxu0 %v2608
    %2682 = vmatpush2.msra.mxu0 %v2607
    %2683 = vmatprep.subr.mxu0 %v2606
    %2684 = vmatpush2.msra.mxu0 %v2605
    %2685 = vmatprep.subr.mxu0 %v2604
    %2686 = vmatpush2.msra.mxu0 %v2603
    %2687 = vmatprep.subr.mxu0 %v2602
    %2688 = vmatpush2.msra.mxu0 %v2601
    %2689 = vmatprep.subr.mxu0 %v2600
    %2690 = vmatpush2.msra.mxu0 %v2599
    %2691 = vmatprep.subr.mxu0 %v2598
    %2692 = vmatpush2.msra.mxu0 %v2597
    %2693 = vmatprep.mubr.f32.mxu0 %v1560
    %2694 = vmatmul.mubr.f32.gmra.mxu0 %v1559
    %v2695 = vpop.f32.mrf.mxu0
    %v2696 = vadd.f32 0.0, %v2695
    %v2697 = vpop.f32.mrf.mxu0
    %v2698 = vadd.f32 0.0, %v2697
    %2699 = vdwg.mxu0
    %2700 = vmatprep.subr.mxu0 %v2532
    %2701 = vmatpush1.msra.mxu0 %v2531
    %2702 = vmatprep.subr.mxu0 %v2530
    %2703 = vmatpush1.msra.mxu0 %v2529
    %2704 = vmatprep.subr.mxu0 %v2528
    %2705 = vmatpush1.msra.mxu0 %v2527
    %2706 = vmatprep.subr.mxu0 %v2526
    %2707 = vmatpush1.msra.mxu0 %v2525
    %2708 = vmatprep.subr.mxu0 %v2524
    %2709 = vmatpush1.msra.mxu0 %v2523
    %2710 = vmatprep.subr.mxu0 %v2522
    %2711 = vmatpush1.msra.mxu0 %v2521
    %2712 = vmatprep.subr.mxu0 %v2520
    %2713 = vmatpush1.msra.mxu0 %v2519
    %2714 = vmatprep.subr.mxu0 %v2518
    %2715 = vmatpush1.msra.mxu0 %v2517
    %2716 = vmatprep.subr.mxu0 %v2516
    %2717 = vmatpush1.msra.mxu0 %v2515
    %2718 = vmatprep.subr.mxu0 %v2514
    %2719 = vmatpush1.msra.mxu0 %v2513
    %2720 = vmatprep.subr.mxu0 %v2512
    %2721 = vmatpush1.msra.mxu0 %v2511
    %2722 = vmatprep.subr.mxu0 %v2510
    %2723 = vmatpush1.msra.mxu0 %v2509
    %2724 = vmatprep.subr.mxu0 %v2508
    %2725 = vmatpush1.msra.mxu0 %v2507
    %2726 = vmatprep.subr.mxu0 %v2506
    %2727 = vmatpush1.msra.mxu0 %v2505
    %2728 = vmatprep.subr.mxu0 %v2504
    %2729 = vmatpush1.msra.mxu0 %v2503
    %2730 = vmatprep.subr.mxu0 %v2502
    %2731 = vmatpush1.msra.mxu0 %v2501
    %2732 = vmatprep.subr.mxu0 %v2564
    %2733 = vmatpush2.msra.mxu0 %v2563
    %2734 = vmatprep.subr.mxu0 %v2562
    %2735 = vmatpush2.msra.mxu0 %v2561
    %2736 = vmatprep.subr.mxu0 %v2560
    %2737 = vmatpush2.msra.mxu0 %v2559
    %2738 = vmatprep.subr.mxu0 %v2558
    %2739 = vmatpush2.msra.mxu0 %v2557
    %2740 = vmatprep.subr.mxu0 %v2556
    %2741 = vmatpush2.msra.mxu0 %v2555
    %2742 = vmatprep.subr.mxu0 %v2554
    %2743 = vmatpush2.msra.mxu0 %v2553
    %2744 = vmatprep.subr.mxu0 %v2552
    %2745 = vmatpush2.msra.mxu0 %v2551
    %2746 = vmatprep.subr.mxu0 %v2550
    %2747 = vmatpush2.msra.mxu0 %v2549
    %2748 = vmatprep.subr.mxu0 %v2548
    %2749 = vmatpush2.msra.mxu0 %v2547
    %2750 = vmatprep.subr.mxu0 %v2546
    %2751 = vmatpush2.msra.mxu0 %v2545
    %2752 = vmatprep.subr.mxu0 %v2544
    %2753 = vmatpush2.msra.mxu0 %v2543
    %2754 = vmatprep.subr.mxu0 %v2542
    %2755 = vmatpush2.msra.mxu0 %v2541
    %2756 = vmatprep.subr.mxu0 %v2540
    %2757 = vmatpush2.msra.mxu0 %v2539
    %2758 = vmatprep.subr.mxu0 %v2538
    %2759 = vmatpush2.msra.mxu0 %v2537
    %2760 = vmatprep.subr.mxu0 %v2536
    %2761 = vmatpush2.msra.mxu0 %v2535
    %2762 = vmatprep.subr.mxu0 %v2534
    %2763 = vmatpush2.msra.mxu0 %v2533
    %2764 = vmatprep.mubr.f32.mxu0 %v1558
    %2765 = vmatmul.mubr.f32.gmra.mxu0 %v1557
    %v2766 = vpop.f32.mrf.mxu0
    %v2767 = vadd.f32 %v2696, %v2766
    %v2768 = vpop.f32.mrf.mxu0
    %v2769 = vadd.f32 %v2698, %v2768
    %2770 = vdwg.mxu0
    %s2771 = smul.u32 8, 16
    %s2772 = smul.u32 %s2771, 2
    %s2773 = sshll.u32 %s2772, 4
    %2774 = dma.done %s291, %s2773
    %s2775 = sshll.u32 %s2772, 4
    %2776 = dma.done %s397, %s2775
    %v2777 = vld [vmem:[#allocation6] sm:$0xff]
    %v2778 = vld [vmem:[#allocation6 + $0x8] sm:$0xff]
    %v2779 = vld [vmem:[#allocation6 + $0x10] sm:$0xff]
    %v2780 = vld [vmem:[#allocation6 + $0x18] sm:$0xff]
    %v2781 = vld [vmem:[#allocation6 + $0x20] sm:$0xff]
    %v2782 = vld [vmem:[#allocation6 + $0x28] sm:$0xff]
    %v2783 = vld [vmem:[#allocation6 + $0x30] sm:$0xff]
    %v2784 = vld [vmem:[#allocation6 + $0x38] sm:$0xff]
    %v2785 = vld [vmem:[#allocation6 + $0x40] sm:$0xff]
    %v2786 = vld [vmem:[#allocation6 + $0x48] sm:$0xff]
    %v2787 = vld [vmem:[#allocation6 + $0x50] sm:$0xff]
    %v2788 = vld [vmem:[#allocation6 + $0x58] sm:$0xff]
    %v2789 = vld [vmem:[#allocation6 + $0x60] sm:$0xff]
    %v2790 = vld [vmem:[#allocation6 + $0x68] sm:$0xff]
    %v2791 = vld [vmem:[#allocation6 + $0x70] sm:$0xff]
    %v2792 = vld [vmem:[#allocation6 + $0x78] sm:$0xff]
    %v2793 = vld [vmem:[#allocation6 + $0x80] sm:$0xff]
    %v2794 = vld [vmem:[#allocation6 + $0x88] sm:$0xff]
    %v2795 = vld [vmem:[#allocation6 + $0x90] sm:$0xff]
    %v2796 = vld [vmem:[#allocation6 + $0x98] sm:$0xff]
    %v2797 = vld [vmem:[#allocation6 + $0xa0] sm:$0xff]
    %v2798 = vld [vmem:[#allocation6 + $0xa8] sm:$0xff]
    %v2799 = vld [vmem:[#allocation6 + $0xb0] sm:$0xff]
    %v2800 = vld [vmem:[#allocation6 + $0xb8] sm:$0xff]
    %v2801 = vld [vmem:[#allocation6 + $0xc0] sm:$0xff]
    %v2802 = vld [vmem:[#allocation6 + $0xc8] sm:$0xff]
    %v2803 = vld [vmem:[#allocation6 + $0xd0] sm:$0xff]
    %v2804 = vld [vmem:[#allocation6 + $0xd8] sm:$0xff]
    %v2805 = vld [vmem:[#allocation6 + $0xe0] sm:$0xff]
    %v2806 = vld [vmem:[#allocation6 + $0xe8] sm:$0xff]
    %v2807 = vld [vmem:[#allocation6 + $0xf0] sm:$0xff]
    %v2808 = vld [vmem:[#allocation6 + $0xf8] sm:$0xff]
    %v2809 = vld [vmem:[#allocation7] sm:$0xff]
    %v2810 = vld [vmem:[#allocation7 + $0x8] sm:$0xff]
    %v2811 = vld [vmem:[#allocation7 + $0x10] sm:$0xff]
    %v2812 = vld [vmem:[#allocation7 + $0x18] sm:$0xff]
    %v2813 = vld [vmem:[#allocation7 + $0x20] sm:$0xff]
    %v2814 = vld [vmem:[#allocation7 + $0x28] sm:$0xff]
    %v2815 = vld [vmem:[#allocation7 + $0x30] sm:$0xff]
    %v2816 = vld [vmem:[#allocation7 + $0x38] sm:$0xff]
    %v2817 = vld [vmem:[#allocation7 + $0x40] sm:$0xff]
    %v2818 = vld [vmem:[#allocation7 + $0x48] sm:$0xff]
    %v2819 = vld [vmem:[#allocation7 + $0x50] sm:$0xff]
    %v2820 = vld [vmem:[#allocation7 + $0x58] sm:$0xff]
    %v2821 = vld [vmem:[#allocation7 + $0x60] sm:$0xff]
    %v2822 = vld [vmem:[#allocation7 + $0x68] sm:$0xff]
    %v2823 = vld [vmem:[#allocation7 + $0x70] sm:$0xff]
    %v2824 = vld [vmem:[#allocation7 + $0x78] sm:$0xff]
    %v2825 = vld [vmem:[#allocation7 + $0x80] sm:$0xff]
    %v2826 = vld [vmem:[#allocation7 + $0x88] sm:$0xff]
    %v2827 = vld [vmem:[#allocation7 + $0x90] sm:$0xff]
    %v2828 = vld [vmem:[#allocation7 + $0x98] sm:$0xff]
    %v2829 = vld [vmem:[#allocation7 + $0xa0] sm:$0xff]
    %v2830 = vld [vmem:[#allocation7 + $0xa8] sm:$0xff]
    %v2831 = vld [vmem:[#allocation7 + $0xb0] sm:$0xff]
    %v2832 = vld [vmem:[#allocation7 + $0xb8] sm:$0xff]
    %v2833 = vld [vmem:[#allocation7 + $0xc0] sm:$0xff]
    %v2834 = vld [vmem:[#allocation7 + $0xc8] sm:$0xff]
    %v2835 = vld [vmem:[#allocation7 + $0xd0] sm:$0xff]
    %v2836 = vld [vmem:[#allocation7 + $0xd8] sm:$0xff]
    %v2837 = vld [vmem:[#allocation7 + $0xe0] sm:$0xff]
    %v2838 = vld [vmem:[#allocation7 + $0xe8] sm:$0xff]
    %v2839 = vld [vmem:[#allocation7 + $0xf0] sm:$0xff]
    %v2840 = vld [vmem:[#allocation7 + $0xf8] sm:$0xff]
    %2841 = vmatprep.subr.mxu0 %v2840
    %2842 = vmatpush1.msra.mxu0 %v2839
    %2843 = vmatprep.subr.mxu0 %v2838
    %2844 = vmatpush1.msra.mxu0 %v2837
    %2845 = vmatprep.subr.mxu0 %v2836
    %2846 = vmatpush1.msra.mxu0 %v2835
    %2847 = vmatprep.subr.mxu0 %v2834
    %2848 = vmatpush1.msra.mxu0 %v2833
    %2849 = vmatprep.subr.mxu0 %v2832
    %2850 = vmatpush1.msra.mxu0 %v2831
    %2851 = vmatprep.subr.mxu0 %v2830
    %2852 = vmatpush1.msra.mxu0 %v2829
    %2853 = vmatprep.subr.mxu0 %v2828
    %2854 = vmatpush1.msra.mxu0 %v2827
    %2855 = vmatprep.subr.mxu0 %v2826
    %2856 = vmatpush1.msra.mxu0 %v2825
    %2857 = vmatprep.subr.mxu0 %v2824
    %2858 = vmatpush1.msra.mxu0 %v2823
    %2859 = vmatprep.subr.mxu0 %v2822
    %2860 = vmatpush1.msra.mxu0 %v2821
    %2861 = vmatprep.subr.mxu0 %v2820
    %2862 = vmatpush1.msra.mxu0 %v2819
    %2863 = vmatprep.subr.mxu0 %v2818
    %2864 = vmatpush1.msra.mxu0 %v2817
    %2865 = vmatprep.subr.mxu0 %v2816
    %2866 = vmatpush1.msra.mxu0 %v2815
    %2867 = vmatprep.subr.mxu0 %v2814
    %2868 = vmatpush1.msra.mxu0 %v2813
    %2869 = vmatprep.subr.mxu0 %v2812
    %2870 = vmatpush1.msra.mxu0 %v2811
    %2871 = vmatprep.subr.mxu0 %v2810
    %2872 = vmatpush1.msra.mxu0 %v2809
    %2873 = vmatprep.subr.mxu0 0.0
    %2874 = vmatpush2.msra.mxu0 0.0
    %2875 = vmatprep.subr.mxu0 0.0
    %2876 = vmatpush2.msra.mxu0 0.0
    %2877 = vmatprep.subr.mxu0 0.0
    %2878 = vmatpush2.msra.mxu0 0.0
    %2879 = vmatprep.subr.mxu0 0.0
    %2880 = vmatpush2.msra.mxu0 0.0
    %2881 = vmatprep.subr.mxu0 0.0
    %2882 = vmatpush2.msra.mxu0 0.0
    %2883 = vmatprep.subr.mxu0 0.0
    %2884 = vmatpush2.msra.mxu0 0.0
    %2885 = vmatprep.subr.mxu0 0.0
    %2886 = vmatpush2.msra.mxu0 0.0
    %2887 = vmatprep.subr.mxu0 0.0
    %2888 = vmatpush2.msra.mxu0 0.0
    %2889 = vmatprep.subr.mxu0 0.0
    %2890 = vmatpush2.msra.mxu0 0.0
    %2891 = vmatprep.subr.mxu0 0.0
    %2892 = vmatpush2.msra.mxu0 0.0
    %2893 = vmatprep.subr.mxu0 0.0
    %2894 = vmatpush2.msra.mxu0 0.0
    %2895 = vmatprep.subr.mxu0 0.0
    %2896 = vmatpush2.msra.mxu0 0.0
    %2897 = vmatprep.subr.mxu0 0.0
    %2898 = vmatpush2.msra.mxu0 0.0
    %2899 = vmatprep.subr.mxu0 0.0
    %2900 = vmatpush2.msra.mxu0 0.0
    %2901 = vmatprep.subr.mxu0 0.0
    %2902 = vmatpush2.msra.mxu0 0.0
    %2903 = vmatprep.subr.mxu0 0.0
    %2904 = vmatpush2.msra.mxu0 0.0
    %2905 = vmatprep.mubr.f32.mxu0 0.0
    %2906 = vmatmul.mubr.f32.gmra.mxu0 %v2495
    %v2907 = vpop.f32.mrf.mxu0
    %v2908 = vadd.f32 0.0, %v2907
    %v2909 = vpop.f32.mrf.mxu0
    %v2910 = vadd.f32 0.0, %v2909
    %2911 = vdwg.mxu0
    %2912 = vmatprep.subr.mxu0 %v2808
    %2913 = vmatpush1.msra.mxu0 %v2807
    %2914 = vmatprep.subr.mxu0 %v2806
    %2915 = vmatpush1.msra.mxu0 %v2805
    %2916 = vmatprep.subr.mxu0 %v2804
    %2917 = vmatpush1.msra.mxu0 %v2803
    %2918 = vmatprep.subr.mxu0 %v2802
    %2919 = vmatpush1.msra.mxu0 %v2801
    %2920 = vmatprep.subr.mxu0 %v2800
    %2921 = vmatpush1.msra.mxu0 %v2799
    %2922 = vmatprep.subr.mxu0 %v2798
    %2923 = vmatpush1.msra.mxu0 %v2797
    %2924 = vmatprep.subr.mxu0 %v2796
    %2925 = vmatpush1.msra.mxu0 %v2795
    %2926 = vmatprep.subr.mxu0 %v2794
    %2927 = vmatpush1.msra.mxu0 %v2793
    %2928 = vmatprep.subr.mxu0 %v2792
    %2929 = vmatpush1.msra.mxu0 %v2791
    %2930 = vmatprep.subr.mxu0 %v2790
    %2931 = vmatpush1.msra.mxu0 %v2789
    %2932 = vmatprep.subr.mxu0 %v2788
    %2933 = vmatpush1.msra.mxu0 %v2787
    %2934 = vmatprep.subr.mxu0 %v2786
    %2935 = vmatpush1.msra.mxu0 %v2785
    %2936 = vmatprep.subr.mxu0 %v2784
    %2937 = vmatpush1.msra.mxu0 %v2783
    %2938 = vmatprep.subr.mxu0 %v2782
    %2939 = vmatpush1.msra.mxu0 %v2781
    %2940 = vmatprep.subr.mxu0 %v2780
    %2941 = vmatpush1.msra.mxu0 %v2779
    %2942 = vmatprep.subr.mxu0 %v2778
    %2943 = vmatpush1.msra.mxu0 %v2777
    %2944 = vmatprep.subr.mxu0 0.0
    %2945 = vmatpush2.msra.mxu0 0.0
    %2946 = vmatprep.subr.mxu0 0.0
    %2947 = vmatpush2.msra.mxu0 0.0
    %2948 = vmatprep.subr.mxu0 0.0
    %2949 = vmatpush2.msra.mxu0 0.0
    %2950 = vmatprep.subr.mxu0 0.0
    %2951 = vmatpush2.msra.mxu0 0.0
    %2952 = vmatprep.subr.mxu0 0.0
    %2953 = vmatpush2.msra.mxu0 0.0
    %2954 = vmatprep.subr.mxu0 0.0
    %2955 = vmatpush2.msra.mxu0 0.0
    %2956 = vmatprep.subr.mxu0 0.0
    %2957 = vmatpush2.msra.mxu0 0.0
    %2958 = vmatprep.subr.mxu0 0.0
    %2959 = vmatpush2.msra.mxu0 0.0
    %2960 = vmatprep.subr.mxu0 0.0
    %2961 = vmatpush2.msra.mxu0 0.0
    %2962 = vmatprep.subr.mxu0 0.0
    %2963 = vmatpush2.msra.mxu0 0.0
    %2964 = vmatprep.subr.mxu0 0.0
    %2965 = vmatpush2.msra.mxu0 0.0
    %2966 = vmatprep.subr.mxu0 0.0
    %2967 = vmatpush2.msra.mxu0 0.0
    %2968 = vmatprep.subr.mxu0 0.0
    %2969 = vmatpush2.msra.mxu0 0.0
    %2970 = vmatprep.subr.mxu0 0.0
    %2971 = vmatpush2.msra.mxu0 0.0
    %2972 = vmatprep.subr.mxu0 0.0
    %2973 = vmatpush2.msra.mxu0 0.0
    %2974 = vmatprep.subr.mxu0 0.0
    %2975 = vmatpush2.msra.mxu0 0.0
    %2976 = vmatprep.mubr.f32.mxu0 0.0
    %2977 = vmatmul.mubr.f32.gmra.mxu0 %v2494
    %v2978 = vpop.f32.mrf.mxu0
    %v2979 = vadd.f32 %v2908, %v2978
    %v2980 = vpop.f32.mrf.mxu0
    %v2981 = vadd.f32 %v2910, %v2980
    %2982 = vdwg.mxu0
    %v2983 = vadd.f32 %v961, %v2767
    %v2984 = vadd.f32 %v962, %v2769
    %v2985 = vadd.f32 %v2983, %v2979
    %v2986 = vadd.f32 %v2984, %v2981
    %v2987 = vld [vmem:[%s2] sm:$0xff]
    %v2988 = vld [vmem:[%s2 + $0x8] sm:$0xff]
    %v2990 = vsel %vm789, %v2987, 0
    %v2993 = vsel %vm789, %v2988, 0
    %2995 = vmatprep.subr.mxu0 0.0
    %2996 = vmatpush1.msra.mxu0 0.0
    %2997 = vmatprep.subr.mxu0 0.0
    %2998 = vmatpush1.msra.mxu0 0.0
    %2999 = vmatprep.subr.mxu0 0.0
    %3000 = vmatpush1.msra.mxu0 0.0
    %3001 = vmatprep.subr.mxu0 0.0
    %3002 = vmatpush1.msra.mxu0 0.0
    %3003 = vmatprep.subr.mxu0 0.0
    %3004 = vmatpush1.msra.mxu0 0.0
    %3005 = vmatprep.subr.mxu0 0.0
    %3006 = vmatpush1.msra.mxu0 0.0
    %3007 = vmatprep.subr.mxu0 0.0
    %3008 = vmatpush1.msra.mxu0 0.0
    %3009 = vmatprep.subr.mxu0 0.0
    %3010 = vmatpush1.msra.mxu0 0.0
    %3011 = vmatprep.subr.mxu0 0.0
    %3012 = vmatpush1.msra.mxu0 0.0
    %3013 = vmatprep.subr.mxu0 0.0
    %3014 = vmatpush1.msra.mxu0 0.0
    %3015 = vmatprep.subr.mxu0 0.0
    %3016 = vmatpush1.msra.mxu0 0.0
    %3017 = vmatprep.subr.mxu0 0.0
    %3018 = vmatpush1.msra.mxu0 0.0
    %3019 = vmatprep.subr.mxu0 0.0
    %3020 = vmatpush1.msra.mxu0 0.0
    %3021 = vmatprep.subr.mxu0 0.0
    %3022 = vmatpush1.msra.mxu0 0.0
    %3023 = vmatprep.subr.mxu0 0.0
    %3024 = vmatpush1.msra.mxu0 0.0
    %3025 = vmatprep.subr.mxu0 %v2986
    %3026 = vmatpush1.msra.mxu0 %v2985
    %3027 = vmatprep.subr.mxu0 0.0
    %3028 = vmatpush2.msra.mxu0 0.0
    %3029 = vmatprep.subr.mxu0 0.0
    %3030 = vmatpush2.msra.mxu0 0.0
    %3031 = vmatprep.subr.mxu0 0.0
    %3032 = vmatpush2.msra.mxu0 0.0
    %3033 = vmatprep.subr.mxu0 0.0
    %3034 = vmatpush2.msra.mxu0 0.0
    %3035 = vmatprep.subr.mxu0 0.0
    %3036 = vmatpush2.msra.mxu0 0.0
    %3037 = vmatprep.subr.mxu0 0.0
    %3038 = vmatpush2.msra.mxu0 0.0
    %3039 = vmatprep.subr.mxu0 0.0
    %3040 = vmatpush2.msra.mxu0 0.0
    %3041 = vmatprep.subr.mxu0 0.0
    %3042 = vmatpush2.msra.mxu0 0.0
    %3043 = vmatprep.subr.mxu0 0.0
    %3044 = vmatpush2.msra.mxu0 0.0
    %3045 = vmatprep.subr.mxu0 0.0
    %3046 = vmatpush2.msra.mxu0 0.0
    %3047 = vmatprep.subr.mxu0 0.0
    %3048 = vmatpush2.msra.mxu0 0.0
    %3049 = vmatprep.subr.mxu0 0.0
    %3050 = vmatpush2.msra.mxu0 0.0
    %3051 = vmatprep.subr.mxu0 0.0
    %3052 = vmatpush2.msra.mxu0 0.0
    %3053 = vmatprep.subr.mxu0 0.0
    %3054 = vmatpush2.msra.mxu0 0.0
    %3055 = vmatprep.subr.mxu0 0.0
    %3056 = vmatpush2.msra.mxu0 0.0
    %3057 = vmatprep.subr.mxu0 0.0
    %3058 = vmatpush2.msra.mxu0 0.0
    %3059 = vmatprep.mubr.f32.mxu0 0.0
    %3060 = vmatmul.mubr.f32.gmra.mxu0 %v2990
    %v3061 = vpop.f32.mrf.mxu0
    %v3062 = vadd.f32 %v517, %v3061
    %v3063 = vpop.f32.mrf.mxu0
    %v3064 = vadd.f32 %v519, %v3063
    %3065 = vmatprep.mubr.f32.mxu0 0.0
    %3066 = vmatmul.mubr.f32.gmra.mxu0 %v2993
    %v3067 = vpop.f32.mrf.mxu0
    %v3068 = vadd.f32 %v523, %v3067
    %v3069 = vpop.f32.mrf.mxu0
    %v3070 = vadd.f32 %v525, %v3069
    %3071 = vdwg.mxu0
    %v3072 = vld [vmem:[#allocation9] sm:$0xff]
    %v3073 = vld [vmem:[#allocation9 + $0x8] sm:$0xff]
    %v3074 = vld [vmem:[%s14] sm:$0xff]
    %v3075 = vld [vmem:[%s14 + $0x8] sm:$0xff]
    %s3076 = scalar_lea.vmem %s14, 16
    %v3077 = vld [vmem:[%s3076] sm:$0xff]
    %v3078 = vld [vmem:[%s3076 + $0x8] sm:$0xff]
    %v3079 = vadd.f32 %v3062, %v3064
    %3080 = vadd.xlane.f32.xlu0 %v3079
    %v3081 = vpop.xlane.xlu0 %3080
    %v3082 = vadd.f32 %v3068, %v3070
    %3083 = vadd.xlane.f32.xlu0 %v3082
    %v3084 = vpop.xlane.xlu0 %3083
    %v3085 = vmul.f32 %v3062, %v3062
    %v3086 = vmul.f32 %v3064, %v3064
    %v3087 = vmul.f32 %v3068, %v3068
    %v3088 = vmul.f32 %v3070, %v3070
    %v3089 = vadd.f32 %v3085, %v3086
    %3090 = vadd.xlane.f32.xlu0 %v3089
    %v3091 = vpop.xlane.xlu0 %3090
    %v3092 = vadd.f32 %v3087, %v3088
    %3093 = vadd.xlane.f32.xlu0 %v3092
    %v3094 = vpop.xlane.xlu0 %3093
    %v3096 = vsel %vm556, %v3072, 0
    %v3099 = vsel %vm556, %v3073, 0
    %3101 = vmatprep.subr.mxu0 0.0
    %3102 = vmatpush1.msra.mxu0 0.0
    %3103 = vmatprep.subr.mxu0 0.0
    %3104 = vmatpush1.msra.mxu0 0.0
    %3105 = vmatprep.subr.mxu0 0.0
    %3106 = vmatpush1.msra.mxu0 0.0
    %3107 = vmatprep.subr.mxu0 0.0
    %3108 = vmatpush1.msra.mxu0 0.0
    %3109 = vmatprep.subr.mxu0 0.0
    %3110 = vmatpush1.msra.mxu0 0.0
    %3111 = vmatprep.subr.mxu0 0.0
    %3112 = vmatpush1.msra.mxu0 0.0
    %3113 = vmatprep.subr.mxu0 0.0
    %3114 = vmatpush1.msra.mxu0 0.0
    %3115 = vmatprep.subr.mxu0 0.0
    %3116 = vmatpush1.msra.mxu0 0.0
    %3117 = vmatprep.subr.mxu0 0.0
    %3118 = vmatpush1.msra.mxu0 0.0
    %3119 = vmatprep.subr.mxu0 0.0
    %3120 = vmatpush1.msra.mxu0 0.0
    %3121 = vmatprep.subr.mxu0 0.0
    %3122 = vmatpush1.msra.mxu0 0.0
    %3123 = vmatprep.subr.mxu0 0.0
    %3124 = vmatpush1.msra.mxu0 0.0
    %3125 = vmatprep.subr.mxu0 0.0
    %3126 = vmatpush1.msra.mxu0 0.0
    %3127 = vmatprep.subr.mxu0 0.0
    %3128 = vmatpush1.msra.mxu0 0.0
    %3129 = vmatprep.subr.mxu0 0.0
    %3130 = vmatpush1.msra.mxu0 %v3084
    %3131 = vmatprep.subr.mxu0 0.0
    %3132 = vmatpush1.msra.mxu0 %v3081
    %3133 = vmatprep.subr.mxu0 0.0
    %3134 = vmatpush2.msra.mxu0 0.0
    %3135 = vmatprep.subr.mxu0 0.0
    %3136 = vmatpush2.msra.mxu0 0.0
    %3137 = vmatprep.subr.mxu0 0.0
    %3138 = vmatpush2.msra.mxu0 0.0
    %3139 = vmatprep.subr.mxu0 0.0
    %3140 = vmatpush2.msra.mxu0 0.0
    %3141 = vmatprep.subr.mxu0 0.0
    %3142 = vmatpush2.msra.mxu0 0.0
    %3143 = vmatprep.subr.mxu0 0.0
    %3144 = vmatpush2.msra.mxu0 0.0
    %3145 = vmatprep.subr.mxu0 0.0
    %3146 = vmatpush2.msra.mxu0 0.0
    %3147 = vmatprep.subr.mxu0 0.0
    %3148 = vmatpush2.msra.mxu0 0.0
    %3149 = vmatprep.subr.mxu0 0.0
    %3150 = vmatpush2.msra.mxu0 0.0
    %3151 = vmatprep.subr.mxu0 0.0
    %3152 = vmatpush2.msra.mxu0 0.0
    %3153 = vmatprep.subr.mxu0 0.0
    %3154 = vmatpush2.msra.mxu0 0.0
    %3155 = vmatprep.subr.mxu0 0.0
    %3156 = vmatpush2.msra.mxu0 0.0
    %3157 = vmatprep.subr.mxu0 0.0
    %3158 = vmatpush2.msra.mxu0 0.0
    %3159 = vmatprep.subr.mxu0 0.0
    %3160 = vmatpush2.msra.mxu0 0.0
    %3161 = vmatprep.subr.mxu0 0.0
    %3162 = vmatpush2.msra.mxu0 0.0
    %3163 = vmatprep.subr.mxu0 0.0
    %3164 = vmatpush2.msra.mxu0 0.0
    %3165 = vmatprep.mubr.f32.mxu0 0.0
    %3166 = vmatmul.mubr.f32.gmra.mxu0 %v3096
    %v3167 = vpop.f32.mrf.mxu0
    %v3168 = vadd.f32 0.0, %v3167
    %v3169 = vpop.f32.mrf.mxu0
    %3170 = vmatprep.mubr.f32.mxu0 0.0
    %3171 = vmatmul.mubr.f32.gmra.mxu0 %v3099
    %v3172 = vpop.f32.mrf.mxu0
    %v3173 = vadd.f32 0.0, %v3172
    %v3174 = vpop.f32.mrf.mxu0
    %3175 = vdwg.mxu0
    %v3176 = vmul.f32 %v3168, 0.001953125
    %v3177 = vmul.f32 %v3173, 0.001953125
    %3178 = vmatprep.subr.mxu0 0.0
    %3179 = vmatpush1.msra.mxu0 0.0
    %3180 = vmatprep.subr.mxu0 0.0
    %3181 = vmatpush1.msra.mxu0 0.0
    %3182 = vmatprep.subr.mxu0 0.0
    %3183 = vmatpush1.msra.mxu0 0.0
    %3184 = vmatprep.subr.mxu0 0.0
    %3185 = vmatpush1.msra.mxu0 0.0
    %3186 = vmatprep.subr.mxu0 0.0
    %3187 = vmatpush1.msra.mxu0 0.0
    %3188 = vmatprep.subr.mxu0 0.0
    %3189 = vmatpush1.msra.mxu0 0.0
    %3190 = vmatprep.subr.mxu0 0.0
    %3191 = vmatpush1.msra.mxu0 0.0
    %3192 = vmatprep.subr.mxu0 0.0
    %3193 = vmatpush1.msra.mxu0 0.0
    %3194 = vmatprep.subr.mxu0 0.0
    %3195 = vmatpush1.msra.mxu0 0.0
    %3196 = vmatprep.subr.mxu0 0.0
    %3197 = vmatpush1.msra.mxu0 0.0
    %3198 = vmatprep.subr.mxu0 0.0
    %3199 = vmatpush1.msra.mxu0 0.0
    %3200 = vmatprep.subr.mxu0 0.0
    %3201 = vmatpush1.msra.mxu0 0.0
    %3202 = vmatprep.subr.mxu0 0.0
    %3203 = vmatpush1.msra.mxu0 0.0
    %3204 = vmatprep.subr.mxu0 0.0
    %3205 = vmatpush1.msra.mxu0 0.0
    %3206 = vmatprep.subr.mxu0 0.0
    %3207 = vmatpush1.msra.mxu0 %v3094
    %3208 = vmatprep.subr.mxu0 0.0
    %3209 = vmatpush1.msra.mxu0 %v3091
    %3210 = vmatprep.subr.mxu0 0.0
    %3211 = vmatpush2.msra.mxu0 0.0
    %3212 = vmatprep.subr.mxu0 0.0
    %3213 = vmatpush2.msra.mxu0 0.0
    %3214 = vmatprep.subr.mxu0 0.0
    %3215 = vmatpush2.msra.mxu0 0.0
    %3216 = vmatprep.subr.mxu0 0.0
    %3217 = vmatpush2.msra.mxu0 0.0
    %3218 = vmatprep.subr.mxu0 0.0
    %3219 = vmatpush2.msra.mxu0 0.0
    %3220 = vmatprep.subr.mxu0 0.0
    %3221 = vmatpush2.msra.mxu0 0.0
    %3222 = vmatprep.subr.mxu0 0.0
    %3223 = vmatpush2.msra.mxu0 0.0
    %3224 = vmatprep.subr.mxu0 0.0
    %3225 = vmatpush2.msra.mxu0 0.0
    %3226 = vmatprep.subr.mxu0 0.0
    %3227 = vmatpush2.msra.mxu0 0.0
    %3228 = vmatprep.subr.mxu0 0.0
    %3229 = vmatpush2.msra.mxu0 0.0
    %3230 = vmatprep.subr.mxu0 0.0
    %3231 = vmatpush2.msra.mxu0 0.0
    %3232 = vmatprep.subr.mxu0 0.0
    %3233 = vmatpush2.msra.mxu0 0.0
    %3234 = vmatprep.subr.mxu0 0.0
    %3235 = vmatpush2.msra.mxu0 0.0
    %3236 = vmatprep.subr.mxu0 0.0
    %3237 = vmatpush2.msra.mxu0 0.0
    %3238 = vmatprep.subr.mxu0 0.0
    %3239 = vmatpush2.msra.mxu0 0.0
    %3240 = vmatprep.subr.mxu0 0.0
    %3241 = vmatpush2.msra.mxu0 0.0
    %3242 = vmatprep.mubr.f32.mxu0 0.0
    %3243 = vmatmul.mubr.f32.gmra.mxu0 %v3096
    %v3244 = vpop.f32.mrf.mxu0
    %v3245 = vadd.f32 0.0, %v3244
    %v3246 = vpop.f32.mrf.mxu0
    %3247 = vmatprep.mubr.f32.mxu0 0.0
    %3248 = vmatmul.mubr.f32.gmra.mxu0 %v3099
    %v3249 = vpop.f32.mrf.mxu0
    %v3250 = vadd.f32 0.0, %v3249
    %v3251 = vpop.f32.mrf.mxu0
    %3252 = vdwg.mxu0
    %v3253 = vmul.f32 %v3245, 0.001953125
    %v3254 = vmul.f32 %v3250, 0.001953125
    %v3255 = vmul.f32 %v3176, %v3176
    %v3256 = vmul.f32 %v3177, %v3177
    %v3257 = vsub.f32 %v3253, %v3255
    %v3258 = vsub.f32 %v3254, %v3256
    %v3259 = vadd.f32 %v3257, 1e-05
    %v3260 = vadd.f32 %v3258, 1e-05
    %v3261 = vrsqrt.pop %v3259
    %v3262 = vrsqrt.pop %v3260
    %v3263 = vmul.f32 %v3261, %v3074
    %v3264 = vmul.f32 %v3262, %v3075
    %3266 = vset.pattern.permute.xlu0 0
    %3267 = vperm.xlu0 %3266, %v3176
    %v3268 = vpop.permute.xlu0 %3267
    %3271 = vset.pattern.permute.xlu0 0
    %3272 = vperm.xlu0 %3271, %v3177
    %v3273 = vpop.permute.xlu0 %3272
    %v3275 = vsub.f32 %v3062, %v3268
    %v3276 = vsub.f32 %v3064, %v3268
    %v3277 = vsub.f32 %v3068, %v3273
    %v3278 = vsub.f32 %v3070, %v3273
    %3280 = vset.pattern.permute.xlu0 0
    %3281 = vperm.xlu0 %3280, %v3263
    %v3282 = vpop.permute.xlu0 %3281
    %3285 = vset.pattern.permute.xlu0 0
    %3286 = vperm.xlu0 %3285, %v3264
    %v3287 = vpop.permute.xlu0 %3286
    %v3289 = vmul.f32 %v3275, %v3282
    %v3290 = vmul.f32 %v3276, %v3282
    %v3291 = vmul.f32 %v3277, %v3287
    %v3292 = vmul.f32 %v3278, %v3287
    %3294 = vset.pattern.permute.xlu0 0
    %3295 = vperm.xlu0 %3294, %v3077
    %v3296 = vpop.permute.xlu0 %3295
    %3299 = vset.pattern.permute.xlu0 0
    %3300 = vperm.xlu0 %3299, %v3078
    %v3301 = vpop.permute.xlu0 %3300
    %v3303 = vadd.f32 %v3289, %v3296
    %v3304 = vadd.f32 %v3290, %v3296
    %v3305 = vadd.f32 %v3291, %v3301
    %v3306 = vadd.f32 %v3292, %v3301
    %v3307 = vmax.f32 %v3303, 0.0
    %v3308 = vmax.f32 %v3304, 0.0
    %v3309 = vmax.f32 %v3305, 0.0
    %v3310 = vmax.f32 %v3306, 0.0
    %3311 = vst [vmem:[%s22] sm:$0xff] %v3307
    %3312 = vst [vmem:[%s22 + $0x8] sm:$0xff] %v3308
    %3313 = vst [vmem:[%s22 + $0x10] sm:$0xff] %v3309
    %3314 = vst [vmem:[%s22 + $0x18] sm:$0xff] %v3310
    // Predicated region
    $region154: #{ffc_bn_act_forward.1} parent=1 // pred_check
      _
    $region155: #{ffc_bn_act_forward.1} parent=1 // pred_check_branch
      %3316 = sbr.rel (0) target = $region157
    $region156: #{ffc_bn_act_forward.1} parent=1 // pred_region
      _
    $region157: #{ffc_bn_act_forward.1} parent=1 // pred_fallthru
      _
    // Predicated region
    $region158: #{ffc_bn_act_forward.1} parent=1 // pred_check
      _
    $region159: #{ffc_bn_act_forward.1} parent=1 // pred_check_branch
      %3318 = sbr.rel (0) target = $region161
    $region160: #{ffc_bn_act_forward.1} parent=1 // pred_region
      _
    $region161: #{ffc_bn_act_forward.1} parent=1 // pred_fallthru
      _
    // Predicated region
    $region162: #{ffc_bn_act_forward.1} parent=1 // pred_check
      _
    $region163: #{ffc_bn_act_forward.1} parent=1 // pred_check_branch
      %3320 = sbr.rel (0) target = $region165
    $region164: #{ffc_bn_act_forward.1} parent=1 // pred_region
      _
    $region165: #{ffc_bn_act_forward.1} parent=1 // pred_fallthru
      _
    // Predicated region
    $region166: #{ffc_bn_act_forward.1} parent=1 // pred_check
      _
    $region167: #{ffc_bn_act_forward.1} parent=1 // pred_check_branch
      %3322 = sbr.rel (0) target = $region169
    $region168: #{ffc_bn_act_forward.1} parent=1 // pred_region
      _
    $region169: #{ffc_bn_act_forward.1} parent=1 // pred_fallthru
      _
    %3323 = vsyncpa [#allocation10], 1
    %3324 = vsyncpa [#allocation12], 1
  %3325 = vsyncmov [#allocation8]
  %s3326 = vpop.sfrf %3325
  %p3327 = scmp.eq.s32.totalorder %s3326, 0
  %p3328 = pneg %p3327
  %3330 = shalt.err (%p3328)
  %s3331 = scalar_lea.sflag [#allocation8], 1
  %3332 = vsyncmov %s3331
  %s3333 = vpop.sfrf %3332
  %p3334 = scmp.eq.s32.totalorder %s3333, 0
  %p3335 = pneg %p3334
  %3337 = shalt.err (%p3335)
  %s3338 = scalar_lea.sflag [#allocation8], 2
  %3339 = vsyncmov %s3338
  %s3340 = vpop.sfrf %3339
  %p3341 = scmp.eq.s32.totalorder %s3340, 0
  %p3342 = pneg %p3341
  %3344 = shalt.err (%p3342)
  %s3345 = scalar_lea.sflag [#allocation8], 3
  %3346 = vsyncmov %s3345
  %s3347 = vpop.sfrf %3346
  %p3348 = scmp.eq.s32.totalorder %s3347, 0
  %p3349 = pneg %p3348
  %3351 = shalt.err (%p3349)
  %s3352 = scalar_lea.sflag [#allocation8], 4
  %3353 = vsyncmov %s3352
  %s3354 = vpop.sfrf %3353
  %p3355 = scmp.eq.s32.totalorder %s3354, 0
  %p3356 = pneg %p3355
  %3358 = shalt.err (%p3356)
  %s3359 = scalar_lea.sflag [#allocation8], 5
  %3360 = vsyncmov %s3359
  %s3361 = vpop.sfrf %3360
  %p3362 = scmp.eq.s32.totalorder %s3361, 0
  %p3363 = pneg %p3362
  %3365 = shalt.err (%p3363)

</llo_original>
